<compile_context>
chip_gen: v6e
topology: v6e:2x2x1
jax: 0.10.0
libtpu: 0.0.40
codegen_flags: <defaults>
</compile_context>

<pallas_src>
import jax
import jax.numpy as jnp
from jax.experimental import pallas as pl
from jax.experimental.pallas import tpu as pltpu

FACTOR_NUM = 64
SLOTS = ("morn", "noon", "night", "midnight")
NUM_SLOTS = len(SLOTS)

# MXU operand dtype.  bf16 halves adjacency HBM/VMEM bytes and hits the quoted
# MXU peak; accumulation stays f32.  Flip to jnp.float32 to bit-match the
# PyTorch f32 reference.
MATMUL_DTYPE = jnp.bfloat16

_NORM_EPS = 1e-12  # F.normalize(p=2, dim=1) default eps


# ---------------------------------------------------------------------------
# Fused kernel: 3-hop GCN propagation per time slot + attention combine.
# Grid = (num_slots,), sequential ("arbitrary"): each step handles one slot's
# propagation; the last step runs the attention scoring / normalization /
# weighted combine over all slots resident in VMEM.
# ---------------------------------------------------------------------------
def _fused_bpr_kernel(ui_ref, uemb_ref, iemb_ref, w_ref, w1t_ref, b1_ref,
                      w2_ref, gcn_u_ref, gcn_i_ref, gu_slots_ref, gi_slots):
    s = pl.program_id(0)
    last = pl.num_programs(0) - 1

    ui = ui_ref[0]                       # (U, I) in MATMUL_DTYPE
    iu = ui.T                            # one XLU transpose per slot, reused by
                                         # all three item-side hops (no HBM iu)
    w = w_ref[0]                         # (1, F) f32 per-slot diag(weight)

    def scaled(x):
        # (A @ X) @ diag(w) == A @ (X * w): fold the column scale into the
        # matmul operand and cast it to the MXU operand dtype.
        return (x * w).astype(MATMUL_DTYPE)

    # ---- hop 1 -------------------------------------------------------------
    g1u = jnp.dot(ui, scaled(iemb_ref[...]), preferred_element_type=jnp.float32)
    g1i = jnp.dot(iu, scaled(uemb_ref[...]), preferred_element_type=jnp.float32)
    gu_slots_ref[s] = 0.5 * g1u
    gi_slots[s] = 0.5 * g1i
    # ---- hop 2 (incremental accumulation keeps the live set small) ---------
    g2u = jnp.dot(ui, scaled(g1i), preferred_element_type=jnp.float32)
    g2i = jnp.dot(iu, scaled(g1u), preferred_element_type=jnp.float32)
    gu_slots_ref[s] = gu_slots_ref[s] + (1.0 / 3.0) * g2u
    gi_slots[s] = gi_slots[s] + (1.0 / 3.0) * g2i
    # ---- hop 3 -------------------------------------------------------------
    g3u = jnp.dot(ui, scaled(g2i), preferred_element_type=jnp.float32)
    g3i = jnp.dot(iu, scaled(g2u), preferred_element_type=jnp.float32)
    gu_slots_ref[s] = gu_slots_ref[s] + 0.25 * g3u
    gi_slots[s] = gi_slots[s] + 0.25 * g3i

    # ---- last slot: attention score + L2 normalize + weighted combine ------
    @pl.when(s == last)
    def _finalize():
        w1t = w1t_ref[...].astype(MATMUL_DTYPE)   # (F, F) so x @ W1^T
        b1 = b1_ref[...]                          # (1, F)
        w2 = w2_ref[...]                          # (1, F) attn2 weight row

        def combine(slot_emb, base):
            # slot_emb: (S, N, F) f32 per-slot GCN embeddings; base: (N, F).
            S_, N_, F_ = slot_emb.shape
            # Batch the four score matmuls into one (w1t stationary on MXU).
            flat = slot_emb.reshape(S_ * N_, F_).astype(MATMUL_DTYPE)
            h = jnp.tanh(jnp.dot(flat, w1t, preferred_element_type=jnp.float32)
                         + b1)
            # attn2 is a 1-wide linear -> VPU lane reduce instead of MXU.
            sc = jnp.sum(h * w2, axis=-1, keepdims=True).reshape(S_, N_, 1)
            # F.normalize(p=2, dim=1, eps=1e-12): 1/max(||s||, eps) via rsqrt.
            inv = jax.lax.rsqrt(
                jnp.maximum(jnp.sum(sc * sc, axis=0, keepdims=True),
                            _NORM_EPS * _NORM_EPS))
            return base + jnp.sum((sc * inv) * slot_emb, axis=0)

        gcn_u_ref[...] = combine(gu_slots_ref[...], uemb_ref[...])
        gcn_i_ref[...] = combine(gi_slots[...], iemb_ref[...])


def _vmem_estimate_bytes(S, U, I, F):
    adj_b = 2 if MATMUL_DTYPE == jnp.bfloat16 else 4
    f32_b = 4
    est = 2 * U * I * adj_b            # ui slot, double-buffered by the pipeline
    est += U * I * adj_b               # in-kernel transposed copy (ui.T)
    est += 2 * (U + I) * F * f32_b     # embedding blocks (margin for buffering)
    est += S * (U + I) * F * f32_b     # resident gu output block + gi scratch
    est += (U + I) * F * f32_b         # combined outputs
    est += 4 * (U + I) * F * f32_b     # live hop intermediates / epilogue temps
    return est


def fused_bpr_embeddings(ui_stack, u_emb, i_emb, w_stack, w1_t, b1_row, w2_row):
    S, U, I = ui_stack.shape
    F = u_emb.shape[1]
    # TODO(synk): at real dataset sizes (U=3286, I=6369) a dense adjacency slot
    # no longer fits VMEM untiled; add a row-tile grid axis over U/I with
    # K-accumulation before scaling up (critical for v7x's 64 MiB VMEM).
    est = _vmem_estimate_bytes(S, U, I, F)
    assert est < 28 * 1024 * 1024, (
        f"estimated VMEM footprint {est} B exceeds the 32 MiB scoped budget; "
        "tile the adjacency before scaling U/I")
    return pl.pallas_call(
        _fused_bpr_kernel,
        out_shape=(
            jax.ShapeDtypeStruct((U, F), jnp.float32),      # gcn_users_embedding
            jax.ShapeDtypeStruct((I, F), jnp.float32),      # gcn_items_embedding
            jax.ShapeDtypeStruct((S, U, F), jnp.float32),   # per-slot user GCN emb
        ),
        grid_spec=pltpu.PrefetchScalarGridSpec(
            num_scalar_prefetch=0,
            grid=(S,),
            in_specs=[
                # NOTE: if profiles show the per-slot adjacency DMA exposed on
                # v6e, add pipeline_mode=pl.Buffered(3) to this spec.
                pl.BlockSpec((1, U, I), lambda s: (s, 0, 0)),   # ui slot (bf16)
                pl.BlockSpec((U, F), lambda s: (0, 0)),         # user embeddings
                pl.BlockSpec((I, F), lambda s: (0, 0)),         # item embeddings
                pl.BlockSpec((1, 1, F), lambda s: (s, 0, 0)),   # slot weight row
                pl.BlockSpec((F, F), lambda s: (0, 0)),         # attn1 W^T
                pl.BlockSpec((1, F), lambda s: (0, 0)),         # attn1 bias row
                pl.BlockSpec((1, F), lambda s: (0, 0)),         # attn2 weight row
            ],
            out_specs=(
                pl.BlockSpec((U, F), lambda s: (0, 0)),
                pl.BlockSpec((I, F), lambda s: (0, 0)),
                pl.BlockSpec((S, U, F), lambda s: (0, 0, 0)),   # resident stack
            ),
            scratch_shapes=[pltpu.VMEM((S, I, F), jnp.float32)],  # per-slot gi
        ),
        compiler_params=pltpu.CompilerParams(
            dimension_semantics=("arbitrary",)),
    )(ui_stack, u_emb, i_emb, w_stack, w1_t, b1_row, w2_row)


# ---------------------------------------------------------------------------
# Host / XLA glue.
# ---------------------------------------------------------------------------
def prepare_state(params, mats):
    """One-time preprocessing hoisted out of the per-step forward."""
    F = params["embed_user"].shape[1]
    ui_stack = jnp.stack([mats["ui_" + t] for t in SLOTS]).astype(MATMUL_DTYPE)
    w_stack = jnp.stack([params["w_" + t] for t in SLOTS])[:, None, :]  # (4,1,F)
    return {
        "embed_user": params["embed_user"],
        "embed_item": params["embed_item"],
        "ui_stack": ui_stack,                       # (4, U, I) bf16, pre-stacked
        "w_stack": w_stack,
        "attn1_w_t": params["attn1_w"].T,           # (F, F) so x @ W1^T
        "attn1_b_row": params["attn1_b"].reshape(1, F),
        "attn2_w_row": params["attn2_w"].reshape(1, F),
    }


@jax.jit
def _bpr_forward_device(state, user, item_i, item_j):
    del item_j  # gathered but never used by the reference forward either
    u_emb = state["embed_user"]
    i_emb = state["embed_item"]

    gcn_u, gcn_i, gu_slots = fused_bpr_embeddings(
        state["ui_stack"], u_emb, i_emb, state["w_stack"],
        state["attn1_w_t"], state["attn1_b_row"], state["attn2_w_row"])

    # Per-slot cluster predictions (tiny gathers; plain XLA glue).
    item_0 = i_emb[item_i]                                         # (B, F)
    user_slot = gu_slots[:, user, :]                               # (4, B, F)
    pred_cluster_means = jnp.mean(
        jnp.sum(user_slot * item_0[None], axis=-1), axis=-1)       # (4,)

    stats = jnp.stack([
        jnp.mean(u_emb), jnp.var(u_emb, ddof=1),
        jnp.mean(gcn_u), jnp.var(gcn_u, ddof=1),
        jnp.mean(i_emb), jnp.var(i_emb, ddof=1),
        jnp.mean(gcn_i), jnp.var(gcn_i, ddof=1),
    ])
    scalars = jnp.concatenate([stats, pred_cluster_means])         # (12,)
    return gcn_u, gcn_i, scalars


def bpr_forward(state, user, item_i, item_j):
    gcn_u, gcn_i, scalars = _bpr_forward_device(state, user, item_i, item_j)
    s = jax.device_get(scalars)                    # single host sync (12 scalars)

    def _fmt(vals):
        return "".join(str(round(float(v), 7)) + " " for v in vals)

    str_user = _fmt(s[0:4])
    str_item = _fmt(s[4:8])
    pred_cluster_means = [float(v) for v in s[8:12]]
    # TODO(synk): the reference print()s the pred-cluster means and then rebuilds
    # the sparse adjacencies via bool_matrix/readTrainSparseMatrix (host-side
    # defaultdict(set) mutation, data-dependent) — no Pallas equivalent; the
    # means are returned instead of printed to keep harness stdout clean.
    return gcn_u, gcn_i, str_user, str_item, pred_cluster_means


# ---------------------------------------------------------------------------
# Main: deterministic synthetic params / inputs at small shapes.
# ---------------------------------------------------------------------------
if __name__ == "__main__":
    USER_NUM, ITEM_NUM, BATCH = 128, 256, 8
    F = FACTOR_NUM

    key = jax.random.PRNGKey(0)
    ks = jax.random.split(key, 24)

    params = {
        "embed_user": 0.01 * jax.random.normal(ks[0], (USER_NUM, F), jnp.float32),
        "embed_item": 0.01 * jax.random.normal(ks[1], (ITEM_NUM, F), jnp.float32),
        "w_morn": jax.random.normal(ks[2], (F,), jnp.float32),
        "w_noon": jax.random.normal(ks[3], (F,), jnp.float32),
        "w_night": jax.random.normal(ks[4], (F,), jnp.float32),
        "w_midnight": jax.random.normal(ks[5], (F,), jnp.float32),
        "attn1_w": 0.1 * jax.random.normal(ks[6], (F, F), jnp.float32),
        "attn1_b": 0.1 * jax.random.normal(ks[7], (F,), jnp.float32),
        "attn2_w": 0.1 * jax.random.normal(ks[8], (1, F), jnp.float32),
    }

    # Synthetic "sparse" normalized adjacency (dense, deterministic, sparse-ish
    # values).  Only the user->item direction is stored; the kernel derives the
    # item->user direction from a single in-VMEM transpose.
    mats = {}
    for idx, t in enumerate(SLOTS):
        mask = (jax.random.uniform(ks[9 + idx], (USER_NUM, ITEM_NUM)) < 0.05
                ).astype(jnp.float32)
        vals = 0.1 * jax.random.uniform(ks[13 + idx], (USER_NUM, ITEM_NUM))
        mats["ui_" + t] = mask * vals

    user = jax.random.randint(ks[17], (BATCH,), 0, USER_NUM)
    item_i = jax.random.randint(ks[18], (BATCH,), 0, ITEM_NUM)
    item_j = jax.random.randint(ks[19], (BATCH,), 0, ITEM_NUM)

    state = prepare_state(params, mats)            # hoisted stacking / casting

    gcn_u, gcn_i, str_user, str_item, pred_means = bpr_forward(
        state, user, item_i, item_j)
    jax.block_until_ready((gcn_u, gcn_i))
    assert gcn_u.shape == (USER_NUM, F)
    assert gcn_i.shape == (ITEM_NUM, F)
    assert isinstance(str_user, str) and isinstance(str_item, str)
    assert len(pred_means) == NUM_SLOTS
    print("KERNEL_OK")
</pallas_src>

<mosaic_0001>
module attributes {stable_mosaic.version = 11 : i64} {
  func.func @_fused_bpr_kernel(%arg0: i32, %arg1: memref<1x128x256xbf16, #tpu.memory_space<vmem>>, %arg2: memref<128x64xf32, #tpu.memory_space<vmem>>, %arg3: memref<256x64xf32, #tpu.memory_space<vmem>>, %arg4: memref<1x1x64xf32, #tpu.memory_space<vmem>>, %arg5: memref<64x64xf32, #tpu.memory_space<vmem>>, %arg6: memref<1x64xf32, #tpu.memory_space<vmem>>, %arg7: memref<1x64xf32, #tpu.memory_space<vmem>>, %arg8: memref<128x64xf32, #tpu.memory_space<vmem>>, %arg9: memref<256x64xf32, #tpu.memory_space<vmem>>, %arg10: memref<4x128x64xf32, #tpu.memory_space<vmem>>, %arg11: memref<4x256x64xf32, #tpu.memory_space<vmem>>) attributes {dimension_semantics = [#tpu.dimension_semantics<arbitrary>], iteration_bounds = array<i64: 4>, scalar_prefetch = 0 : i64, scratch_operands = 1 : i64, tpu.core_type = #tpu.core_type<tc>, window_params = [{transform_indices = @transform_0, window_bounds = array<i64: 1, 128, 256>}, {pipeline_mode = #tpu.pipeline_mode<synchronous>, transform_indices = @transform_1, window_bounds = array<i64: 128, 64>}, {pipeline_mode = #tpu.pipeline_mode<synchronous>, transform_indices = @transform_2, window_bounds = array<i64: 256, 64>}, {transform_indices = @transform_3, window_bounds = array<i64: 1, 1, 64>}, {pipeline_mode = #tpu.pipeline_mode<synchronous>, transform_indices = @transform_4, window_bounds = array<i64: 64, 64>}, {pipeline_mode = #tpu.pipeline_mode<synchronous>, transform_indices = @transform_5, window_bounds = array<i64: 1, 64>}, {pipeline_mode = #tpu.pipeline_mode<synchronous>, transform_indices = @transform_6, window_bounds = array<i64: 1, 64>}, {pipeline_mode = #tpu.pipeline_mode<synchronous>, transform_indices = @transform_7, window_bounds = array<i64: 128, 64>}, {pipeline_mode = #tpu.pipeline_mode<synchronous>, transform_indices = @transform_8, window_bounds = array<i64: 256, 64>}, {pipeline_mode = #tpu.pipeline_mode<synchronous>, transform_indices = @transform_9, window_bounds = array<i64: 4, 128, 64>}]} {
    %c0 = arith.constant 0 : index
    %c0_0 = arith.constant 0 : index
    %c0_1 = arith.constant 0 : index
    %0 = vector.load %arg1[%c0, %c0_0, %c0_1] : memref<1x128x256xbf16, #tpu.memory_space<vmem>>, vector<1x128x256xbf16>
    %1 = vector.shape_cast %0 : vector<1x128x256xbf16> to vector<128x256xbf16>
    %2 = tpu.transpose %1, [1, 0] : vector<128x256xbf16> -> vector<256x128xbf16>
    %c0_2 = arith.constant 0 : index
    %c0_3 = arith.constant 0 : index
    %c0_4 = arith.constant 0 : index
    %3 = vector.load %arg4[%c0_2, %c0_3, %c0_4] : memref<1x1x64xf32, #tpu.memory_space<vmem>>, vector<1x1x64xf32>
    %4 = vector.shape_cast %3 : vector<1x1x64xf32> to vector<1x64xf32>
    %c0_5 = arith.constant 0 : index
    %c0_6 = arith.constant 0 : index
    %5 = vector.load %arg3[%c0_5, %c0_6] : memref<256x64xf32, #tpu.memory_space<vmem>>, vector<256x64xf32>
    %6 = vector.broadcast %4 : vector<1x64xf32> to vector<256x64xf32>
    %7 = arith.mulf %5, %6 : vector<256x64xf32>
    %8 = arith.truncf %7 : vector<256x64xf32> to vector<256x64xbf16>
    %cst = arith.constant dense<0.000000e+00> : vector<128x64xf32>
    %9 = tpu.matmul %1, %8, %cst {dimension_numbers = #tpu.dot_dimension_numbers<[1], [0], [0], [1], [0, 0, 1, 1], [], []>} : vector<128x256xbf16>, vector<256x64xbf16>, vector<128x64xf32> -> vector<128x64xf32>
    %c0_7 = arith.constant 0 : index
    %c0_8 = arith.constant 0 : index
    %10 = vector.load %arg2[%c0_7, %c0_8] : memref<128x64xf32, #tpu.memory_space<vmem>>, vector<128x64xf32>
    %11 = vector.broadcast %4 : vector<1x64xf32> to vector<128x64xf32>
    %12 = arith.mulf %10, %11 : vector<128x64xf32>
    %13 = arith.truncf %12 : vector<128x64xf32> to vector<128x64xbf16>
    %cst_9 = arith.constant dense<0.000000e+00> : vector<256x64xf32>
    %14 = tpu.matmul %2, %13, %cst_9 {dimension_numbers = #tpu.dot_dimension_numbers<[1], [0], [0], [1], [0, 0, 1, 1], [], []>} : vector<256x128xbf16>, vector<128x64xbf16>, vector<256x64xf32> -> vector<256x64xf32>
    %cst_10 = arith.constant 5.000000e-01 : f32
    %15 = vector.broadcast %cst_10 : f32 to vector<128x64xf32>
    %16 = arith.mulf %15, %9 : vector<128x64xf32>
    %17 = arith.index_cast %arg0 : i32 to index
    %c0_11 = arith.constant 0 : index
    %c0_12 = arith.constant 0 : index
    %18 = vector.load %arg10[%17, %c0_11, %c0_12] : memref<4x128x64xf32, #tpu.memory_space<vmem>>, vector<1x128x64xf32>
    %19 = vector.shape_cast %18 : vector<1x128x64xf32> to vector<128x64xf32>
    %20 = vector.shape_cast %16 : vector<128x64xf32> to vector<1x128x64xf32>
    tpu.vector_store %arg10[%17, %c0_11, %c0_12], %20 {strides = array<i32>} : memref<4x128x64xf32, #tpu.memory_space<vmem>>, vector<1x128x64xf32>,
    %cst_13 = arith.constant 5.000000e-01 : f32
    %21 = vector.broadcast %cst_13 : f32 to vector<256x64xf32>
    %22 = arith.mulf %21, %14 : vector<256x64xf32>
    %23 = arith.index_cast %arg0 : i32 to index
    %c0_14 = arith.constant 0 : index
    %c0_15 = arith.constant 0 : index
    %24 = vector.load %arg11[%23, %c0_14, %c0_15] : memref<4x256x64xf32, #tpu.memory_space<vmem>>, vector<1x256x64xf32>
    %25 = vector.shape_cast %24 : vector<1x256x64xf32> to vector<256x64xf32>
    %26 = vector.shape_cast %22 : vector<256x64xf32> to vector<1x256x64xf32>
    tpu.vector_store %arg11[%23, %c0_14, %c0_15], %26 {strides = array<i32>} : memref<4x256x64xf32, #tpu.memory_space<vmem>>, vector<1x256x64xf32>,
    %27 = vector.broadcast %4 : vector<1x64xf32> to vector<256x64xf32>
    %28 = arith.mulf %14, %27 : vector<256x64xf32>
    %29 = arith.truncf %28 : vector<256x64xf32> to vector<256x64xbf16>
    %cst_16 = arith.constant dense<0.000000e+00> : vector<128x64xf32>
    %30 = tpu.matmul %1, %29, %cst_16 {dimension_numbers = #tpu.dot_dimension_numbers<[1], [0], [0], [1], [0, 0, 1, 1], [], []>} : vector<128x256xbf16>, vector<256x64xbf16>, vector<128x64xf32> -> vector<128x64xf32>
    %31 = vector.broadcast %4 : vector<1x64xf32> to vector<128x64xf32>
    %32 = arith.mulf %9, %31 : vector<128x64xf32>
    %33 = arith.truncf %32 : vector<128x64xf32> to vector<128x64xbf16>
    %cst_17 = arith.constant dense<0.000000e+00> : vector<256x64xf32>
    %34 = tpu.matmul %2, %33, %cst_17 {dimension_numbers = #tpu.dot_dimension_numbers<[1], [0], [0], [1], [0, 0, 1, 1], [], []>} : vector<256x128xbf16>, vector<128x64xbf16>, vector<256x64xf32> -> vector<256x64xf32>
    %35 = arith.index_cast %arg0 : i32 to index
    %c0_18 = arith.constant 0 : index
    %c0_19 = arith.constant 0 : index
    %36 = vector.load %arg10[%35, %c0_18, %c0_19] : memref<4x128x64xf32, #tpu.memory_space<vmem>>, vector<1x128x64xf32>
    %37 = vector.shape_cast %36 : vector<1x128x64xf32> to vector<128x64xf32>
    %cst_20 = arith.constant 0.333333343 : f32
    %38 = vector.broadcast %cst_20 : f32 to vector<128x64xf32>
    %39 = arith.mulf %38, %30 : vector<128x64xf32>
    %40 = arith.addf %37, %39 : vector<128x64xf32>
    %41 = arith.index_cast %arg0 : i32 to index
    %c0_21 = arith.constant 0 : index
    %c0_22 = arith.constant 0 : index
    %42 = vector.load %arg10[%41, %c0_21, %c0_22] : memref<4x128x64xf32, #tpu.memory_space<vmem>>, vector<1x128x64xf32>
    %43 = vector.shape_cast %42 : vector<1x128x64xf32> to vector<128x64xf32>
    %44 = vector.shape_cast %40 : vector<128x64xf32> to vector<1x128x64xf32>
    tpu.vector_store %arg10[%41, %c0_21, %c0_22], %44 {strides = array<i32>} : memref<4x128x64xf32, #tpu.memory_space<vmem>>, vector<1x128x64xf32>,
    %45 = arith.index_cast %arg0 : i32 to index
    %c0_23 = arith.constant 0 : index
    %c0_24 = arith.constant 0 : index
    %46 = vector.load %arg11[%45, %c0_23, %c0_24] : memref<4x256x64xf32, #tpu.memory_space<vmem>>, vector<1x256x64xf32>
    %47 = vector.shape_cast %46 : vector<1x256x64xf32> to vector<256x64xf32>
    %cst_25 = arith.constant 0.333333343 : f32
    %48 = vector.broadcast %cst_25 : f32 to vector<256x64xf32>
    %49 = arith.mulf %48, %34 : vector<256x64xf32>
    %50 = arith.addf %47, %49 : vector<256x64xf32>
    %51 = arith.index_cast %arg0 : i32 to index
    %c0_26 = arith.constant 0 : index
    %c0_27 = arith.constant 0 : index
    %52 = vector.load %arg11[%51, %c0_26, %c0_27] : memref<4x256x64xf32, #tpu.memory_space<vmem>>, vector<1x256x64xf32>
    %53 = vector.shape_cast %52 : vector<1x256x64xf32> to vector<256x64xf32>
    %54 = vector.shape_cast %50 : vector<256x64xf32> to vector<1x256x64xf32>
    tpu.vector_store %arg11[%51, %c0_26, %c0_27], %54 {strides = array<i32>} : memref<4x256x64xf32, #tpu.memory_space<vmem>>, vector<1x256x64xf32>,
    %55 = vector.broadcast %4 : vector<1x64xf32> to vector<256x64xf32>
    %56 = arith.mulf %34, %55 : vector<256x64xf32>
    %57 = arith.truncf %56 : vector<256x64xf32> to vector<256x64xbf16>
    %cst_28 = arith.constant dense<0.000000e+00> : vector<128x64xf32>
    %58 = tpu.matmul %1, %57, %cst_28 {dimension_numbers = #tpu.dot_dimension_numbers<[1], [0], [0], [1], [0, 0, 1, 1], [], []>} : vector<128x256xbf16>, vector<256x64xbf16>, vector<128x64xf32> -> vector<128x64xf32>
    %59 = vector.broadcast %4 : vector<1x64xf32> to vector<128x64xf32>
    %60 = arith.mulf %30, %59 : vector<128x64xf32>
    %61 = arith.truncf %60 : vector<128x64xf32> to vector<128x64xbf16>
    %cst_29 = arith.constant dense<0.000000e+00> : vector<256x64xf32>
    %62 = tpu.matmul %2, %61, %cst_29 {dimension_numbers = #tpu.dot_dimension_numbers<[1], [0], [0], [1], [0, 0, 1, 1], [], []>} : vector<256x128xbf16>, vector<128x64xbf16>, vector<256x64xf32> -> vector<256x64xf32>
    %63 = arith.index_cast %arg0 : i32 to index
    %c0_30 = arith.constant 0 : index
    %c0_31 = arith.constant 0 : index
    %64 = vector.load %arg10[%63, %c0_30, %c0_31] : memref<4x128x64xf32, #tpu.memory_space<vmem>>, vector<1x128x64xf32>
    %65 = vector.shape_cast %64 : vector<1x128x64xf32> to vector<128x64xf32>
    %cst_32 = arith.constant 2.500000e-01 : f32
    %66 = vector.broadcast %cst_32 : f32 to vector<128x64xf32>
    %67 = arith.mulf %66, %58 : vector<128x64xf32>
    %68 = arith.addf %65, %67 : vector<128x64xf32>
    %69 = arith.index_cast %arg0 : i32 to index
    %c0_33 = arith.constant 0 : index
    %c0_34 = arith.constant 0 : index
    %70 = vector.load %arg10[%69, %c0_33, %c0_34] : memref<4x128x64xf32, #tpu.memory_space<vmem>>, vector<1x128x64xf32>
    %71 = vector.shape_cast %70 : vector<1x128x64xf32> to vector<128x64xf32>
    %72 = vector.shape_cast %68 : vector<128x64xf32> to vector<1x128x64xf32>
    tpu.vector_store %arg10[%69, %c0_33, %c0_34], %72 {strides = array<i32>} : memref<4x128x64xf32, #tpu.memory_space<vmem>>, vector<1x128x64xf32>,
    %73 = arith.index_cast %arg0 : i32 to index
    %c0_35 = arith.constant 0 : index
    %c0_36 = arith.constant 0 : index
    %74 = vector.load %arg11[%73, %c0_35, %c0_36] : memref<4x256x64xf32, #tpu.memory_space<vmem>>, vector<1x256x64xf32>
    %75 = vector.shape_cast %74 : vector<1x256x64xf32> to vector<256x64xf32>
    %cst_37 = arith.constant 2.500000e-01 : f32
    %76 = vector.broadcast %cst_37 : f32 to vector<256x64xf32>
    %77 = arith.mulf %76, %62 : vector<256x64xf32>
    %78 = arith.addf %75, %77 : vector<256x64xf32>
    %79 = arith.index_cast %arg0 : i32 to index
    %c0_38 = arith.constant 0 : index
    %c0_39 = arith.constant 0 : index
    %80 = vector.load %arg11[%79, %c0_38, %c0_39] : memref<4x256x64xf32, #tpu.memory_space<vmem>>, vector<1x256x64xf32>
    %81 = vector.shape_cast %80 : vector<1x256x64xf32> to vector<256x64xf32>
    %82 = vector.shape_cast %78 : vector<256x64xf32> to vector<1x256x64xf32>
    tpu.vector_store %arg11[%79, %c0_38, %c0_39], %82 {strides = array<i32>} : memref<4x256x64xf32, #tpu.memory_space<vmem>>, vector<1x256x64xf32>,
    %c3_i32 = arith.constant 3 : i32
    %83 = arith.cmpi eq, %arg0, %c3_i32 : i32
    %84 = arith.extui %83 : i1 to i32
    %c0_i32 = arith.constant 0 : i32
    %85 = arith.cmpi ne, %84, %c0_i32 : i32
    scf.if %85 {
      %c0_40 = arith.constant 0 : index
      %c0_41 = arith.constant 0 : index
      %86 = vector.load %arg5[%c0_40, %c0_41] : memref<64x64xf32, #tpu.memory_space<vmem>>, vector<64x64xf32>
      %87 = arith.truncf %86 : vector<64x64xf32> to vector<64x64xbf16>
      %c0_42 = arith.constant 0 : index
      %c0_43 = arith.constant 0 : index
      %88 = vector.load %arg6[%c0_42, %c0_43] : memref<1x64xf32, #tpu.memory_space<vmem>>, vector<1x64xf32>
      %c0_44 = arith.constant 0 : index
      %c0_45 = arith.constant 0 : index
      %89 = vector.load %arg7[%c0_44, %c0_45] : memref<1x64xf32, #tpu.memory_space<vmem>>, vector<1x64xf32>
      %c0_46 = arith.constant 0 : index
      %c0_47 = arith.constant 0 : index
      %c0_48 = arith.constant 0 : index
      %90 = vector.load %arg10[%c0_46, %c0_47, %c0_48] : memref<4x128x64xf32, #tpu.memory_space<vmem>>, vector<4x128x64xf32>
      %c0_49 = arith.constant 0 : index
      %c0_50 = arith.constant 0 : index
      %91 = vector.load %arg2[%c0_49, %c0_50] : memref<128x64xf32, #tpu.memory_space<vmem>>, vector<128x64xf32>
      %92 = vector.shape_cast %90 : vector<4x128x64xf32> to vector<512x64xf32>
      %93 = arith.truncf %92 : vector<512x64xf32> to vector<512x64xbf16>
      %cst_51 = arith.constant dense<0.000000e+00> : vector<512x64xf32>
      %94 = tpu.matmul %93, %87, %cst_51 {dimension_numbers = #tpu.dot_dimension_numbers<[1], [0], [0], [1], [0, 0, 1, 1], [], []>} : vector<512x64xbf16>, vector<64x64xbf16>, vector<512x64xf32> -> vector<512x64xf32>
      %95 = vector.broadcast %88 : vector<1x64xf32> to vector<512x64xf32>
      %96 = arith.addf %94, %95 : vector<512x64xf32>
      %97 = math.tanh %96 : vector<512x64xf32>
      %98 = vector.broadcast %89 : vector<1x64xf32> to vector<512x64xf32>
      %99 = arith.mulf %97, %98 : vector<512x64xf32>
      %cst_52 = arith.constant dense<0.000000e+00> : vector<512xf32>
      %100 = vector.multi_reduction <add>, %99, %cst_52 [1] : vector<512x64xf32> to vector<512xf32>
      %101 = vector.shape_cast %100 : vector<512xf32> to vector<512x1xf32>
      %102 = vector.shape_cast %101 : vector<512x1xf32> to vector<4x128x1xf32>
      %103 = arith.mulf %102, %102 : vector<4x128x1xf32>
      %cst_53 = arith.constant dense<0.000000e+00> : vector<128x1xf32>
      %104 = vector.multi_reduction <add>, %103, %cst_53 [0] : vector<4x128x1xf32> to vector<128x1xf32>
      %105 = vector.shape_cast %104 : vector<128x1xf32> to vector<1x128x1xf32>
      %cst_54 = arith.constant 1.000000e-24 : f32
      %106 = vector.broadcast %cst_54 : f32 to vector<1x128x1xf32>
      %107 = arith.maximumf %105, %106 : vector<1x128x1xf32>
      %108 = math.rsqrt %107 : vector<1x128x1xf32>
      %109 = vector.broadcast %108 : vector<1x128x1xf32> to vector<4x128x1xf32>
      %110 = arith.mulf %102, %109 : vector<4x128x1xf32>
      %111 = vector.broadcast %110 : vector<4x128x1xf32> to vector<4x128x64xf32>
      %112 = arith.mulf %111, %90 : vector<4x128x64xf32>
      %cst_55 = arith.constant dense<0.000000e+00> : vector<128x64xf32>
      %113 = vector.multi_reduction <add>, %112, %cst_55 [0] : vector<4x128x64xf32> to vector<128x64xf32>
      %114 = arith.addf %91, %113 : vector<128x64xf32>
      %c0_56 = arith.constant 0 : index
      %c0_57 = arith.constant 0 : index
      %115 = vector.load %arg8[%c0_56, %c0_57] : memref<128x64xf32, #tpu.memory_space<vmem>>, vector<128x64xf32>
      tpu.vector_store %arg8[%c0_56, %c0_57], %114 {strides = array<i32>} : memref<128x64xf32, #tpu.memory_space<vmem>>, vector<128x64xf32>,
      %c0_58 = arith.constant 0 : index
      %c0_59 = arith.constant 0 : index
      %c0_60 = arith.constant 0 : index
      %116 = vector.load %arg11[%c0_58, %c0_59, %c0_60] : memref<4x256x64xf32, #tpu.memory_space<vmem>>, vector<4x256x64xf32>
      %c0_61 = arith.constant 0 : index
      %c0_62 = arith.constant 0 : index
      %117 = vector.load %arg3[%c0_61, %c0_62] : memref<256x64xf32, #tpu.memory_space<vmem>>, vector<256x64xf32>
      %118 = vector.shape_cast %116 : vector<4x256x64xf32> to vector<1024x64xf32>
      %119 = arith.truncf %118 : vector<1024x64xf32> to vector<1024x64xbf16>
      %cst_63 = arith.constant dense<0.000000e+00> : vector<1024x64xf32>
      %120 = tpu.matmul %119, %87, %cst_63 {dimension_numbers = #tpu.dot_dimension_numbers<[1], [0], [0], [1], [0, 0, 1, 1], [], []>} : vector<1024x64xbf16>, vector<64x64xbf16>, vector<1024x64xf32> -> vector<1024x64xf32>
      %121 = vector.broadcast %88 : vector<1x64xf32> to vector<1024x64xf32>
      %122 = arith.addf %120, %121 : vector<1024x64xf32>
      %123 = math.tanh %122 : vector<1024x64xf32>
      %124 = vector.broadcast %89 : vector<1x64xf32> to vector<1024x64xf32>
      %125 = arith.mulf %123, %124 : vector<1024x64xf32>
      %cst_64 = arith.constant dense<0.000000e+00> : vector<1024xf32>
      %126 = vector.multi_reduction <add>, %125, %cst_64 [1] : vector<1024x64xf32> to vector<1024xf32>
      %127 = vector.shape_cast %126 : vector<1024xf32> to vector<1024x1xf32>
      %128 = vector.shape_cast %127 : vector<1024x1xf32> to vector<4x256x1xf32>
      %129 = arith.mulf %128, %128 : vector<4x256x1xf32>
      %cst_65 = arith.constant dense<0.000000e+00> : vector<256x1xf32>
      %130 = vector.multi_reduction <add>, %129, %cst_65 [0] : vector<4x256x1xf32> to vector<256x1xf32>
      %131 = vector.shape_cast %130 : vector<256x1xf32> to vector<1x256x1xf32>
      %cst_66 = arith.constant 1.000000e-24 : f32
      %132 = vector.broadcast %cst_66 : f32 to vector<1x256x1xf32>
      %133 = arith.maximumf %131, %132 : vector<1x256x1xf32>
      %134 = math.rsqrt %133 : vector<1x256x1xf32>
      %135 = vector.broadcast %134 : vector<1x256x1xf32> to vector<4x256x1xf32>
      %136 = arith.mulf %128, %135 : vector<4x256x1xf32>
      %137 = vector.broadcast %136 : vector<4x256x1xf32> to vector<4x256x64xf32>
      %138 = arith.mulf %137, %116 : vector<4x256x64xf32>
      %cst_67 = arith.constant dense<0.000000e+00> : vector<256x64xf32>
      %139 = vector.multi_reduction <add>, %138, %cst_67 [0] : vector<4x256x64xf32> to vector<256x64xf32>
      %140 = arith.addf %117, %139 : vector<256x64xf32>
      %c0_68 = arith.constant 0 : index
      %c0_69 = arith.constant 0 : index
      %141 = vector.load %arg9[%c0_68, %c0_69] : memref<256x64xf32, #tpu.memory_space<vmem>>, vector<256x64xf32>
      tpu.vector_store %arg9[%c0_68, %c0_69], %140 {strides = array<i32>} : memref<256x64xf32, #tpu.memory_space<vmem>>, vector<256x64xf32>,
    } else {
    }
    return
  }
  func.func @transform_0(%arg0: i32) -> (i32, i32, i32) {
    %c0_i32 = arith.constant 0 : i32
    %c0_i32_0 = arith.constant 0 : i32
    %c0_i32_1 = arith.constant 0 : i32
    return %arg0, %c0_i32, %c0_i32_0 : i32, i32, i32
  }
  func.func @transform_1(%arg0: i32) -> (i32, i32) {
    %c0_i32 = arith.constant 0 : i32
    %c0_i32_0 = arith.constant 0 : i32
    %c0_i32_1 = arith.constant 0 : i32
    return %c0_i32, %c0_i32_0 : i32, i32
  }
  func.func @transform_2(%arg0: i32) -> (i32, i32) {
    %c0_i32 = arith.constant 0 : i32
    %c0_i32_0 = arith.constant 0 : i32
    %c0_i32_1 = arith.constant 0 : i32
    return %c0_i32, %c0_i32_0 : i32, i32
  }
  func.func @transform_3(%arg0: i32) -> (i32, i32, i32) {
    %c0_i32 = arith.constant 0 : i32
    %c0_i32_0 = arith.constant 0 : i32
    %c0_i32_1 = arith.constant 0 : i32
    return %arg0, %c0_i32, %c0_i32_0 : i32, i32, i32
  }
  func.func @transform_4(%arg0: i32) -> (i32, i32) {
    %c0_i32 = arith.constant 0 : i32
    %c0_i32_0 = arith.constant 0 : i32
    %c0_i32_1 = arith.constant 0 : i32
    return %c0_i32, %c0_i32_0 : i32, i32
  }
  func.func @transform_5(%arg0: i32) -> (i32, i32) {
    %c0_i32 = arith.constant 0 : i32
    %c0_i32_0 = arith.constant 0 : i32
    %c0_i32_1 = arith.constant 0 : i32
    return %c0_i32, %c0_i32_0 : i32, i32
  }
  func.func @transform_6(%arg0: i32) -> (i32, i32) {
    %c0_i32 = arith.constant 0 : i32
    %c0_i32_0 = arith.constant 0 : i32
    %c0_i32_1 = arith.constant 0 : i32
    return %c0_i32, %c0_i32_0 : i32, i32
  }
  func.func @transform_7(%arg0: i32) -> (i32, i32) {
    %c0_i32 = arith.constant 0 : i32
    %c0_i32_0 = arith.constant 0 : i32
    %c0_i32_1 = arith.constant 0 : i32
    return %c0_i32, %c0_i32_0 : i32, i32
  }
  func.func @transform_8(%arg0: i32) -> (i32, i32) {
    %c0_i32 = arith.constant 0 : i32
    %c0_i32_0 = arith.constant 0 : i32
    %c0_i32_1 = arith.constant 0 : i32
    return %c0_i32, %c0_i32_0 : i32, i32
  }
  func.func @transform_9(%arg0: i32) -> (i32, i32, i32) {
    %c0_i32 = arith.constant 0 : i32
    %c0_i32_0 = arith.constant 0 : i32
    %c0_i32_1 = arith.constant 0 : i32
    %c0_i32_2 = arith.constant 0 : i32
    return %c0_i32, %c0_i32_0, %c0_i32_1 : i32, i32, i32
  }
}

</mosaic_0001>

<llo_original>
// kernel: _bpr_forward_device.1
$region0: #{_bpr_forward_device.1}
  #allocation0 [shape = 'u32[]', space=smem, size = 0x4, offset = 0x4, fixed_abs, tag = 'smem constant byte address 0x4 - core index']
  #allocation1 [shape = 'u32[144,128]{1,0:T(1,128)}', space=vmem, size = 0x12000, scoped, tag = 'internal scratch']
  #allocation2 [shape = 'f32[4,256,64]{2,1,0:T(8,128)}', space=vmem, size = 0x80000, scoped, tag = 'scratch operand']
  %s0 = inlined_call_operand.vmem [shape: bf16[4,128,256], index: 0, kind: input, shape index: {}]
  %s1 = inlined_call_operand.vmem [shape: f32[128,64], index: 1, kind: input, shape index: {}]
  %s2 = inlined_call_operand.vmem [shape: f32[256,64], index: 2, kind: input, shape index: {}]
  %s3 = inlined_call_operand.vmem [shape: f32[4,1,64], index: 3, kind: input, shape index: {}]
  %s4 = inlined_call_operand.vmem [shape: f32[64,64], index: 4, kind: input, shape index: {}]
  %s5 = inlined_call_operand.vmem [shape: f32[1,64], index: 5, kind: input, shape index: {}]
  %s6 = inlined_call_operand.vmem [shape: f32[1,64], index: 6, kind: input, shape index: {}]
  %s7 = inlined_call_operand.vmem [shape: f32[128,64], index: 7, kind: output, shape index: {0}]
  %s8 = inlined_call_operand.vmem [shape: f32[256,64], index: 8, kind: output, shape index: {1}]
  %s9 = inlined_call_operand.vmem [shape: f32[4,128,64], index: 9, kind: output, shape index: {2}]
  %10 = xla_tuple %s7, %s8, %s9
  %s11 = sld [smem:[#allocation0]]
  $region81: #{_bpr_forward_device.1} parent=0
    _
  %s13 = ssub.s32 1, %s11
  %s14 = scalar_select 0, %s13, %s11
  loop: start=0, step=1, limit=6
  $region2: #{_bpr_forward_device.1} parent=0 // loop_pre_header
    _
  $region3: #{_bpr_forward_device.1} parent=0 // loop_header
    %s16 = sphi 0, %s20
    %p17 = scmp.ge.s32.totalorder %s16, 6
    %s26 = sphi 0, %s28
    %s29 = sphi 0, %s26
    %s30 = sphi 0, %s29
    %s46 = sphi 0, %s30
    %s50 = sphi 0, %s50
    %s52 = sphi 0, %s50
    %s53 = sphi 0, %s52
    %s67 = sphi 0, %s53
    %s71 = sphi 0, %s71
    %s73 = sphi 0, %s71
    %s74 = sphi 0, %s73
    %s88 = sphi 0, %s74
    %s94 = sphi 0, %s96
    %s97 = sphi 0, %s94
    %s98 = sphi 0, %s97
    %s114 = sphi 0, %s98
    %s118 = sphi 0, %s118
    %s120 = sphi 0, %s118
    %s121 = sphi 0, %s120
    %s135 = sphi 0, %s121
    %s139 = sphi 0, %s139
    %s141 = sphi 0, %s139
    %s142 = sphi 0, %s141
    %s156 = sphi 0, %s142
    %s160 = sphi 0, %s160
    %s162 = sphi 0, %s160
    %s163 = sphi 0, %s162
    %s177 = sphi 0, %s163
    %s181 = sphi 0, %s181
    %s183 = sphi 0, %s181
    %s184 = sphi 0, %s183
    %s198 = sphi 0, %s184
    %s202 = sphi 0, %s202
    %s204 = sphi 0, %s202
    %s205 = sphi 0, %s204
    %s219 = sphi 0, %s205
    %s223 = sphi 0, %s223
    %s225 = sphi 0, %s223
    %s226 = sphi 0, %s225
    %s240 = sphi 0, %s226
  $region4: #{_bpr_forward_device.1} parent=0 // loop_header_branch
    %19 = sbr.rel (%p17) target = $region8
  $region5: #{_bpr_forward_device.1} parent=0 // loop_body
    %s21 = ssub.s32 %s16, 1
    %s22 = ssub.s32 %s16, 2
    %s23 = sadd.s32 %s16, 1
    %s24 = ssub.s32 %s16, %s23
    %p25 = scmp.eq.s32.totalorder %s24, 0
    %s27 = sadd.s32 %s26, 1
    %s28 = scalar_select %p25, %s26, %s27
    %p31 = pneg %p25
    %p32 = scmp.eq.s32.totalorder %s16, 3
    %p33 = por %p31, %p32
    %p34 = scmp.ne.s32.totalorder %s26, %s29
    %p35 = scmp.eq.s32.totalorder %s16, 0
    %p36 = por %p34, %p35
    %p37 = scmp.ne.s32.totalorder %s26, %s29
    %p38 = scmp.eq.s32.totalorder %s21, 3
    %p39 = por %p37, %p38
    %p40 = scmp.ne.s32.totalorder %s29, %s30
    %p41 = scmp.eq.s32.totalorder %s21, 0
    %p42 = por %p40, %p41
    %p43 = scmp.ne.s32.totalorder %s29, %s30
    %p44 = scmp.eq.s32.totalorder %s22, 3
    %p45 = por %p43, %p44
    %p47 = scmp.ne.s32.totalorder %s30, %s46
    %p48 = scmp.eq.s32.totalorder %s22, 0
    %p49 = por %p47, %p48
    %s51 = sadd.s32 %s50, 1
    %p54 = scmp.eq.s32.totalorder %s16, 3
    %p55 = scmp.ne.s32.totalorder %s50, %s52
    %p56 = scmp.eq.s32.totalorder %s16, 0
    %p57 = por %p55, %p56
    %p58 = scmp.ne.s32.totalorder %s50, %s52
    %p59 = scmp.eq.s32.totalorder %s21, 3
    %p60 = por %p58, %p59
    %p61 = scmp.ne.s32.totalorder %s52, %s53
    %p62 = scmp.eq.s32.totalorder %s21, 0
    %p63 = por %p61, %p62
    %p64 = scmp.ne.s32.totalorder %s52, %s53
    %p65 = scmp.eq.s32.totalorder %s22, 3
    %p66 = por %p64, %p65
    %p68 = scmp.ne.s32.totalorder %s53, %s67
    %p69 = scmp.eq.s32.totalorder %s22, 0
    %p70 = por %p68, %p69
    %s72 = sadd.s32 %s71, 1
    %p75 = scmp.eq.s32.totalorder %s16, 3
    %p76 = scmp.ne.s32.totalorder %s71, %s73
    %p77 = scmp.eq.s32.totalorder %s16, 0
    %p78 = por %p76, %p77
    %p79 = scmp.ne.s32.totalorder %s71, %s73
    %p80 = scmp.eq.s32.totalorder %s21, 3
    %p81 = por %p79, %p80
    %p82 = scmp.ne.s32.totalorder %s73, %s74
    %p83 = scmp.eq.s32.totalorder %s21, 0
    %p84 = por %p82, %p83
    %p85 = scmp.ne.s32.totalorder %s73, %s74
    %p86 = scmp.eq.s32.totalorder %s22, 3
    %p87 = por %p85, %p86
    %p89 = scmp.ne.s32.totalorder %s74, %s88
    %p90 = scmp.eq.s32.totalorder %s22, 0
    %p91 = por %p89, %p90
    %s92 = ssub.s32 %s16, %s23
    %p93 = scmp.eq.s32.totalorder %s92, 0
    %s95 = sadd.s32 %s94, 1
    %s96 = scalar_select %p93, %s94, %s95
    %p99 = pneg %p93
    %p100 = scmp.eq.s32.totalorder %s16, 3
    %p101 = por %p99, %p100
    %p102 = scmp.ne.s32.totalorder %s94, %s97
    %p103 = scmp.eq.s32.totalorder %s16, 0
    %p104 = por %p102, %p103
    %p105 = scmp.ne.s32.totalorder %s94, %s97
    %p106 = scmp.eq.s32.totalorder %s21, 3
    %p107 = por %p105, %p106
    %p108 = scmp.ne.s32.totalorder %s97, %s98
    %p109 = scmp.eq.s32.totalorder %s21, 0
    %p110 = por %p108, %p109
    %p111 = scmp.ne.s32.totalorder %s97, %s98
    %p112 = scmp.eq.s32.totalorder %s22, 3
    %p113 = por %p111, %p112
    %p115 = scmp.ne.s32.totalorder %s98, %s114
    %p116 = scmp.eq.s32.totalorder %s22, 0
    %p117 = por %p115, %p116
    %s119 = sadd.s32 %s118, 1
    %p122 = scmp.eq.s32.totalorder %s16, 3
    %p123 = scmp.ne.s32.totalorder %s118, %s120
    %p124 = scmp.eq.s32.totalorder %s16, 0
    %p125 = por %p123, %p124
    %p126 = scmp.ne.s32.totalorder %s118, %s120
    %p127 = scmp.eq.s32.totalorder %s21, 3
    %p128 = por %p126, %p127
    %p129 = scmp.ne.s32.totalorder %s120, %s121
    %p130 = scmp.eq.s32.totalorder %s21, 0
    %p131 = por %p129, %p130
    %p132 = scmp.ne.s32.totalorder %s120, %s121
    %p133 = scmp.eq.s32.totalorder %s22, 3
    %p134 = por %p132, %p133
    %p136 = scmp.ne.s32.totalorder %s121, %s135
    %p137 = scmp.eq.s32.totalorder %s22, 0
    %p138 = por %p136, %p137
    %s140 = sadd.s32 %s139, 1
    %p143 = scmp.eq.s32.totalorder %s16, 3
    %p144 = scmp.ne.s32.totalorder %s139, %s141
    %p145 = scmp.eq.s32.totalorder %s16, 0
    %p146 = por %p144, %p145
    %p147 = scmp.ne.s32.totalorder %s139, %s141
    %p148 = scmp.eq.s32.totalorder %s21, 3
    %p149 = por %p147, %p148
    %p150 = scmp.ne.s32.totalorder %s141, %s142
    %p151 = scmp.eq.s32.totalorder %s21, 0
    %p152 = por %p150, %p151
    %p153 = scmp.ne.s32.totalorder %s141, %s142
    %p154 = scmp.eq.s32.totalorder %s22, 3
    %p155 = por %p153, %p154
    %p157 = scmp.ne.s32.totalorder %s142, %s156
    %p158 = scmp.eq.s32.totalorder %s22, 0
    %p159 = por %p157, %p158
    %s161 = sadd.s32 %s160, 1
    %p164 = scmp.eq.s32.totalorder %s16, 3
    %p165 = scmp.ne.s32.totalorder %s160, %s162
    %p166 = scmp.eq.s32.totalorder %s16, 0
    %p167 = por %p165, %p166
    %p168 = scmp.ne.s32.totalorder %s160, %s162
    %p169 = scmp.eq.s32.totalorder %s21, 3
    %p170 = por %p168, %p169
    %p171 = scmp.ne.s32.totalorder %s162, %s163
    %p172 = scmp.eq.s32.totalorder %s21, 0
    %p173 = por %p171, %p172
    %p174 = scmp.ne.s32.totalorder %s162, %s163
    %p175 = scmp.eq.s32.totalorder %s22, 3
    %p176 = por %p174, %p175
    %p178 = scmp.ne.s32.totalorder %s163, %s177
    %p179 = scmp.eq.s32.totalorder %s22, 0
    %p180 = por %p178, %p179
    %s182 = sadd.s32 %s181, 1
    %p185 = scmp.eq.s32.totalorder %s16, 3
    %p186 = scmp.ne.s32.totalorder %s181, %s183
    %p187 = scmp.eq.s32.totalorder %s16, 0
    %p188 = por %p186, %p187
    %p189 = scmp.ne.s32.totalorder %s181, %s183
    %p190 = scmp.eq.s32.totalorder %s21, 3
    %p191 = por %p189, %p190
    %p192 = scmp.ne.s32.totalorder %s183, %s184
    %p193 = scmp.eq.s32.totalorder %s21, 0
    %p194 = por %p192, %p193
    %p195 = scmp.ne.s32.totalorder %s183, %s184
    %p196 = scmp.eq.s32.totalorder %s22, 3
    %p197 = por %p195, %p196
    %p199 = scmp.ne.s32.totalorder %s184, %s198
    %p200 = scmp.eq.s32.totalorder %s22, 0
    %p201 = por %p199, %p200
    %s203 = sadd.s32 %s202, 1
    %p206 = scmp.eq.s32.totalorder %s16, 3
    %p207 = scmp.ne.s32.totalorder %s202, %s204
    %p208 = scmp.eq.s32.totalorder %s16, 0
    %p209 = por %p207, %p208
    %p210 = scmp.ne.s32.totalorder %s202, %s204
    %p211 = scmp.eq.s32.totalorder %s21, 3
    %p212 = por %p210, %p211
    %p213 = scmp.ne.s32.totalorder %s204, %s205
    %p214 = scmp.eq.s32.totalorder %s21, 0
    %p215 = por %p213, %p214
    %p216 = scmp.ne.s32.totalorder %s204, %s205
    %p217 = scmp.eq.s32.totalorder %s22, 3
    %p218 = por %p216, %p217
    %p220 = scmp.ne.s32.totalorder %s205, %s219
    %p221 = scmp.eq.s32.totalorder %s22, 0
    %p222 = por %p220, %p221
    %s224 = sadd.s32 %s223, 1
    %p227 = scmp.eq.s32.totalorder %s16, 3
    %p228 = scmp.ne.s32.totalorder %s223, %s225
    %p229 = scmp.eq.s32.totalorder %s16, 0
    %p230 = por %p228, %p229
    %p231 = scmp.ne.s32.totalorder %s223, %s225
    %p232 = scmp.eq.s32.totalorder %s21, 3
    %p233 = por %p231, %p232
    %p234 = scmp.ne.s32.totalorder %s225, %s226
    %p235 = scmp.eq.s32.totalorder %s21, 0
    %p236 = por %p234, %p235
    %p237 = scmp.ne.s32.totalorder %s225, %s226
    %p238 = scmp.eq.s32.totalorder %s22, 3
    %p239 = por %p237, %p238
    %p241 = scmp.ne.s32.totalorder %s226, %s240
    %p242 = scmp.eq.s32.totalorder %s22, 0
    %p243 = por %p241, %p242
    %p244 = scmp.le.s32.totalorder 1, %s16
    %p245 = scmp.lt.s32.totalorder %s16, 5
    %p246 = pnand %p244, %p245
    %p247 = pneg %p246
    // Predicated region
    $region9: #{_bpr_forward_device.1} parent=5 // pred_check
      _
    $region10: #{_bpr_forward_device.1} parent=5 // pred_check_branch
      %249 = sbr.rel (%p246) target = $region12
    $region11: #{_bpr_forward_device.1} parent=5 // pred_region
      %s250 = ssub.s32 %s16, 1
      // Predicated region
      $region13: #{_bpr_forward_device.1} parent=11 // pred_check
        %p251 = pneg %p63
      $region14: #{_bpr_forward_device.1} parent=11 // pred_check_branch
        %253 = sbr.rel (%p251) target = $region16
      $region15: #{_bpr_forward_device.1} parent=11 // pred_region
        _
      $region16: #{_bpr_forward_device.1} parent=11 // pred_fallthru
        _
      // Predicated region
      $region17: #{_bpr_forward_device.1} parent=11 // pred_check
        %p254 = pneg %p84
      $region18: #{_bpr_forward_device.1} parent=11 // pred_check_branch
        %256 = sbr.rel (%p254) target = $region20
      $region19: #{_bpr_forward_device.1} parent=11 // pred_region
        _
      $region20: #{_bpr_forward_device.1} parent=11 // pred_fallthru
        _
      // Predicated region
      $region21: #{_bpr_forward_device.1} parent=11 // pred_check
        %p257 = pneg %p131
      $region22: #{_bpr_forward_device.1} parent=11 // pred_check_branch
        %259 = sbr.rel (%p257) target = $region24
      $region23: #{_bpr_forward_device.1} parent=11 // pred_region
        _
      $region24: #{_bpr_forward_device.1} parent=11 // pred_fallthru
        _
      // Predicated region
      $region25: #{_bpr_forward_device.1} parent=11 // pred_check
        %p260 = pneg %p152
      $region26: #{_bpr_forward_device.1} parent=11 // pred_check_branch
        %262 = sbr.rel (%p260) target = $region28
      $region27: #{_bpr_forward_device.1} parent=11 // pred_region
        _
      $region28: #{_bpr_forward_device.1} parent=11 // pred_fallthru
        _
      // Predicated region
      $region29: #{_bpr_forward_device.1} parent=11 // pred_check
        %p263 = pneg %p173
      $region30: #{_bpr_forward_device.1} parent=11 // pred_check_branch
        %265 = sbr.rel (%p263) target = $region32
      $region31: #{_bpr_forward_device.1} parent=11 // pred_region
        _
      $region32: #{_bpr_forward_device.1} parent=11 // pred_fallthru
        _
    $region12: #{_bpr_forward_device.1} parent=5 // pred_fallthru
      _
    %p266 = scmp.lt.s32.totalorder %s16, 4
    // Predicated region
    $region33: #{_bpr_forward_device.1} parent=5 // pred_check
      %p267 = pneg %p266
    $region34: #{_bpr_forward_device.1} parent=5 // pred_check_branch
      %269 = sbr.rel (%p267) target = $region36
    $region35: #{_bpr_forward_device.1} parent=5 // pred_region
      // Predicated region
      $region37: #{_bpr_forward_device.1} parent=35 // pred_check
        %p270 = pneg %p36
      $region38: #{_bpr_forward_device.1} parent=35 // pred_check_branch
        %272 = sbr.rel (%p270) target = $region40
      $region39: #{_bpr_forward_device.1} parent=35 // pred_region
        %p273 = scmp.lt.s32.totalorder %s16, 3
        %s274 = scalar_select %p273, %s16, 3
        %s275 = smul.addr %s274, 32
        %s276 = smul.addr %s275, 4
        %s277 = scalar_lea.vmem %s0, %s276
      $region40: #{_bpr_forward_device.1} parent=35 // pred_fallthru
        _
      // Predicated region
      $region41: #{_bpr_forward_device.1} parent=35 // pred_check
        %p278 = pneg %p104
      $region42: #{_bpr_forward_device.1} parent=35 // pred_check_branch
        %280 = sbr.rel (%p278) target = $region44
      $region43: #{_bpr_forward_device.1} parent=35 // pred_region
        %p281 = scmp.lt.s32.totalorder %s16, 3
        %s282 = scalar_select %p281, %s16, 3
        %s283 = scalar_lea.vmem %s3, %s282
      $region44: #{_bpr_forward_device.1} parent=35 // pred_fallthru
        _
    $region36: #{_bpr_forward_device.1} parent=5 // pred_fallthru
      _
    %p284 = scmp.le.s32.totalorder 1, %s16
    %p285 = scmp.lt.s32.totalorder %s16, 5
    %p286 = pnand %p284, %p285
    %p287 = pneg %p286
    // Predicated region
    $region45: #{_bpr_forward_device.1} parent=5 // pred_check
      _
    $region46: #{_bpr_forward_device.1} parent=5 // pred_check_branch
      %289 = sbr.rel (%p286) target = $region48
    $region47: #{_bpr_forward_device.1} parent=5 // pred_region
      %s290 = ssub.s32 %s16, 1
      %p291 = scmp.lt.s32.totalorder %s21, 3
      %s292 = scalar_select %p291, %s21, 3
      %s293 = smul.addr %s292, 32
      %s294 = smul.addr %s293, 4
      %s295 = scalar_lea.vmem %s0, %s294
      %p296 = pneg %p42
      %p297 = pneg %p39
      %p298 = pneg %p63
      %p299 = pneg %p60
      %p300 = pneg %p84
      %p301 = pneg %p81
      %p302 = scmp.lt.s32.totalorder %s21, 3
      %s303 = scalar_select %p302, %s21, 3
      %s304 = scalar_lea.vmem %s3, %s303
      %p305 = pneg %p110
      %p306 = pneg %p107
      %p307 = pneg %p131
      %p308 = pneg %p128
      %p309 = pneg %p152
      %p310 = pneg %p149
      %p311 = pneg %p173
      %p312 = pneg %p170
      %p313 = pneg %p194
      %p314 = pneg %p191
      %p315 = pneg %p215
      %p316 = pneg %p212
      %p317 = pneg %p236
      %p318 = pneg %p233
      %p319 = scmp.lt.s32.totalorder %s21, 3
      %s320 = scalar_select %p319, %s21, 3
      %s321 = smul.addr %s320, 32
      %s322 = smul.addr %s321, 4
      %s323 = scalar_lea.vmem %s0, %s322
      %p324 = scmp.lt.s32.totalorder %s21, 3
      %s325 = scalar_select %p324, %s21, 3
      %s326 = scalar_lea.vmem %s3, %s325
      %v328 = vld [vmem:[%s323] sm:$0xff]
      %v329 = vld [vmem:[%s323 + $0x8] sm:$0xff]
      %v330 = vld [vmem:[%s323 + $0x10] sm:$0xff]
      %v331 = vld [vmem:[%s323 + $0x18] sm:$0xff]
      %v332 = vld [vmem:[%s323 + $0x20] sm:$0xff]
      %v333 = vld [vmem:[%s323 + $0x28] sm:$0xff]
      %v334 = vld [vmem:[%s323 + $0x30] sm:$0xff]
      %v335 = vld [vmem:[%s323 + $0x38] sm:$0xff]
      %v336 = vld [vmem:[%s323 + $0x40] sm:$0xff]
      %v337 = vld [vmem:[%s323 + $0x48] sm:$0xff]
      %v338 = vld [vmem:[%s323 + $0x50] sm:$0xff]
      %v339 = vld [vmem:[%s323 + $0x58] sm:$0xff]
      %v340 = vld [vmem:[%s323 + $0x60] sm:$0xff]
      %v341 = vld [vmem:[%s323 + $0x68] sm:$0xff]
      %v342 = vld [vmem:[%s323 + $0x70] sm:$0xff]
      %v343 = vld [vmem:[%s323 + $0x78] sm:$0xff]
      %v360 = vunpack.c.l.b16 %v328
      %v361 = vunpack.c.h.b16 %v328
      %v362 = vunpack.c.l.b16 %v329
      %v363 = vunpack.c.h.b16 %v329
      %v364 = vunpack.c.l.b16 %v330
      %v365 = vunpack.c.h.b16 %v330
      %v366 = vunpack.c.l.b16 %v331
      %v367 = vunpack.c.h.b16 %v331
      %v368 = vunpack.c.l.b16 %v332
      %v369 = vunpack.c.h.b16 %v332
      %v370 = vunpack.c.l.b16 %v333
      %v371 = vunpack.c.h.b16 %v333
      %v372 = vunpack.c.l.b16 %v334
      %v373 = vunpack.c.h.b16 %v334
      %v374 = vunpack.c.l.b16 %v335
      %v375 = vunpack.c.h.b16 %v335
      %v376 = vunpack.c.l.b16 %v336
      %v377 = vunpack.c.h.b16 %v336
      %v378 = vunpack.c.l.b16 %v337
      %v379 = vunpack.c.h.b16 %v337
      %v380 = vunpack.c.l.b16 %v338
      %v381 = vunpack.c.h.b16 %v338
      %v382 = vunpack.c.l.b16 %v339
      %v383 = vunpack.c.h.b16 %v339
      %v384 = vunpack.c.l.b16 %v340
      %v385 = vunpack.c.h.b16 %v340
      %v386 = vunpack.c.l.b16 %v341
      %v387 = vunpack.c.h.b16 %v341
      %v388 = vunpack.c.l.b16 %v342
      %v389 = vunpack.c.h.b16 %v342
      %v390 = vunpack.c.l.b16 %v343
      %v391 = vunpack.c.h.b16 %v343
      %v392 = vpack.c.b16 %v362, %v360
      %v393 = vpack.c.b16 %v363, %v361
      %v394 = vpack.c.b16 %v366, %v364
      %v395 = vpack.c.b16 %v367, %v365
      %v396 = vpack.c.b16 %v370, %v368
      %v397 = vpack.c.b16 %v371, %v369
      %v398 = vpack.c.b16 %v374, %v372
      %v399 = vpack.c.b16 %v375, %v373
      %v400 = vpack.c.b16 %v378, %v376
      %v401 = vpack.c.b16 %v379, %v377
      %v402 = vpack.c.b16 %v382, %v380
      %v403 = vpack.c.b16 %v383, %v381
      %v404 = vpack.c.b16 %v386, %v384
      %v405 = vpack.c.b16 %v387, %v385
      %v406 = vpack.c.b16 %v390, %v388
      %v407 = vpack.c.b16 %v391, %v389
      %424 = vxpose.xlu0.c.b16.start [1/8] %v392, 128
      %425 = vxpose.xlu0.c.b16.cont [2/8] %v394, 128
      %426 = vxpose.xlu0.c.b16.cont [3/8] %v396, 128
      %427 = vxpose.xlu0.c.b16.cont [4/8] %v398, 128
      %428 = vxpose.xlu0.c.b16.cont [5/8] %v400, 128
      %429 = vxpose.xlu0.c.b16.cont [6/8] %v402, 128
      %430 = vxpose.xlu0.c.b16.cont [7/8] %v404, 128
      %431 = vxpose.xlu0.c.b16.end [8/8] %v406, 128
      %v432 = vpop.trf.xlu0
      %v433 = vpop.trf.xlu0
      %v434 = vpop.trf.xlu0
      %v435 = vpop.trf.xlu0
      %v436 = vpop.trf.xlu0
      %v437 = vpop.trf.xlu0
      %v438 = vpop.trf.xlu0
      %v439 = vpop.trf.xlu0
      %440 = vxpose.xlu0.c.b16.start [1/8] %v393, 128
      %441 = vxpose.xlu0.c.b16.cont [2/8] %v395, 128
      %442 = vxpose.xlu0.c.b16.cont [3/8] %v397, 128
      %443 = vxpose.xlu0.c.b16.cont [4/8] %v399, 128
      %444 = vxpose.xlu0.c.b16.cont [5/8] %v401, 128
      %445 = vxpose.xlu0.c.b16.cont [6/8] %v403, 128
      %446 = vxpose.xlu0.c.b16.cont [7/8] %v405, 128
      %447 = vxpose.xlu0.c.b16.end [8/8] %v407, 128
      %v448 = vpop.trf.xlu0
      %v449 = vpop.trf.xlu0
      %v450 = vpop.trf.xlu0
      %v451 = vpop.trf.xlu0
      %v452 = vpop.trf.xlu0
      %v453 = vpop.trf.xlu0
      %v454 = vpop.trf.xlu0
      %v455 = vpop.trf.xlu0
      %v456 = vld [vmem:[%s326] sm:$0x1]
      %v457 = vld [vmem:[%s2] sm:$0xff]
      %v458 = vld [vmem:[%s2 + $0x8] sm:$0xff]
      %v459 = vld [vmem:[%s2 + $0x10] sm:$0xff]
      %v460 = vld [vmem:[%s2 + $0x18] sm:$0xff]
      %v461 = vld [vmem:[%s2 + $0x20] sm:$0xff]
      %v462 = vld [vmem:[%s2 + $0x28] sm:$0xff]
      %v463 = vld [vmem:[%s2 + $0x30] sm:$0xff]
      %v464 = vld [vmem:[%s2 + $0x38] sm:$0xff]
      %v465 = vld [vmem:[%s2 + $0x40] sm:$0xff]
      %v466 = vld [vmem:[%s2 + $0x48] sm:$0xff]
      %v467 = vld [vmem:[%s2 + $0x50] sm:$0xff]
      %v468 = vld [vmem:[%s2 + $0x58] sm:$0xff]
      %v469 = vld [vmem:[%s2 + $0x60] sm:$0xff]
      %v470 = vld [vmem:[%s2 + $0x68] sm:$0xff]
      %v471 = vld [vmem:[%s2 + $0x70] sm:$0xff]
      %v472 = vld [vmem:[%s2 + $0x78] sm:$0xff]
      %v473 = vld [vmem:[%s2 + $0x80] sm:$0xff]
      %v474 = vld [vmem:[%s2 + $0x88] sm:$0xff]
      %v475 = vld [vmem:[%s2 + $0x90] sm:$0xff]
      %v476 = vld [vmem:[%s2 + $0x98] sm:$0xff]
      %v477 = vld [vmem:[%s2 + $0xa0] sm:$0xff]
      %v478 = vld [vmem:[%s2 + $0xa8] sm:$0xff]
      %v479 = vld [vmem:[%s2 + $0xb0] sm:$0xff]
      %v480 = vld [vmem:[%s2 + $0xb8] sm:$0xff]
      %v481 = vld [vmem:[%s2 + $0xc0] sm:$0xff]
      %v482 = vld [vmem:[%s2 + $0xc8] sm:$0xff]
      %v483 = vld [vmem:[%s2 + $0xd0] sm:$0xff]
      %v484 = vld [vmem:[%s2 + $0xd8] sm:$0xff]
      %v485 = vld [vmem:[%s2 + $0xe0] sm:$0xff]
      %v486 = vld [vmem:[%s2 + $0xe8] sm:$0xff]
      %v487 = vld [vmem:[%s2 + $0xf0] sm:$0xff]
      %v488 = vld [vmem:[%s2 + $0xf8] sm:$0xff]
      %v490 = vlaneseq
      %v491 = vshrl.u32 %v490, 7
      %v492 = vsub.s32 0, %v491
      %v493 = vrot.slane %v456, %v492
      %v495 = vmul.f32 %v457, %v493
      %v496 = vmul.f32 %v458, %v493
      %v497 = vmul.f32 %v459, %v493
      %v498 = vmul.f32 %v460, %v493
      %v499 = vmul.f32 %v461, %v493
      %v500 = vmul.f32 %v462, %v493
      %v501 = vmul.f32 %v463, %v493
      %v502 = vmul.f32 %v464, %v493
      %v503 = vmul.f32 %v465, %v493
      %v504 = vmul.f32 %v466, %v493
      %v505 = vmul.f32 %v467, %v493
      %v506 = vmul.f32 %v468, %v493
      %v507 = vmul.f32 %v469, %v493
      %v508 = vmul.f32 %v470, %v493
      %v509 = vmul.f32 %v471, %v493
      %v510 = vmul.f32 %v472, %v493
      %v511 = vmul.f32 %v473, %v493
      %v512 = vmul.f32 %v474, %v493
      %v513 = vmul.f32 %v475, %v493
      %v514 = vmul.f32 %v476, %v493
      %v515 = vmul.f32 %v477, %v493
      %v516 = vmul.f32 %v478, %v493
      %v517 = vmul.f32 %v479, %v493
      %v518 = vmul.f32 %v480, %v493
      %v519 = vmul.f32 %v481, %v493
      %v520 = vmul.f32 %v482, %v493
      %v521 = vmul.f32 %v483, %v493
      %v522 = vmul.f32 %v484, %v493
      %v523 = vmul.f32 %v485, %v493
      %v524 = vmul.f32 %v486, %v493
      %v525 = vmul.f32 %v487, %v493
      %v526 = vmul.f32 %v488, %v493
      %v527 = vpack.c.bf16 %v496, %v495
      %v528 = vpack.c.bf16 %v498, %v497
      %v529 = vpack.c.bf16 %v500, %v499
      %v530 = vpack.c.bf16 %v502, %v501
      %v531 = vpack.c.bf16 %v504, %v503
      %v532 = vpack.c.bf16 %v506, %v505
      %v533 = vpack.c.bf16 %v508, %v507
      %v534 = vpack.c.bf16 %v510, %v509
      %v535 = vpack.c.bf16 %v512, %v511
      %v536 = vpack.c.bf16 %v514, %v513
      %v537 = vpack.c.bf16 %v516, %v515
      %v538 = vpack.c.bf16 %v518, %v517
      %v539 = vpack.c.bf16 %v520, %v519
      %v540 = vpack.c.bf16 %v522, %v521
      %v541 = vpack.c.bf16 %v524, %v523
      %v542 = vpack.c.bf16 %v526, %v525
      %543 = vmatprep.subr.bf16.mxu0 0
      %544 = vmatpush1.bf16.msra.mxu0 %v534
      %545 = vmatprep.subr.bf16.mxu0 0
      %546 = vmatpush1.bf16.msra.mxu0 %v533
      %547 = vmatprep.subr.bf16.mxu0 0
      %548 = vmatpush1.bf16.msra.mxu0 %v532
      %549 = vmatprep.subr.bf16.mxu0 0
      %550 = vmatpush1.bf16.msra.mxu0 %v531
      %551 = vmatprep.subr.bf16.mxu0 0
      %552 = vmatpush1.bf16.msra.mxu0 %v530
      %553 = vmatprep.subr.bf16.mxu0 0
      %554 = vmatpush1.bf16.msra.mxu0 %v529
      %555 = vmatprep.subr.bf16.mxu0 0
      %556 = vmatpush1.bf16.msra.mxu0 %v528
      %557 = vmatprep.subr.bf16.mxu0 0
      %558 = vmatpush1.bf16.msra.mxu0 %v527
      %559 = vmatprep.subr.bf16.mxu0 0
      %560 = vmatpush2.bf16.msra.mxu0 %v542
      %561 = vmatprep.subr.bf16.mxu0 0
      %562 = vmatpush2.bf16.msra.mxu0 %v541
      %563 = vmatprep.subr.bf16.mxu0 0
      %564 = vmatpush2.bf16.msra.mxu0 %v540
      %565 = vmatprep.subr.bf16.mxu0 0
      %566 = vmatpush2.bf16.msra.mxu0 %v539
      %567 = vmatprep.subr.bf16.mxu0 0
      %568 = vmatpush2.bf16.msra.mxu0 %v538
      %569 = vmatprep.subr.bf16.mxu0 0
      %570 = vmatpush2.bf16.msra.mxu0 %v537
      %571 = vmatprep.subr.bf16.mxu0 0
      %572 = vmatpush2.bf16.msra.mxu0 %v536
      %573 = vmatprep.subr.bf16.mxu0 0
      %574 = vmatpush2.bf16.msra.mxu0 %v535
      %575 = vmatprep.mubr.bf16.mxu0 %v393
      %576 = vmatmul.mubr.bf16.gmra.mxu0 %v392
      %v577 = vpop.f32.mrf.mxu0
      %v578 = vadd.f32 0.0, %v577
      %v579 = vpop.f32.mrf.mxu0
      %v580 = vpop.f32.mrf.mxu0
      %v581 = vadd.f32 0.0, %v580
      %v582 = vpop.f32.mrf.mxu0
      %583 = vmatprep.mubr.bf16.mxu0 %v395
      %584 = vmatmul.mubr.bf16.gmra.mxu0 %v394
      %v585 = vpop.f32.mrf.mxu0
      %v586 = vadd.f32 0.0, %v585
      %v587 = vpop.f32.mrf.mxu0
      %v588 = vpop.f32.mrf.mxu0
      %v589 = vadd.f32 0.0, %v588
      %v590 = vpop.f32.mrf.mxu0
      %591 = vmatprep.mubr.bf16.mxu0 %v397
      %592 = vmatmul.mubr.bf16.gmra.mxu0 %v396
      %v593 = vpop.f32.mrf.mxu0
      %v594 = vadd.f32 0.0, %v593
      %v595 = vpop.f32.mrf.mxu0
      %v596 = vpop.f32.mrf.mxu0
      %v597 = vadd.f32 0.0, %v596
      %v598 = vpop.f32.mrf.mxu0
      %599 = vmatprep.mubr.bf16.mxu0 %v399
      %600 = vmatmul.mubr.bf16.gmra.mxu0 %v398
      %v601 = vpop.f32.mrf.mxu0
      %v602 = vadd.f32 0.0, %v601
      %v603 = vpop.f32.mrf.mxu0
      %v604 = vpop.f32.mrf.mxu0
      %v605 = vadd.f32 0.0, %v604
      %v606 = vpop.f32.mrf.mxu0
      %607 = vmatprep.mubr.bf16.mxu0 %v401
      %608 = vmatmul.mubr.bf16.gmra.mxu0 %v400
      %v609 = vpop.f32.mrf.mxu0
      %v610 = vadd.f32 0.0, %v609
      %v611 = vpop.f32.mrf.mxu0
      %v612 = vpop.f32.mrf.mxu0
      %v613 = vadd.f32 0.0, %v612
      %v614 = vpop.f32.mrf.mxu0
      %615 = vmatprep.mubr.bf16.mxu0 %v403
      %616 = vmatmul.mubr.bf16.gmra.mxu0 %v402
      %v617 = vpop.f32.mrf.mxu0
      %v618 = vadd.f32 0.0, %v617
      %v619 = vpop.f32.mrf.mxu0
      %v620 = vpop.f32.mrf.mxu0
      %v621 = vadd.f32 0.0, %v620
      %v622 = vpop.f32.mrf.mxu0
      %623 = vmatprep.mubr.bf16.mxu0 %v405
      %624 = vmatmul.mubr.bf16.gmra.mxu0 %v404
      %v625 = vpop.f32.mrf.mxu0
      %v626 = vadd.f32 0.0, %v625
      %v627 = vpop.f32.mrf.mxu0
      %v628 = vpop.f32.mrf.mxu0
      %v629 = vadd.f32 0.0, %v628
      %v630 = vpop.f32.mrf.mxu0
      %631 = vmatprep.mubr.bf16.mxu0 %v407
      %632 = vmatmul.mubr.bf16.gmra.mxu0 %v406
      %v633 = vpop.f32.mrf.mxu0
      %v634 = vadd.f32 0.0, %v633
      %v635 = vpop.f32.mrf.mxu0
      %v636 = vpop.f32.mrf.mxu0
      %v637 = vadd.f32 0.0, %v636
      %v638 = vpop.f32.mrf.mxu0
      %639 = vdwg.mxu0
      %v640 = vld [vmem:[%s1] sm:$0xff]
      %v641 = vld [vmem:[%s1 + $0x8] sm:$0xff]
      %v642 = vld [vmem:[%s1 + $0x10] sm:$0xff]
      %v643 = vld [vmem:[%s1 + $0x18] sm:$0xff]
      %v644 = vld [vmem:[%s1 + $0x20] sm:$0xff]
      %v645 = vld [vmem:[%s1 + $0x28] sm:$0xff]
      %v646 = vld [vmem:[%s1 + $0x30] sm:$0xff]
      %v647 = vld [vmem:[%s1 + $0x38] sm:$0xff]
      %v648 = vld [vmem:[%s1 + $0x40] sm:$0xff]
      %v649 = vld [vmem:[%s1 + $0x48] sm:$0xff]
      %v650 = vld [vmem:[%s1 + $0x50] sm:$0xff]
      %v651 = vld [vmem:[%s1 + $0x58] sm:$0xff]
      %v652 = vld [vmem:[%s1 + $0x60] sm:$0xff]
      %v653 = vld [vmem:[%s1 + $0x68] sm:$0xff]
      %v654 = vld [vmem:[%s1 + $0x70] sm:$0xff]
      %v655 = vld [vmem:[%s1 + $0x78] sm:$0xff]
      %v656 = vmul.f32 %v640, %v493
      %v657 = vmul.f32 %v641, %v493
      %v658 = vmul.f32 %v642, %v493
      %v659 = vmul.f32 %v643, %v493
      %v660 = vmul.f32 %v644, %v493
      %v661 = vmul.f32 %v645, %v493
      %v662 = vmul.f32 %v646, %v493
      %v663 = vmul.f32 %v647, %v493
      %v664 = vmul.f32 %v648, %v493
      %v665 = vmul.f32 %v649, %v493
      %v666 = vmul.f32 %v650, %v493
      %v667 = vmul.f32 %v651, %v493
      %v668 = vmul.f32 %v652, %v493
      %v669 = vmul.f32 %v653, %v493
      %v670 = vmul.f32 %v654, %v493
      %v671 = vmul.f32 %v655, %v493
      %v672 = vpack.c.bf16 %v657, %v656
      %v673 = vpack.c.bf16 %v659, %v658
      %v674 = vpack.c.bf16 %v661, %v660
      %v675 = vpack.c.bf16 %v663, %v662
      %v676 = vpack.c.bf16 %v665, %v664
      %v677 = vpack.c.bf16 %v667, %v666
      %v678 = vpack.c.bf16 %v669, %v668
      %v679 = vpack.c.bf16 %v671, %v670
      %680 = vmatprep.subr.bf16.mxu0 0
      %681 = vmatpush1.bf16.msra.mxu0 %v679
      %682 = vmatprep.subr.bf16.mxu0 0
      %683 = vmatpush1.bf16.msra.mxu0 %v678
      %684 = vmatprep.subr.bf16.mxu0 0
      %685 = vmatpush1.bf16.msra.mxu0 %v677
      %686 = vmatprep.subr.bf16.mxu0 0
      %687 = vmatpush1.bf16.msra.mxu0 %v676
      %688 = vmatprep.subr.bf16.mxu0 0
      %689 = vmatpush1.bf16.msra.mxu0 %v675
      %690 = vmatprep.subr.bf16.mxu0 0
      %691 = vmatpush1.bf16.msra.mxu0 %v674
      %692 = vmatprep.subr.bf16.mxu0 0
      %693 = vmatpush1.bf16.msra.mxu0 %v673
      %694 = vmatprep.subr.bf16.mxu0 0
      %695 = vmatpush1.bf16.msra.mxu0 %v672
      %696 = vmatprep.subr.bf16.mxu0 0
      %697 = vmatpush2.bf16.msra.mxu0 0
      %698 = vmatprep.subr.bf16.mxu0 0
      %699 = vmatpush2.bf16.msra.mxu0 0
      %700 = vmatprep.subr.bf16.mxu0 0
      %701 = vmatpush2.bf16.msra.mxu0 0
      %702 = vmatprep.subr.bf16.mxu0 0
      %703 = vmatpush2.bf16.msra.mxu0 0
      %704 = vmatprep.subr.bf16.mxu0 0
      %705 = vmatpush2.bf16.msra.mxu0 0
      %706 = vmatprep.subr.bf16.mxu0 0
      %707 = vmatpush2.bf16.msra.mxu0 0
      %708 = vmatprep.subr.bf16.mxu0 0
      %709 = vmatpush2.bf16.msra.mxu0 0
      %710 = vmatprep.subr.bf16.mxu0 0
      %711 = vmatpush2.bf16.msra.mxu0 0
      %712 = vmatprep.mubr.bf16.mxu0 0
      %713 = vmatmul.mubr.bf16.gmra.mxu0 %v432
      %v714 = vpop.f32.mrf.mxu0
      %v715 = vadd.f32 0.0, %v714
      %v716 = vpop.f32.mrf.mxu0
      %v717 = vpop.f32.mrf.mxu0
      %v718 = vadd.f32 0.0, %v717
      %v719 = vpop.f32.mrf.mxu0
      %720 = vmatprep.mubr.bf16.mxu0 0
      %721 = vmatmul.mubr.bf16.gmra.mxu0 %v433
      %v722 = vpop.f32.mrf.mxu0
      %v723 = vadd.f32 0.0, %v722
      %v724 = vpop.f32.mrf.mxu0
      %v725 = vpop.f32.mrf.mxu0
      %v726 = vadd.f32 0.0, %v725
      %v727 = vpop.f32.mrf.mxu0
      %728 = vmatprep.mubr.bf16.mxu0 0
      %729 = vmatmul.mubr.bf16.gmra.mxu0 %v434
      %v730 = vpop.f32.mrf.mxu0
      %v731 = vadd.f32 0.0, %v730
      %v732 = vpop.f32.mrf.mxu0
      %v733 = vpop.f32.mrf.mxu0
      %v734 = vadd.f32 0.0, %v733
      %v735 = vpop.f32.mrf.mxu0
      %736 = vmatprep.mubr.bf16.mxu0 0
      %737 = vmatmul.mubr.bf16.gmra.mxu0 %v435
      %v738 = vpop.f32.mrf.mxu0
      %v739 = vadd.f32 0.0, %v738
      %v740 = vpop.f32.mrf.mxu0
      %v741 = vpop.f32.mrf.mxu0
      %v742 = vadd.f32 0.0, %v741
      %v743 = vpop.f32.mrf.mxu0
      %744 = vmatprep.mubr.bf16.mxu0 0
      %745 = vmatmul.mubr.bf16.gmra.mxu0 %v436
      %v746 = vpop.f32.mrf.mxu0
      %v747 = vadd.f32 0.0, %v746
      %v748 = vpop.f32.mrf.mxu0
      %v749 = vpop.f32.mrf.mxu0
      %v750 = vadd.f32 0.0, %v749
      %v751 = vpop.f32.mrf.mxu0
      %752 = vmatprep.mubr.bf16.mxu0 0
      %753 = vmatmul.mubr.bf16.gmra.mxu0 %v437
      %v754 = vpop.f32.mrf.mxu0
      %v755 = vadd.f32 0.0, %v754
      %v756 = vpop.f32.mrf.mxu0
      %v757 = vpop.f32.mrf.mxu0
      %v758 = vadd.f32 0.0, %v757
      %v759 = vpop.f32.mrf.mxu0
      %760 = vmatprep.mubr.bf16.mxu0 0
      %761 = vmatmul.mubr.bf16.gmra.mxu0 %v438
      %v762 = vpop.f32.mrf.mxu0
      %v763 = vadd.f32 0.0, %v762
      %v764 = vpop.f32.mrf.mxu0
      %v765 = vpop.f32.mrf.mxu0
      %v766 = vadd.f32 0.0, %v765
      %v767 = vpop.f32.mrf.mxu0
      %768 = vmatprep.mubr.bf16.mxu0 0
      %769 = vmatmul.mubr.bf16.gmra.mxu0 %v439
      %v770 = vpop.f32.mrf.mxu0
      %v771 = vadd.f32 0.0, %v770
      %v772 = vpop.f32.mrf.mxu0
      %v773 = vpop.f32.mrf.mxu0
      %v774 = vadd.f32 0.0, %v773
      %v775 = vpop.f32.mrf.mxu0
      %776 = vmatprep.mubr.bf16.mxu0 0
      %777 = vmatmul.mubr.bf16.gmra.mxu0 %v448
      %v778 = vpop.f32.mrf.mxu0
      %v779 = vadd.f32 0.0, %v778
      %v780 = vpop.f32.mrf.mxu0
      %v781 = vpop.f32.mrf.mxu0
      %v782 = vadd.f32 0.0, %v781
      %v783 = vpop.f32.mrf.mxu0
      %784 = vmatprep.mubr.bf16.mxu0 0
      %785 = vmatmul.mubr.bf16.gmra.mxu0 %v449
      %v786 = vpop.f32.mrf.mxu0
      %v787 = vadd.f32 0.0, %v786
      %v788 = vpop.f32.mrf.mxu0
      %v789 = vpop.f32.mrf.mxu0
      %v790 = vadd.f32 0.0, %v789
      %v791 = vpop.f32.mrf.mxu0
      %792 = vmatprep.mubr.bf16.mxu0 0
      %793 = vmatmul.mubr.bf16.gmra.mxu0 %v450
      %v794 = vpop.f32.mrf.mxu0
      %v795 = vadd.f32 0.0, %v794
      %v796 = vpop.f32.mrf.mxu0
      %v797 = vpop.f32.mrf.mxu0
      %v798 = vadd.f32 0.0, %v797
      %v799 = vpop.f32.mrf.mxu0
      %800 = vmatprep.mubr.bf16.mxu0 0
      %801 = vmatmul.mubr.bf16.gmra.mxu0 %v451
      %v802 = vpop.f32.mrf.mxu0
      %v803 = vadd.f32 0.0, %v802
      %v804 = vpop.f32.mrf.mxu0
      %v805 = vpop.f32.mrf.mxu0
      %v806 = vadd.f32 0.0, %v805
      %v807 = vpop.f32.mrf.mxu0
      %808 = vmatprep.mubr.bf16.mxu0 0
      %809 = vmatmul.mubr.bf16.gmra.mxu0 %v452
      %v810 = vpop.f32.mrf.mxu0
      %v811 = vadd.f32 0.0, %v810
      %v812 = vpop.f32.mrf.mxu0
      %v813 = vpop.f32.mrf.mxu0
      %v814 = vadd.f32 0.0, %v813
      %v815 = vpop.f32.mrf.mxu0
      %816 = vmatprep.mubr.bf16.mxu0 0
      %817 = vmatmul.mubr.bf16.gmra.mxu0 %v453
      %v818 = vpop.f32.mrf.mxu0
      %v819 = vadd.f32 0.0, %v818
      %v820 = vpop.f32.mrf.mxu0
      %v821 = vpop.f32.mrf.mxu0
      %v822 = vadd.f32 0.0, %v821
      %v823 = vpop.f32.mrf.mxu0
      %824 = vmatprep.mubr.bf16.mxu0 0
      %825 = vmatmul.mubr.bf16.gmra.mxu0 %v454
      %v826 = vpop.f32.mrf.mxu0
      %v827 = vadd.f32 0.0, %v826
      %v828 = vpop.f32.mrf.mxu0
      %v829 = vpop.f32.mrf.mxu0
      %v830 = vadd.f32 0.0, %v829
      %v831 = vpop.f32.mrf.mxu0
      %832 = vmatprep.mubr.bf16.mxu0 0
      %833 = vmatmul.mubr.bf16.gmra.mxu0 %v455
      %v834 = vpop.f32.mrf.mxu0
      %v835 = vadd.f32 0.0, %v834
      %v836 = vpop.f32.mrf.mxu0
      %v837 = vpop.f32.mrf.mxu0
      %v838 = vadd.f32 0.0, %v837
      %v839 = vpop.f32.mrf.mxu0
      %840 = vdwg.mxu0
      %v841 = vmul.f32 %v578, 0.5
      %v842 = vmul.f32 %v581, 0.5
      %v843 = vmul.f32 %v586, 0.5
      %v844 = vmul.f32 %v589, 0.5
      %v845 = vmul.f32 %v594, 0.5
      %v846 = vmul.f32 %v597, 0.5
      %v847 = vmul.f32 %v602, 0.5
      %v848 = vmul.f32 %v605, 0.5
      %v849 = vmul.f32 %v610, 0.5
      %v850 = vmul.f32 %v613, 0.5
      %v851 = vmul.f32 %v618, 0.5
      %v852 = vmul.f32 %v621, 0.5
      %v853 = vmul.f32 %v626, 0.5
      %v854 = vmul.f32 %v629, 0.5
      %v855 = vmul.f32 %v634, 0.5
      %v856 = vmul.f32 %v637, 0.5
      %s857 = smul.u32 %s21, 128
      %s858 = scalar_lea.vmem %s9, %s857
      %vm859 = vcmask 523264
      %860 = vst.msk [vmem:[%s858] sm:$0xff] %vm859, %v841
      %861 = vst.msk [vmem:[%s858 + $0x8] sm:$0xff] %vm859, %v842
      %862 = vst.msk [vmem:[%s858 + $0x10] sm:$0xff] %vm859, %v843
      %863 = vst.msk [vmem:[%s858 + $0x18] sm:$0xff] %vm859, %v844
      %864 = vst.msk [vmem:[%s858 + $0x20] sm:$0xff] %vm859, %v845
      %865 = vst.msk [vmem:[%s858 + $0x28] sm:$0xff] %vm859, %v846
      %866 = vst.msk [vmem:[%s858 + $0x30] sm:$0xff] %vm859, %v847
      %867 = vst.msk [vmem:[%s858 + $0x38] sm:$0xff] %vm859, %v848
      %868 = vst.msk [vmem:[%s858 + $0x40] sm:$0xff] %vm859, %v849
      %869 = vst.msk [vmem:[%s858 + $0x48] sm:$0xff] %vm859, %v850
      %870 = vst.msk [vmem:[%s858 + $0x50] sm:$0xff] %vm859, %v851
      %871 = vst.msk [vmem:[%s858 + $0x58] sm:$0xff] %vm859, %v852
      %872 = vst.msk [vmem:[%s858 + $0x60] sm:$0xff] %vm859, %v853
      %873 = vst.msk [vmem:[%s858 + $0x68] sm:$0xff] %vm859, %v854
      %874 = vst.msk [vmem:[%s858 + $0x70] sm:$0xff] %vm859, %v855
      %875 = vst.msk [vmem:[%s858 + $0x78] sm:$0xff] %vm859, %v856
      %v876 = vmul.f32 %v715, 0.5
      %v877 = vmul.f32 %v718, 0.5
      %v878 = vmul.f32 %v723, 0.5
      %v879 = vmul.f32 %v726, 0.5
      %v880 = vmul.f32 %v731, 0.5
      %v881 = vmul.f32 %v734, 0.5
      %v882 = vmul.f32 %v739, 0.5
      %v883 = vmul.f32 %v742, 0.5
      %v884 = vmul.f32 %v747, 0.5
      %v885 = vmul.f32 %v750, 0.5
      %v886 = vmul.f32 %v755, 0.5
      %v887 = vmul.f32 %v758, 0.5
      %v888 = vmul.f32 %v763, 0.5
      %v889 = vmul.f32 %v766, 0.5
      %v890 = vmul.f32 %v771, 0.5
      %v891 = vmul.f32 %v774, 0.5
      %v892 = vmul.f32 %v779, 0.5
      %v893 = vmul.f32 %v782, 0.5
      %v894 = vmul.f32 %v787, 0.5
      %v895 = vmul.f32 %v790, 0.5
      %v896 = vmul.f32 %v795, 0.5
      %v897 = vmul.f32 %v798, 0.5
      %v898 = vmul.f32 %v803, 0.5
      %v899 = vmul.f32 %v806, 0.5
      %v900 = vmul.f32 %v811, 0.5
      %v901 = vmul.f32 %v814, 0.5
      %v902 = vmul.f32 %v819, 0.5
      %v903 = vmul.f32 %v822, 0.5
      %v904 = vmul.f32 %v827, 0.5
      %v905 = vmul.f32 %v830, 0.5
      %v906 = vmul.f32 %v835, 0.5
      %v907 = vmul.f32 %v838, 0.5
      %s908 = smul.u32 %s21, 256
      %s909 = scalar_lea.vmem [#allocation2], %s908
      %910 = vst.msk [vmem:[%s909] sm:$0xff] %vm859, %v876
      %911 = vst.msk [vmem:[%s909 + $0x8] sm:$0xff] %vm859, %v877
      %912 = vst.msk [vmem:[%s909 + $0x10] sm:$0xff] %vm859, %v878
      %913 = vst.msk [vmem:[%s909 + $0x18] sm:$0xff] %vm859, %v879
      %914 = vst.msk [vmem:[%s909 + $0x20] sm:$0xff] %vm859, %v880
      %915 = vst.msk [vmem:[%s909 + $0x28] sm:$0xff] %vm859, %v881
      %916 = vst.msk [vmem:[%s909 + $0x30] sm:$0xff] %vm859, %v882
      %917 = vst.msk [vmem:[%s909 + $0x38] sm:$0xff] %vm859, %v883
      %918 = vst.msk [vmem:[%s909 + $0x40] sm:$0xff] %vm859, %v884
      %919 = vst.msk [vmem:[%s909 + $0x48] sm:$0xff] %vm859, %v885
      %920 = vst.msk [vmem:[%s909 + $0x50] sm:$0xff] %vm859, %v886
      %921 = vst.msk [vmem:[%s909 + $0x58] sm:$0xff] %vm859, %v887
      %922 = vst.msk [vmem:[%s909 + $0x60] sm:$0xff] %vm859, %v888
      %923 = vst.msk [vmem:[%s909 + $0x68] sm:$0xff] %vm859, %v889
      %924 = vst.msk [vmem:[%s909 + $0x70] sm:$0xff] %vm859, %v890
      %925 = vst.msk [vmem:[%s909 + $0x78] sm:$0xff] %vm859, %v891
      %926 = vst.msk [vmem:[%s909 + $0x80] sm:$0xff] %vm859, %v892
      %927 = vst.msk [vmem:[%s909 + $0x88] sm:$0xff] %vm859, %v893
      %928 = vst.msk [vmem:[%s909 + $0x90] sm:$0xff] %vm859, %v894
      %929 = vst.msk [vmem:[%s909 + $0x98] sm:$0xff] %vm859, %v895
      %930 = vst.msk [vmem:[%s909 + $0xa0] sm:$0xff] %vm859, %v896
      %931 = vst.msk [vmem:[%s909 + $0xa8] sm:$0xff] %vm859, %v897
      %932 = vst.msk [vmem:[%s909 + $0xb0] sm:$0xff] %vm859, %v898
      %933 = vst.msk [vmem:[%s909 + $0xb8] sm:$0xff] %vm859, %v899
      %934 = vst.msk [vmem:[%s909 + $0xc0] sm:$0xff] %vm859, %v900
      %935 = vst.msk [vmem:[%s909 + $0xc8] sm:$0xff] %vm859, %v901
      %936 = vst.msk [vmem:[%s909 + $0xd0] sm:$0xff] %vm859, %v902
      %937 = vst.msk [vmem:[%s909 + $0xd8] sm:$0xff] %vm859, %v903
      %938 = vst.msk [vmem:[%s909 + $0xe0] sm:$0xff] %vm859, %v904
      %939 = vst.msk [vmem:[%s909 + $0xe8] sm:$0xff] %vm859, %v905
      %940 = vst.msk [vmem:[%s909 + $0xf0] sm:$0xff] %vm859, %v906
      %941 = vst.msk [vmem:[%s909 + $0xf8] sm:$0xff] %vm859, %v907
      %v942 = vmul.f32 %v715, %v493
      %v943 = vmul.f32 %v718, %v493
      %v944 = vmul.f32 %v723, %v493
      %v945 = vmul.f32 %v726, %v493
      %v946 = vmul.f32 %v731, %v493
      %v947 = vmul.f32 %v734, %v493
      %v948 = vmul.f32 %v739, %v493
      %v949 = vmul.f32 %v742, %v493
      %v950 = vmul.f32 %v747, %v493
      %v951 = vmul.f32 %v750, %v493
      %v952 = vmul.f32 %v755, %v493
      %v953 = vmul.f32 %v758, %v493
      %v954 = vmul.f32 %v763, %v493
      %v955 = vmul.f32 %v766, %v493
      %v956 = vmul.f32 %v771, %v493
      %v957 = vmul.f32 %v774, %v493
      %v958 = vmul.f32 %v779, %v493
      %v959 = vmul.f32 %v782, %v493
      %v960 = vmul.f32 %v787, %v493
      %v961 = vmul.f32 %v790, %v493
      %v962 = vmul.f32 %v795, %v493
      %v963 = vmul.f32 %v798, %v493
      %v964 = vmul.f32 %v803, %v493
      %v965 = vmul.f32 %v806, %v493
      %v966 = vmul.f32 %v811, %v493
      %v967 = vmul.f32 %v814, %v493
      %v968 = vmul.f32 %v819, %v493
      %v969 = vmul.f32 %v822, %v493
      %v970 = vmul.f32 %v827, %v493
      %v971 = vmul.f32 %v830, %v493
      %v972 = vmul.f32 %v835, %v493
      %v973 = vmul.f32 %v838, %v493
      %v974 = vpack.c.bf16 %v943, %v942
      %v975 = vpack.c.bf16 %v945, %v944
      %v976 = vpack.c.bf16 %v947, %v946
      %v977 = vpack.c.bf16 %v949, %v948
      %v978 = vpack.c.bf16 %v951, %v950
      %v979 = vpack.c.bf16 %v953, %v952
      %v980 = vpack.c.bf16 %v955, %v954
      %v981 = vpack.c.bf16 %v957, %v956
      %v982 = vpack.c.bf16 %v959, %v958
      %v983 = vpack.c.bf16 %v961, %v960
      %v984 = vpack.c.bf16 %v963, %v962
      %v985 = vpack.c.bf16 %v965, %v964
      %v986 = vpack.c.bf16 %v967, %v966
      %v987 = vpack.c.bf16 %v969, %v968
      %v988 = vpack.c.bf16 %v971, %v970
      %v989 = vpack.c.bf16 %v973, %v972
      %990 = vmatprep.subr.bf16.mxu0 0
      %991 = vmatpush1.bf16.msra.mxu0 %v981
      %992 = vmatprep.subr.bf16.mxu0 0
      %993 = vmatpush1.bf16.msra.mxu0 %v980
      %994 = vmatprep.subr.bf16.mxu0 0
      %995 = vmatpush1.bf16.msra.mxu0 %v979
      %996 = vmatprep.subr.bf16.mxu0 0
      %997 = vmatpush1.bf16.msra.mxu0 %v978
      %998 = vmatprep.subr.bf16.mxu0 0
      %999 = vmatpush1.bf16.msra.mxu0 %v977
      %1000 = vmatprep.subr.bf16.mxu0 0
      %1001 = vmatpush1.bf16.msra.mxu0 %v976
      %1002 = vmatprep.subr.bf16.mxu0 0
      %1003 = vmatpush1.bf16.msra.mxu0 %v975
      %1004 = vmatprep.subr.bf16.mxu0 0
      %1005 = vmatpush1.bf16.msra.mxu0 %v974
      %1006 = vmatprep.subr.bf16.mxu0 0
      %1007 = vmatpush2.bf16.msra.mxu0 %v989
      %1008 = vmatprep.subr.bf16.mxu0 0
      %1009 = vmatpush2.bf16.msra.mxu0 %v988
      %1010 = vmatprep.subr.bf16.mxu0 0
      %1011 = vmatpush2.bf16.msra.mxu0 %v987
      %1012 = vmatprep.subr.bf16.mxu0 0
      %1013 = vmatpush2.bf16.msra.mxu0 %v986
      %1014 = vmatprep.subr.bf16.mxu0 0
      %1015 = vmatpush2.bf16.msra.mxu0 %v985
      %1016 = vmatprep.subr.bf16.mxu0 0
      %1017 = vmatpush2.bf16.msra.mxu0 %v984
      %1018 = vmatprep.subr.bf16.mxu0 0
      %1019 = vmatpush2.bf16.msra.mxu0 %v983
      %1020 = vmatprep.subr.bf16.mxu0 0
      %1021 = vmatpush2.bf16.msra.mxu0 %v982
      %1022 = vmatprep.mubr.bf16.mxu0 %v393
      %1023 = vmatmul.mubr.bf16.gmra.mxu0 %v392
      %v1024 = vpop.f32.mrf.mxu0
      %v1025 = vadd.f32 0.0, %v1024
      %v1026 = vpop.f32.mrf.mxu0
      %v1027 = vpop.f32.mrf.mxu0
      %v1028 = vadd.f32 0.0, %v1027
      %v1029 = vpop.f32.mrf.mxu0
      %1030 = vmatprep.mubr.bf16.mxu0 %v395
      %1031 = vmatmul.mubr.bf16.gmra.mxu0 %v394
      %v1032 = vpop.f32.mrf.mxu0
      %v1033 = vadd.f32 0.0, %v1032
      %v1034 = vpop.f32.mrf.mxu0
      %v1035 = vpop.f32.mrf.mxu0
      %v1036 = vadd.f32 0.0, %v1035
      %v1037 = vpop.f32.mrf.mxu0
      %1038 = vmatprep.mubr.bf16.mxu0 %v397
      %1039 = vmatmul.mubr.bf16.gmra.mxu0 %v396
      %v1040 = vpop.f32.mrf.mxu0
      %v1041 = vadd.f32 0.0, %v1040
      %v1042 = vpop.f32.mrf.mxu0
      %v1043 = vpop.f32.mrf.mxu0
      %v1044 = vadd.f32 0.0, %v1043
      %v1045 = vpop.f32.mrf.mxu0
      %1046 = vmatprep.mubr.bf16.mxu0 %v399
      %1047 = vmatmul.mubr.bf16.gmra.mxu0 %v398
      %v1048 = vpop.f32.mrf.mxu0
      %v1049 = vadd.f32 0.0, %v1048
      %v1050 = vpop.f32.mrf.mxu0
      %v1051 = vpop.f32.mrf.mxu0
      %v1052 = vadd.f32 0.0, %v1051
      %v1053 = vpop.f32.mrf.mxu0
      %1054 = vmatprep.mubr.bf16.mxu0 %v401
      %1055 = vmatmul.mubr.bf16.gmra.mxu0 %v400
      %v1056 = vpop.f32.mrf.mxu0
      %v1057 = vadd.f32 0.0, %v1056
      %v1058 = vpop.f32.mrf.mxu0
      %v1059 = vpop.f32.mrf.mxu0
      %v1060 = vadd.f32 0.0, %v1059
      %v1061 = vpop.f32.mrf.mxu0
      %1062 = vmatprep.mubr.bf16.mxu0 %v403
      %1063 = vmatmul.mubr.bf16.gmra.mxu0 %v402
      %v1064 = vpop.f32.mrf.mxu0
      %v1065 = vadd.f32 0.0, %v1064
      %v1066 = vpop.f32.mrf.mxu0
      %v1067 = vpop.f32.mrf.mxu0
      %v1068 = vadd.f32 0.0, %v1067
      %v1069 = vpop.f32.mrf.mxu0
      %1070 = vmatprep.mubr.bf16.mxu0 %v405
      %1071 = vmatmul.mubr.bf16.gmra.mxu0 %v404
      %v1072 = vpop.f32.mrf.mxu0
      %v1073 = vadd.f32 0.0, %v1072
      %v1074 = vpop.f32.mrf.mxu0
      %v1075 = vpop.f32.mrf.mxu0
      %v1076 = vadd.f32 0.0, %v1075
      %v1077 = vpop.f32.mrf.mxu0
      %1078 = vmatprep.mubr.bf16.mxu0 %v407
      %1079 = vmatmul.mubr.bf16.gmra.mxu0 %v406
      %v1080 = vpop.f32.mrf.mxu0
      %v1081 = vadd.f32 0.0, %v1080
      %v1082 = vpop.f32.mrf.mxu0
      %v1083 = vpop.f32.mrf.mxu0
      %v1084 = vadd.f32 0.0, %v1083
      %v1085 = vpop.f32.mrf.mxu0
      %1086 = vdwg.mxu0
      %v1087 = vmul.f32 %v578, %v493
      %v1088 = vmul.f32 %v581, %v493
      %v1089 = vmul.f32 %v586, %v493
      %v1090 = vmul.f32 %v589, %v493
      %v1091 = vmul.f32 %v594, %v493
      %v1092 = vmul.f32 %v597, %v493
      %v1093 = vmul.f32 %v602, %v493
      %v1094 = vmul.f32 %v605, %v493
      %v1095 = vmul.f32 %v610, %v493
      %v1096 = vmul.f32 %v613, %v493
      %v1097 = vmul.f32 %v618, %v493
      %v1098 = vmul.f32 %v621, %v493
      %v1099 = vmul.f32 %v626, %v493
      %v1100 = vmul.f32 %v629, %v493
      %v1101 = vmul.f32 %v634, %v493
      %v1102 = vmul.f32 %v637, %v493
      %v1103 = vpack.c.bf16 %v1088, %v1087
      %v1104 = vpack.c.bf16 %v1090, %v1089
      %v1105 = vpack.c.bf16 %v1092, %v1091
      %v1106 = vpack.c.bf16 %v1094, %v1093
      %v1107 = vpack.c.bf16 %v1096, %v1095
      %v1108 = vpack.c.bf16 %v1098, %v1097
      %v1109 = vpack.c.bf16 %v1100, %v1099
      %v1110 = vpack.c.bf16 %v1102, %v1101
      %1111 = vmatprep.subr.bf16.mxu0 0
      %1112 = vmatpush1.bf16.msra.mxu0 %v1110
      %1113 = vmatprep.subr.bf16.mxu0 0
      %1114 = vmatpush1.bf16.msra.mxu0 %v1109
      %1115 = vmatprep.subr.bf16.mxu0 0
      %1116 = vmatpush1.bf16.msra.mxu0 %v1108
      %1117 = vmatprep.subr.bf16.mxu0 0
      %1118 = vmatpush1.bf16.msra.mxu0 %v1107
      %1119 = vmatprep.subr.bf16.mxu0 0
      %1120 = vmatpush1.bf16.msra.mxu0 %v1106
      %1121 = vmatprep.subr.bf16.mxu0 0
      %1122 = vmatpush1.bf16.msra.mxu0 %v1105
      %1123 = vmatprep.subr.bf16.mxu0 0
      %1124 = vmatpush1.bf16.msra.mxu0 %v1104
      %1125 = vmatprep.subr.bf16.mxu0 0
      %1126 = vmatpush1.bf16.msra.mxu0 %v1103
      %1127 = vmatprep.subr.bf16.mxu0 0
      %1128 = vmatpush2.bf16.msra.mxu0 0
      %1129 = vmatprep.subr.bf16.mxu0 0
      %1130 = vmatpush2.bf16.msra.mxu0 0
      %1131 = vmatprep.subr.bf16.mxu0 0
      %1132 = vmatpush2.bf16.msra.mxu0 0
      %1133 = vmatprep.subr.bf16.mxu0 0
      %1134 = vmatpush2.bf16.msra.mxu0 0
      %1135 = vmatprep.subr.bf16.mxu0 0
      %1136 = vmatpush2.bf16.msra.mxu0 0
      %1137 = vmatprep.subr.bf16.mxu0 0
      %1138 = vmatpush2.bf16.msra.mxu0 0
      %1139 = vmatprep.subr.bf16.mxu0 0
      %1140 = vmatpush2.bf16.msra.mxu0 0
      %1141 = vmatprep.subr.bf16.mxu0 0
      %1142 = vmatpush2.bf16.msra.mxu0 0
      %1143 = vmatprep.mubr.bf16.mxu0 0
      %1144 = vmatmul.mubr.bf16.gmra.mxu0 %v432
      %v1145 = vpop.f32.mrf.mxu0
      %v1146 = vadd.f32 0.0, %v1145
      %v1147 = vpop.f32.mrf.mxu0
      %v1148 = vpop.f32.mrf.mxu0
      %v1149 = vadd.f32 0.0, %v1148
      %v1150 = vpop.f32.mrf.mxu0
      %1151 = vmatprep.mubr.bf16.mxu0 0
      %1152 = vmatmul.mubr.bf16.gmra.mxu0 %v433
      %v1153 = vpop.f32.mrf.mxu0
      %v1154 = vadd.f32 0.0, %v1153
      %v1155 = vpop.f32.mrf.mxu0
      %v1156 = vpop.f32.mrf.mxu0
      %v1157 = vadd.f32 0.0, %v1156
      %v1158 = vpop.f32.mrf.mxu0
      %1159 = vmatprep.mubr.bf16.mxu0 0
      %1160 = vmatmul.mubr.bf16.gmra.mxu0 %v434
      %v1161 = vpop.f32.mrf.mxu0
      %v1162 = vadd.f32 0.0, %v1161
      %v1163 = vpop.f32.mrf.mxu0
      %v1164 = vpop.f32.mrf.mxu0
      %v1165 = vadd.f32 0.0, %v1164
      %v1166 = vpop.f32.mrf.mxu0
      %1167 = vmatprep.mubr.bf16.mxu0 0
      %1168 = vmatmul.mubr.bf16.gmra.mxu0 %v435
      %v1169 = vpop.f32.mrf.mxu0
      %v1170 = vadd.f32 0.0, %v1169
      %v1171 = vpop.f32.mrf.mxu0
      %v1172 = vpop.f32.mrf.mxu0
      %v1173 = vadd.f32 0.0, %v1172
      %v1174 = vpop.f32.mrf.mxu0
      %1175 = vmatprep.mubr.bf16.mxu0 0
      %1176 = vmatmul.mubr.bf16.gmra.mxu0 %v436
      %v1177 = vpop.f32.mrf.mxu0
      %v1178 = vadd.f32 0.0, %v1177
      %v1179 = vpop.f32.mrf.mxu0
      %v1180 = vpop.f32.mrf.mxu0
      %v1181 = vadd.f32 0.0, %v1180
      %v1182 = vpop.f32.mrf.mxu0
      %1183 = vmatprep.mubr.bf16.mxu0 0
      %1184 = vmatmul.mubr.bf16.gmra.mxu0 %v437
      %v1185 = vpop.f32.mrf.mxu0
      %v1186 = vadd.f32 0.0, %v1185
      %v1187 = vpop.f32.mrf.mxu0
      %v1188 = vpop.f32.mrf.mxu0
      %v1189 = vadd.f32 0.0, %v1188
      %v1190 = vpop.f32.mrf.mxu0
      %1191 = vmatprep.mubr.bf16.mxu0 0
      %1192 = vmatmul.mubr.bf16.gmra.mxu0 %v438
      %v1193 = vpop.f32.mrf.mxu0
      %v1194 = vadd.f32 0.0, %v1193
      %v1195 = vpop.f32.mrf.mxu0
      %v1196 = vpop.f32.mrf.mxu0
      %v1197 = vadd.f32 0.0, %v1196
      %v1198 = vpop.f32.mrf.mxu0
      %1199 = vmatprep.mubr.bf16.mxu0 0
      %1200 = vmatmul.mubr.bf16.gmra.mxu0 %v439
      %v1201 = vpop.f32.mrf.mxu0
      %v1202 = vadd.f32 0.0, %v1201
      %v1203 = vpop.f32.mrf.mxu0
      %v1204 = vpop.f32.mrf.mxu0
      %v1205 = vadd.f32 0.0, %v1204
      %v1206 = vpop.f32.mrf.mxu0
      %1207 = vmatprep.mubr.bf16.mxu0 0
      %1208 = vmatmul.mubr.bf16.gmra.mxu0 %v448
      %v1209 = vpop.f32.mrf.mxu0
      %v1210 = vadd.f32 0.0, %v1209
      %v1211 = vpop.f32.mrf.mxu0
      %v1212 = vpop.f32.mrf.mxu0
      %v1213 = vadd.f32 0.0, %v1212
      %v1214 = vpop.f32.mrf.mxu0
      %1215 = vmatprep.mubr.bf16.mxu0 0
      %1216 = vmatmul.mubr.bf16.gmra.mxu0 %v449
      %v1217 = vpop.f32.mrf.mxu0
      %v1218 = vadd.f32 0.0, %v1217
      %v1219 = vpop.f32.mrf.mxu0
      %v1220 = vpop.f32.mrf.mxu0
      %v1221 = vadd.f32 0.0, %v1220
      %v1222 = vpop.f32.mrf.mxu0
      %1223 = vmatprep.mubr.bf16.mxu0 0
      %1224 = vmatmul.mubr.bf16.gmra.mxu0 %v450
      %v1225 = vpop.f32.mrf.mxu0
      %v1226 = vadd.f32 0.0, %v1225
      %v1227 = vpop.f32.mrf.mxu0
      %v1228 = vpop.f32.mrf.mxu0
      %v1229 = vadd.f32 0.0, %v1228
      %v1230 = vpop.f32.mrf.mxu0
      %1231 = vmatprep.mubr.bf16.mxu0 0
      %1232 = vmatmul.mubr.bf16.gmra.mxu0 %v451
      %v1233 = vpop.f32.mrf.mxu0
      %v1234 = vadd.f32 0.0, %v1233
      %v1235 = vpop.f32.mrf.mxu0
      %v1236 = vpop.f32.mrf.mxu0
      %v1237 = vadd.f32 0.0, %v1236
      %v1238 = vpop.f32.mrf.mxu0
      %1239 = vmatprep.mubr.bf16.mxu0 0
      %1240 = vmatmul.mubr.bf16.gmra.mxu0 %v452
      %v1241 = vpop.f32.mrf.mxu0
      %v1242 = vadd.f32 0.0, %v1241
      %v1243 = vpop.f32.mrf.mxu0
      %v1244 = vpop.f32.mrf.mxu0
      %v1245 = vadd.f32 0.0, %v1244
      %v1246 = vpop.f32.mrf.mxu0
      %1247 = vmatprep.mubr.bf16.mxu0 0
      %1248 = vmatmul.mubr.bf16.gmra.mxu0 %v453
      %v1249 = vpop.f32.mrf.mxu0
      %v1250 = vadd.f32 0.0, %v1249
      %v1251 = vpop.f32.mrf.mxu0
      %v1252 = vpop.f32.mrf.mxu0
      %v1253 = vadd.f32 0.0, %v1252
      %v1254 = vpop.f32.mrf.mxu0
      %1255 = vmatprep.mubr.bf16.mxu0 0
      %1256 = vmatmul.mubr.bf16.gmra.mxu0 %v454
      %v1257 = vpop.f32.mrf.mxu0
      %v1258 = vadd.f32 0.0, %v1257
      %v1259 = vpop.f32.mrf.mxu0
      %v1260 = vpop.f32.mrf.mxu0
      %v1261 = vadd.f32 0.0, %v1260
      %v1262 = vpop.f32.mrf.mxu0
      %1263 = vmatprep.mubr.bf16.mxu0 0
      %1264 = vmatmul.mubr.bf16.gmra.mxu0 %v455
      %v1265 = vpop.f32.mrf.mxu0
      %v1266 = vadd.f32 0.0, %v1265
      %v1267 = vpop.f32.mrf.mxu0
      %v1268 = vpop.f32.mrf.mxu0
      %v1269 = vadd.f32 0.0, %v1268
      %v1270 = vpop.f32.mrf.mxu0
      %1271 = vdwg.mxu0
      %v1272 = vld [vmem:[%s858] sm:$0xff]
      %v1273 = vld [vmem:[%s858 + $0x8] sm:$0xff]
      %v1274 = vld [vmem:[%s858 + $0x10] sm:$0xff]
      %v1275 = vld [vmem:[%s858 + $0x18] sm:$0xff]
      %v1276 = vld [vmem:[%s858 + $0x20] sm:$0xff]
      %v1277 = vld [vmem:[%s858 + $0x28] sm:$0xff]
      %v1278 = vld [vmem:[%s858 + $0x30] sm:$0xff]
      %v1279 = vld [vmem:[%s858 + $0x38] sm:$0xff]
      %v1280 = vld [vmem:[%s858 + $0x40] sm:$0xff]
      %v1281 = vld [vmem:[%s858 + $0x48] sm:$0xff]
      %v1282 = vld [vmem:[%s858 + $0x50] sm:$0xff]
      %v1283 = vld [vmem:[%s858 + $0x58] sm:$0xff]
      %v1284 = vld [vmem:[%s858 + $0x60] sm:$0xff]
      %v1285 = vld [vmem:[%s858 + $0x68] sm:$0xff]
      %v1286 = vld [vmem:[%s858 + $0x70] sm:$0xff]
      %v1287 = vld [vmem:[%s858 + $0x78] sm:$0xff]
      %v1288 = vmul.f32 %v1025, 0.33333334
      %v1289 = vmul.f32 %v1028, 0.33333334
      %v1290 = vmul.f32 %v1033, 0.33333334
      %v1291 = vmul.f32 %v1036, 0.33333334
      %v1292 = vmul.f32 %v1041, 0.33333334
      %v1293 = vmul.f32 %v1044, 0.33333334
      %v1294 = vmul.f32 %v1049, 0.33333334
      %v1295 = vmul.f32 %v1052, 0.33333334
      %v1296 = vmul.f32 %v1057, 0.33333334
      %v1297 = vmul.f32 %v1060, 0.33333334
      %v1298 = vmul.f32 %v1065, 0.33333334
      %v1299 = vmul.f32 %v1068, 0.33333334
      %v1300 = vmul.f32 %v1073, 0.33333334
      %v1301 = vmul.f32 %v1076, 0.33333334
      %v1302 = vmul.f32 %v1081, 0.33333334
      %v1303 = vmul.f32 %v1084, 0.33333334
      %v1304 = vadd.f32 %v1272, %v1288
      %v1305 = vadd.f32 %v1273, %v1289
      %v1306 = vadd.f32 %v1274, %v1290
      %v1307 = vadd.f32 %v1275, %v1291
      %v1308 = vadd.f32 %v1276, %v1292
      %v1309 = vadd.f32 %v1277, %v1293
      %v1310 = vadd.f32 %v1278, %v1294
      %v1311 = vadd.f32 %v1279, %v1295
      %v1312 = vadd.f32 %v1280, %v1296
      %v1313 = vadd.f32 %v1281, %v1297
      %v1314 = vadd.f32 %v1282, %v1298
      %v1315 = vadd.f32 %v1283, %v1299
      %v1316 = vadd.f32 %v1284, %v1300
      %v1317 = vadd.f32 %v1285, %v1301
      %v1318 = vadd.f32 %v1286, %v1302
      %v1319 = vadd.f32 %v1287, %v1303
      %1320 = vst.msk [vmem:[%s858] sm:$0xff] %vm859, %v1304
      %1321 = vst.msk [vmem:[%s858 + $0x8] sm:$0xff] %vm859, %v1305
      %1322 = vst.msk [vmem:[%s858 + $0x10] sm:$0xff] %vm859, %v1306
      %1323 = vst.msk [vmem:[%s858 + $0x18] sm:$0xff] %vm859, %v1307
      %1324 = vst.msk [vmem:[%s858 + $0x20] sm:$0xff] %vm859, %v1308
      %1325 = vst.msk [vmem:[%s858 + $0x28] sm:$0xff] %vm859, %v1309
      %1326 = vst.msk [vmem:[%s858 + $0x30] sm:$0xff] %vm859, %v1310
      %1327 = vst.msk [vmem:[%s858 + $0x38] sm:$0xff] %vm859, %v1311
      %1328 = vst.msk [vmem:[%s858 + $0x40] sm:$0xff] %vm859, %v1312
      %1329 = vst.msk [vmem:[%s858 + $0x48] sm:$0xff] %vm859, %v1313
      %1330 = vst.msk [vmem:[%s858 + $0x50] sm:$0xff] %vm859, %v1314
      %1331 = vst.msk [vmem:[%s858 + $0x58] sm:$0xff] %vm859, %v1315
      %1332 = vst.msk [vmem:[%s858 + $0x60] sm:$0xff] %vm859, %v1316
      %1333 = vst.msk [vmem:[%s858 + $0x68] sm:$0xff] %vm859, %v1317
      %1334 = vst.msk [vmem:[%s858 + $0x70] sm:$0xff] %vm859, %v1318
      %1335 = vst.msk [vmem:[%s858 + $0x78] sm:$0xff] %vm859, %v1319
      %v1336 = vld [vmem:[%s909] sm:$0xff]
      %v1337 = vld [vmem:[%s909 + $0x8] sm:$0xff]
      %v1338 = vld [vmem:[%s909 + $0x10] sm:$0xff]
      %v1339 = vld [vmem:[%s909 + $0x18] sm:$0xff]
      %v1340 = vld [vmem:[%s909 + $0x20] sm:$0xff]
      %v1341 = vld [vmem:[%s909 + $0x28] sm:$0xff]
      %v1342 = vld [vmem:[%s909 + $0x30] sm:$0xff]
      %v1343 = vld [vmem:[%s909 + $0x38] sm:$0xff]
      %v1344 = vld [vmem:[%s909 + $0x40] sm:$0xff]
      %v1345 = vld [vmem:[%s909 + $0x48] sm:$0xff]
      %v1346 = vld [vmem:[%s909 + $0x50] sm:$0xff]
      %v1347 = vld [vmem:[%s909 + $0x58] sm:$0xff]
      %v1348 = vld [vmem:[%s909 + $0x60] sm:$0xff]
      %v1349 = vld [vmem:[%s909 + $0x68] sm:$0xff]
      %v1350 = vld [vmem:[%s909 + $0x70] sm:$0xff]
      %v1351 = vld [vmem:[%s909 + $0x78] sm:$0xff]
      %v1352 = vld [vmem:[%s909 + $0x80] sm:$0xff]
      %v1353 = vld [vmem:[%s909 + $0x88] sm:$0xff]
      %v1354 = vld [vmem:[%s909 + $0x90] sm:$0xff]
      %v1355 = vld [vmem:[%s909 + $0x98] sm:$0xff]
      %v1356 = vld [vmem:[%s909 + $0xa0] sm:$0xff]
      %v1357 = vld [vmem:[%s909 + $0xa8] sm:$0xff]
      %v1358 = vld [vmem:[%s909 + $0xb0] sm:$0xff]
      %v1359 = vld [vmem:[%s909 + $0xb8] sm:$0xff]
      %v1360 = vld [vmem:[%s909 + $0xc0] sm:$0xff]
      %v1361 = vld [vmem:[%s909 + $0xc8] sm:$0xff]
      %v1362 = vld [vmem:[%s909 + $0xd0] sm:$0xff]
      %v1363 = vld [vmem:[%s909 + $0xd8] sm:$0xff]
      %v1364 = vld [vmem:[%s909 + $0xe0] sm:$0xff]
      %v1365 = vld [vmem:[%s909 + $0xe8] sm:$0xff]
      %v1366 = vld [vmem:[%s909 + $0xf0] sm:$0xff]
      %v1367 = vld [vmem:[%s909 + $0xf8] sm:$0xff]
      %v1368 = vmul.f32 %v1146, 0.33333334
      %v1369 = vmul.f32 %v1149, 0.33333334
      %v1370 = vmul.f32 %v1154, 0.33333334
      %v1371 = vmul.f32 %v1157, 0.33333334
      %v1372 = vmul.f32 %v1162, 0.33333334
      %v1373 = vmul.f32 %v1165, 0.33333334
      %v1374 = vmul.f32 %v1170, 0.33333334
      %v1375 = vmul.f32 %v1173, 0.33333334
      %v1376 = vmul.f32 %v1178, 0.33333334
      %v1377 = vmul.f32 %v1181, 0.33333334
      %v1378 = vmul.f32 %v1186, 0.33333334
      %v1379 = vmul.f32 %v1189, 0.33333334
      %v1380 = vmul.f32 %v1194, 0.33333334
      %v1381 = vmul.f32 %v1197, 0.33333334
      %v1382 = vmul.f32 %v1202, 0.33333334
      %v1383 = vmul.f32 %v1205, 0.33333334
      %v1384 = vmul.f32 %v1210, 0.33333334
      %v1385 = vmul.f32 %v1213, 0.33333334
      %v1386 = vmul.f32 %v1218, 0.33333334
      %v1387 = vmul.f32 %v1221, 0.33333334
      %v1388 = vmul.f32 %v1226, 0.33333334
      %v1389 = vmul.f32 %v1229, 0.33333334
      %v1390 = vmul.f32 %v1234, 0.33333334
      %v1391 = vmul.f32 %v1237, 0.33333334
      %v1392 = vmul.f32 %v1242, 0.33333334
      %v1393 = vmul.f32 %v1245, 0.33333334
      %v1394 = vmul.f32 %v1250, 0.33333334
      %v1395 = vmul.f32 %v1253, 0.33333334
      %v1396 = vmul.f32 %v1258, 0.33333334
      %v1397 = vmul.f32 %v1261, 0.33333334
      %v1398 = vmul.f32 %v1266, 0.33333334
      %v1399 = vmul.f32 %v1269, 0.33333334
      %v1400 = vadd.f32 %v1336, %v1368
      %v1401 = vadd.f32 %v1337, %v1369
      %v1402 = vadd.f32 %v1338, %v1370
      %v1403 = vadd.f32 %v1339, %v1371
      %v1404 = vadd.f32 %v1340, %v1372
      %v1405 = vadd.f32 %v1341, %v1373
      %v1406 = vadd.f32 %v1342, %v1374
      %v1407 = vadd.f32 %v1343, %v1375
      %v1408 = vadd.f32 %v1344, %v1376
      %v1409 = vadd.f32 %v1345, %v1377
      %v1410 = vadd.f32 %v1346, %v1378
      %v1411 = vadd.f32 %v1347, %v1379
      %v1412 = vadd.f32 %v1348, %v1380
      %v1413 = vadd.f32 %v1349, %v1381
      %v1414 = vadd.f32 %v1350, %v1382
      %v1415 = vadd.f32 %v1351, %v1383
      %v1416 = vadd.f32 %v1352, %v1384
      %v1417 = vadd.f32 %v1353, %v1385
      %v1418 = vadd.f32 %v1354, %v1386
      %v1419 = vadd.f32 %v1355, %v1387
      %v1420 = vadd.f32 %v1356, %v1388
      %v1421 = vadd.f32 %v1357, %v1389
      %v1422 = vadd.f32 %v1358, %v1390
      %v1423 = vadd.f32 %v1359, %v1391
      %v1424 = vadd.f32 %v1360, %v1392
      %v1425 = vadd.f32 %v1361, %v1393
      %v1426 = vadd.f32 %v1362, %v1394
      %v1427 = vadd.f32 %v1363, %v1395
      %v1428 = vadd.f32 %v1364, %v1396
      %v1429 = vadd.f32 %v1365, %v1397
      %v1430 = vadd.f32 %v1366, %v1398
      %v1431 = vadd.f32 %v1367, %v1399
      %1432 = vst.msk [vmem:[%s909] sm:$0xff] %vm859, %v1400
      %1433 = vst.msk [vmem:[%s909 + $0x8] sm:$0xff] %vm859, %v1401
      %1434 = vst.msk [vmem:[%s909 + $0x10] sm:$0xff] %vm859, %v1402
      %1435 = vst.msk [vmem:[%s909 + $0x18] sm:$0xff] %vm859, %v1403
      %1436 = vst.msk [vmem:[%s909 + $0x20] sm:$0xff] %vm859, %v1404
      %1437 = vst.msk [vmem:[%s909 + $0x28] sm:$0xff] %vm859, %v1405
      %1438 = vst.msk [vmem:[%s909 + $0x30] sm:$0xff] %vm859, %v1406
      %1439 = vst.msk [vmem:[%s909 + $0x38] sm:$0xff] %vm859, %v1407
      %1440 = vst.msk [vmem:[%s909 + $0x40] sm:$0xff] %vm859, %v1408
      %1441 = vst.msk [vmem:[%s909 + $0x48] sm:$0xff] %vm859, %v1409
      %1442 = vst.msk [vmem:[%s909 + $0x50] sm:$0xff] %vm859, %v1410
      %1443 = vst.msk [vmem:[%s909 + $0x58] sm:$0xff] %vm859, %v1411
      %1444 = vst.msk [vmem:[%s909 + $0x60] sm:$0xff] %vm859, %v1412
      %1445 = vst.msk [vmem:[%s909 + $0x68] sm:$0xff] %vm859, %v1413
      %1446 = vst.msk [vmem:[%s909 + $0x70] sm:$0xff] %vm859, %v1414
      %1447 = vst.msk [vmem:[%s909 + $0x78] sm:$0xff] %vm859, %v1415
      %1448 = vst.msk [vmem:[%s909 + $0x80] sm:$0xff] %vm859, %v1416
      %1449 = vst.msk [vmem:[%s909 + $0x88] sm:$0xff] %vm859, %v1417
      %1450 = vst.msk [vmem:[%s909 + $0x90] sm:$0xff] %vm859, %v1418
      %1451 = vst.msk [vmem:[%s909 + $0x98] sm:$0xff] %vm859, %v1419
      %1452 = vst.msk [vmem:[%s909 + $0xa0] sm:$0xff] %vm859, %v1420
      %1453 = vst.msk [vmem:[%s909 + $0xa8] sm:$0xff] %vm859, %v1421
      %1454 = vst.msk [vmem:[%s909 + $0xb0] sm:$0xff] %vm859, %v1422
      %1455 = vst.msk [vmem:[%s909 + $0xb8] sm:$0xff] %vm859, %v1423
      %1456 = vst.msk [vmem:[%s909 + $0xc0] sm:$0xff] %vm859, %v1424
      %1457 = vst.msk [vmem:[%s909 + $0xc8] sm:$0xff] %vm859, %v1425
      %1458 = vst.msk [vmem:[%s909 + $0xd0] sm:$0xff] %vm859, %v1426
      %1459 = vst.msk [vmem:[%s909 + $0xd8] sm:$0xff] %vm859, %v1427
      %1460 = vst.msk [vmem:[%s909 + $0xe0] sm:$0xff] %vm859, %v1428
      %1461 = vst.msk [vmem:[%s909 + $0xe8] sm:$0xff] %vm859, %v1429
      %1462 = vst.msk [vmem:[%s909 + $0xf0] sm:$0xff] %vm859, %v1430
      %1463 = vst.msk [vmem:[%s909 + $0xf8] sm:$0xff] %vm859, %v1431
      %v1464 = vmul.f32 %v1146, %v493
      %v1465 = vmul.f32 %v1149, %v493
      %v1466 = vmul.f32 %v1154, %v493
      %v1467 = vmul.f32 %v1157, %v493
      %v1468 = vmul.f32 %v1162, %v493
      %v1469 = vmul.f32 %v1165, %v493
      %v1470 = vmul.f32 %v1170, %v493
      %v1471 = vmul.f32 %v1173, %v493
      %v1472 = vmul.f32 %v1178, %v493
      %v1473 = vmul.f32 %v1181, %v493
      %v1474 = vmul.f32 %v1186, %v493
      %v1475 = vmul.f32 %v1189, %v493
      %v1476 = vmul.f32 %v1194, %v493
      %v1477 = vmul.f32 %v1197, %v493
      %v1478 = vmul.f32 %v1202, %v493
      %v1479 = vmul.f32 %v1205, %v493
      %v1480 = vmul.f32 %v1210, %v493
      %v1481 = vmul.f32 %v1213, %v493
      %v1482 = vmul.f32 %v1218, %v493
      %v1483 = vmul.f32 %v1221, %v493
      %v1484 = vmul.f32 %v1226, %v493
      %v1485 = vmul.f32 %v1229, %v493
      %v1486 = vmul.f32 %v1234, %v493
      %v1487 = vmul.f32 %v1237, %v493
      %v1488 = vmul.f32 %v1242, %v493
      %v1489 = vmul.f32 %v1245, %v493
      %v1490 = vmul.f32 %v1250, %v493
      %v1491 = vmul.f32 %v1253, %v493
      %v1492 = vmul.f32 %v1258, %v493
      %v1493 = vmul.f32 %v1261, %v493
      %v1494 = vmul.f32 %v1266, %v493
      %v1495 = vmul.f32 %v1269, %v493
      %v1496 = vpack.c.bf16 %v1465, %v1464
      %v1497 = vpack.c.bf16 %v1467, %v1466
      %v1498 = vpack.c.bf16 %v1469, %v1468
      %v1499 = vpack.c.bf16 %v1471, %v1470
      %v1500 = vpack.c.bf16 %v1473, %v1472
      %v1501 = vpack.c.bf16 %v1475, %v1474
      %v1502 = vpack.c.bf16 %v1477, %v1476
      %v1503 = vpack.c.bf16 %v1479, %v1478
      %v1504 = vpack.c.bf16 %v1481, %v1480
      %v1505 = vpack.c.bf16 %v1483, %v1482
      %v1506 = vpack.c.bf16 %v1485, %v1484
      %v1507 = vpack.c.bf16 %v1487, %v1486
      %v1508 = vpack.c.bf16 %v1489, %v1488
      %v1509 = vpack.c.bf16 %v1491, %v1490
      %v1510 = vpack.c.bf16 %v1493, %v1492
      %v1511 = vpack.c.bf16 %v1495, %v1494
      %1512 = vmatprep.subr.bf16.mxu0 0
      %1513 = vmatpush1.bf16.msra.mxu0 %v1503
      %1514 = vmatprep.subr.bf16.mxu0 0
      %1515 = vmatpush1.bf16.msra.mxu0 %v1502
      %1516 = vmatprep.subr.bf16.mxu0 0
      %1517 = vmatpush1.bf16.msra.mxu0 %v1501
      %1518 = vmatprep.subr.bf16.mxu0 0
      %1519 = vmatpush1.bf16.msra.mxu0 %v1500
      %1520 = vmatprep.subr.bf16.mxu0 0
      %1521 = vmatpush1.bf16.msra.mxu0 %v1499
      %1522 = vmatprep.subr.bf16.mxu0 0
      %1523 = vmatpush1.bf16.msra.mxu0 %v1498
      %1524 = vmatprep.subr.bf16.mxu0 0
      %1525 = vmatpush1.bf16.msra.mxu0 %v1497
      %1526 = vmatprep.subr.bf16.mxu0 0
      %1527 = vmatpush1.bf16.msra.mxu0 %v1496
      %1528 = vmatprep.subr.bf16.mxu0 0
      %1529 = vmatpush2.bf16.msra.mxu0 %v1511
      %1530 = vmatprep.subr.bf16.mxu0 0
      %1531 = vmatpush2.bf16.msra.mxu0 %v1510
      %1532 = vmatprep.subr.bf16.mxu0 0
      %1533 = vmatpush2.bf16.msra.mxu0 %v1509
      %1534 = vmatprep.subr.bf16.mxu0 0
      %1535 = vmatpush2.bf16.msra.mxu0 %v1508
      %1536 = vmatprep.subr.bf16.mxu0 0
      %1537 = vmatpush2.bf16.msra.mxu0 %v1507
      %1538 = vmatprep.subr.bf16.mxu0 0
      %1539 = vmatpush2.bf16.msra.mxu0 %v1506
      %1540 = vmatprep.subr.bf16.mxu0 0
      %1541 = vmatpush2.bf16.msra.mxu0 %v1505
      %1542 = vmatprep.subr.bf16.mxu0 0
      %1543 = vmatpush2.bf16.msra.mxu0 %v1504
      %1544 = vmatprep.mubr.bf16.mxu0 %v393
      %1545 = vmatmul.mubr.bf16.gmra.mxu0 %v392
      %v1546 = vpop.f32.mrf.mxu0
      %v1547 = vadd.f32 0.0, %v1546
      %v1548 = vpop.f32.mrf.mxu0
      %v1549 = vpop.f32.mrf.mxu0
      %v1550 = vadd.f32 0.0, %v1549
      %v1551 = vpop.f32.mrf.mxu0
      %1552 = vmatprep.mubr.bf16.mxu0 %v395
      %1553 = vmatmul.mubr.bf16.gmra.mxu0 %v394
      %v1554 = vpop.f32.mrf.mxu0
      %v1555 = vadd.f32 0.0, %v1554
      %v1556 = vpop.f32.mrf.mxu0
      %v1557 = vpop.f32.mrf.mxu0
      %v1558 = vadd.f32 0.0, %v1557
      %v1559 = vpop.f32.mrf.mxu0
      %1560 = vmatprep.mubr.bf16.mxu0 %v397
      %1561 = vmatmul.mubr.bf16.gmra.mxu0 %v396
      %v1562 = vpop.f32.mrf.mxu0
      %v1563 = vadd.f32 0.0, %v1562
      %v1564 = vpop.f32.mrf.mxu0
      %v1565 = vpop.f32.mrf.mxu0
      %v1566 = vadd.f32 0.0, %v1565
      %v1567 = vpop.f32.mrf.mxu0
      %1568 = vmatprep.mubr.bf16.mxu0 %v399
      %1569 = vmatmul.mubr.bf16.gmra.mxu0 %v398
      %v1570 = vpop.f32.mrf.mxu0
      %v1571 = vadd.f32 0.0, %v1570
      %v1572 = vpop.f32.mrf.mxu0
      %v1573 = vpop.f32.mrf.mxu0
      %v1574 = vadd.f32 0.0, %v1573
      %v1575 = vpop.f32.mrf.mxu0
      %1576 = vmatprep.mubr.bf16.mxu0 %v401
      %1577 = vmatmul.mubr.bf16.gmra.mxu0 %v400
      %v1578 = vpop.f32.mrf.mxu0
      %v1579 = vadd.f32 0.0, %v1578
      %v1580 = vpop.f32.mrf.mxu0
      %v1581 = vpop.f32.mrf.mxu0
      %v1582 = vadd.f32 0.0, %v1581
      %v1583 = vpop.f32.mrf.mxu0
      %1584 = vmatprep.mubr.bf16.mxu0 %v403
      %1585 = vmatmul.mubr.bf16.gmra.mxu0 %v402
      %v1586 = vpop.f32.mrf.mxu0
      %v1587 = vadd.f32 0.0, %v1586
      %v1588 = vpop.f32.mrf.mxu0
      %v1589 = vpop.f32.mrf.mxu0
      %v1590 = vadd.f32 0.0, %v1589
      %v1591 = vpop.f32.mrf.mxu0
      %1592 = vmatprep.mubr.bf16.mxu0 %v405
      %1593 = vmatmul.mubr.bf16.gmra.mxu0 %v404
      %v1594 = vpop.f32.mrf.mxu0
      %v1595 = vadd.f32 0.0, %v1594
      %v1596 = vpop.f32.mrf.mxu0
      %v1597 = vpop.f32.mrf.mxu0
      %v1598 = vadd.f32 0.0, %v1597
      %v1599 = vpop.f32.mrf.mxu0
      %1600 = vmatprep.mubr.bf16.mxu0 %v407
      %1601 = vmatmul.mubr.bf16.gmra.mxu0 %v406
      %v1602 = vpop.f32.mrf.mxu0
      %v1603 = vadd.f32 0.0, %v1602
      %v1604 = vpop.f32.mrf.mxu0
      %v1605 = vpop.f32.mrf.mxu0
      %v1606 = vadd.f32 0.0, %v1605
      %v1607 = vpop.f32.mrf.mxu0
      %1608 = vdwg.mxu0
      %v1609 = vmul.f32 %v1025, %v493
      %v1610 = vmul.f32 %v1028, %v493
      %v1611 = vmul.f32 %v1033, %v493
      %v1612 = vmul.f32 %v1036, %v493
      %v1613 = vmul.f32 %v1041, %v493
      %v1614 = vmul.f32 %v1044, %v493
      %v1615 = vmul.f32 %v1049, %v493
      %v1616 = vmul.f32 %v1052, %v493
      %v1617 = vmul.f32 %v1057, %v493
      %v1618 = vmul.f32 %v1060, %v493
      %v1619 = vmul.f32 %v1065, %v493
      %v1620 = vmul.f32 %v1068, %v493
      %v1621 = vmul.f32 %v1073, %v493
      %v1622 = vmul.f32 %v1076, %v493
      %v1623 = vmul.f32 %v1081, %v493
      %v1624 = vmul.f32 %v1084, %v493
      %v1625 = vpack.c.bf16 %v1610, %v1609
      %v1626 = vpack.c.bf16 %v1612, %v1611
      %v1627 = vpack.c.bf16 %v1614, %v1613
      %v1628 = vpack.c.bf16 %v1616, %v1615
      %v1629 = vpack.c.bf16 %v1618, %v1617
      %v1630 = vpack.c.bf16 %v1620, %v1619
      %v1631 = vpack.c.bf16 %v1622, %v1621
      %v1632 = vpack.c.bf16 %v1624, %v1623
      %1633 = vmatprep.subr.bf16.mxu0 0
      %1634 = vmatpush1.bf16.msra.mxu0 %v1632
      %1635 = vmatprep.subr.bf16.mxu0 0
      %1636 = vmatpush1.bf16.msra.mxu0 %v1631
      %1637 = vmatprep.subr.bf16.mxu0 0
      %1638 = vmatpush1.bf16.msra.mxu0 %v1630
      %1639 = vmatprep.subr.bf16.mxu0 0
      %1640 = vmatpush1.bf16.msra.mxu0 %v1629
      %1641 = vmatprep.subr.bf16.mxu0 0
      %1642 = vmatpush1.bf16.msra.mxu0 %v1628
      %1643 = vmatprep.subr.bf16.mxu0 0
      %1644 = vmatpush1.bf16.msra.mxu0 %v1627
      %1645 = vmatprep.subr.bf16.mxu0 0
      %1646 = vmatpush1.bf16.msra.mxu0 %v1626
      %1647 = vmatprep.subr.bf16.mxu0 0
      %1648 = vmatpush1.bf16.msra.mxu0 %v1625
      %1649 = vmatprep.subr.bf16.mxu0 0
      %1650 = vmatpush2.bf16.msra.mxu0 0
      %1651 = vmatprep.subr.bf16.mxu0 0
      %1652 = vmatpush2.bf16.msra.mxu0 0
      %1653 = vmatprep.subr.bf16.mxu0 0
      %1654 = vmatpush2.bf16.msra.mxu0 0
      %1655 = vmatprep.subr.bf16.mxu0 0
      %1656 = vmatpush2.bf16.msra.mxu0 0
      %1657 = vmatprep.subr.bf16.mxu0 0
      %1658 = vmatpush2.bf16.msra.mxu0 0
      %1659 = vmatprep.subr.bf16.mxu0 0
      %1660 = vmatpush2.bf16.msra.mxu0 0
      %1661 = vmatprep.subr.bf16.mxu0 0
      %1662 = vmatpush2.bf16.msra.mxu0 0
      %1663 = vmatprep.subr.bf16.mxu0 0
      %1664 = vmatpush2.bf16.msra.mxu0 0
      %1665 = vmatprep.mubr.bf16.mxu0 0
      %1666 = vmatmul.mubr.bf16.gmra.mxu0 %v432
      %v1667 = vpop.f32.mrf.mxu0
      %v1668 = vadd.f32 0.0, %v1667
      %v1669 = vpop.f32.mrf.mxu0
      %v1670 = vpop.f32.mrf.mxu0
      %v1671 = vadd.f32 0.0, %v1670
      %v1672 = vpop.f32.mrf.mxu0
      %1673 = vmatprep.mubr.bf16.mxu0 0
      %1674 = vmatmul.mubr.bf16.gmra.mxu0 %v433
      %v1675 = vpop.f32.mrf.mxu0
      %v1676 = vadd.f32 0.0, %v1675
      %v1677 = vpop.f32.mrf.mxu0
      %v1678 = vpop.f32.mrf.mxu0
      %v1679 = vadd.f32 0.0, %v1678
      %v1680 = vpop.f32.mrf.mxu0
      %1681 = vmatprep.mubr.bf16.mxu0 0
      %1682 = vmatmul.mubr.bf16.gmra.mxu0 %v434
      %v1683 = vpop.f32.mrf.mxu0
      %v1684 = vadd.f32 0.0, %v1683
      %v1685 = vpop.f32.mrf.mxu0
      %v1686 = vpop.f32.mrf.mxu0
      %v1687 = vadd.f32 0.0, %v1686
      %v1688 = vpop.f32.mrf.mxu0
      %1689 = vmatprep.mubr.bf16.mxu0 0
      %1690 = vmatmul.mubr.bf16.gmra.mxu0 %v435
      %v1691 = vpop.f32.mrf.mxu0
      %v1692 = vadd.f32 0.0, %v1691
      %v1693 = vpop.f32.mrf.mxu0
      %v1694 = vpop.f32.mrf.mxu0
      %v1695 = vadd.f32 0.0, %v1694
      %v1696 = vpop.f32.mrf.mxu0
      %1697 = vmatprep.mubr.bf16.mxu0 0
      %1698 = vmatmul.mubr.bf16.gmra.mxu0 %v436
      %v1699 = vpop.f32.mrf.mxu0
      %v1700 = vadd.f32 0.0, %v1699
      %v1701 = vpop.f32.mrf.mxu0
      %v1702 = vpop.f32.mrf.mxu0
      %v1703 = vadd.f32 0.0, %v1702
      %v1704 = vpop.f32.mrf.mxu0
      %1705 = vmatprep.mubr.bf16.mxu0 0
      %1706 = vmatmul.mubr.bf16.gmra.mxu0 %v437
      %v1707 = vpop.f32.mrf.mxu0
      %v1708 = vadd.f32 0.0, %v1707
      %v1709 = vpop.f32.mrf.mxu0
      %v1710 = vpop.f32.mrf.mxu0
      %v1711 = vadd.f32 0.0, %v1710
      %v1712 = vpop.f32.mrf.mxu0
      %1713 = vmatprep.mubr.bf16.mxu0 0
      %1714 = vmatmul.mubr.bf16.gmra.mxu0 %v438
      %v1715 = vpop.f32.mrf.mxu0
      %v1716 = vadd.f32 0.0, %v1715
      %v1717 = vpop.f32.mrf.mxu0
      %v1718 = vpop.f32.mrf.mxu0
      %v1719 = vadd.f32 0.0, %v1718
      %v1720 = vpop.f32.mrf.mxu0
      %1721 = vmatprep.mubr.bf16.mxu0 0
      %1722 = vmatmul.mubr.bf16.gmra.mxu0 %v439
      %v1723 = vpop.f32.mrf.mxu0
      %v1724 = vadd.f32 0.0, %v1723
      %v1725 = vpop.f32.mrf.mxu0
      %v1726 = vpop.f32.mrf.mxu0
      %v1727 = vadd.f32 0.0, %v1726
      %v1728 = vpop.f32.mrf.mxu0
      %1729 = vmatprep.mubr.bf16.mxu0 0
      %1730 = vmatmul.mubr.bf16.gmra.mxu0 %v448
      %v1731 = vpop.f32.mrf.mxu0
      %v1732 = vadd.f32 0.0, %v1731
      %v1733 = vpop.f32.mrf.mxu0
      %v1734 = vpop.f32.mrf.mxu0
      %v1735 = vadd.f32 0.0, %v1734
      %v1736 = vpop.f32.mrf.mxu0
      %1737 = vmatprep.mubr.bf16.mxu0 0
      %1738 = vmatmul.mubr.bf16.gmra.mxu0 %v449
      %v1739 = vpop.f32.mrf.mxu0
      %v1740 = vadd.f32 0.0, %v1739
      %v1741 = vpop.f32.mrf.mxu0
      %v1742 = vpop.f32.mrf.mxu0
      %v1743 = vadd.f32 0.0, %v1742
      %v1744 = vpop.f32.mrf.mxu0
      %1745 = vmatprep.mubr.bf16.mxu0 0
      %1746 = vmatmul.mubr.bf16.gmra.mxu0 %v450
      %v1747 = vpop.f32.mrf.mxu0
      %v1748 = vadd.f32 0.0, %v1747
      %v1749 = vpop.f32.mrf.mxu0
      %v1750 = vpop.f32.mrf.mxu0
      %v1751 = vadd.f32 0.0, %v1750
      %v1752 = vpop.f32.mrf.mxu0
      %1753 = vmatprep.mubr.bf16.mxu0 0
      %1754 = vmatmul.mubr.bf16.gmra.mxu0 %v451
      %v1755 = vpop.f32.mrf.mxu0
      %v1756 = vadd.f32 0.0, %v1755
      %v1757 = vpop.f32.mrf.mxu0
      %v1758 = vpop.f32.mrf.mxu0
      %v1759 = vadd.f32 0.0, %v1758
      %v1760 = vpop.f32.mrf.mxu0
      %1761 = vmatprep.mubr.bf16.mxu0 0
      %1762 = vmatmul.mubr.bf16.gmra.mxu0 %v452
      %v1763 = vpop.f32.mrf.mxu0
      %v1764 = vadd.f32 0.0, %v1763
      %v1765 = vpop.f32.mrf.mxu0
      %v1766 = vpop.f32.mrf.mxu0
      %v1767 = vadd.f32 0.0, %v1766
      %v1768 = vpop.f32.mrf.mxu0
      %1769 = vmatprep.mubr.bf16.mxu0 0
      %1770 = vmatmul.mubr.bf16.gmra.mxu0 %v453
      %v1771 = vpop.f32.mrf.mxu0
      %v1772 = vadd.f32 0.0, %v1771
      %v1773 = vpop.f32.mrf.mxu0
      %v1774 = vpop.f32.mrf.mxu0
      %v1775 = vadd.f32 0.0, %v1774
      %v1776 = vpop.f32.mrf.mxu0
      %1777 = vmatprep.mubr.bf16.mxu0 0
      %1778 = vmatmul.mubr.bf16.gmra.mxu0 %v454
      %v1779 = vpop.f32.mrf.mxu0
      %v1780 = vadd.f32 0.0, %v1779
      %v1781 = vpop.f32.mrf.mxu0
      %v1782 = vpop.f32.mrf.mxu0
      %v1783 = vadd.f32 0.0, %v1782
      %v1784 = vpop.f32.mrf.mxu0
      %1785 = vmatprep.mubr.bf16.mxu0 0
      %1786 = vmatmul.mubr.bf16.gmra.mxu0 %v455
      %v1787 = vpop.f32.mrf.mxu0
      %v1788 = vadd.f32 0.0, %v1787
      %v1789 = vpop.f32.mrf.mxu0
      %v1790 = vpop.f32.mrf.mxu0
      %v1791 = vadd.f32 0.0, %v1790
      %v1792 = vpop.f32.mrf.mxu0
      %1793 = vdwg.mxu0
      %v1794 = vld [vmem:[%s858] sm:$0xff]
      %v1795 = vld [vmem:[%s858 + $0x8] sm:$0xff]
      %v1796 = vld [vmem:[%s858 + $0x10] sm:$0xff]
      %v1797 = vld [vmem:[%s858 + $0x18] sm:$0xff]
      %v1798 = vld [vmem:[%s858 + $0x20] sm:$0xff]
      %v1799 = vld [vmem:[%s858 + $0x28] sm:$0xff]
      %v1800 = vld [vmem:[%s858 + $0x30] sm:$0xff]
      %v1801 = vld [vmem:[%s858 + $0x38] sm:$0xff]
      %v1802 = vld [vmem:[%s858 + $0x40] sm:$0xff]
      %v1803 = vld [vmem:[%s858 + $0x48] sm:$0xff]
      %v1804 = vld [vmem:[%s858 + $0x50] sm:$0xff]
      %v1805 = vld [vmem:[%s858 + $0x58] sm:$0xff]
      %v1806 = vld [vmem:[%s858 + $0x60] sm:$0xff]
      %v1807 = vld [vmem:[%s858 + $0x68] sm:$0xff]
      %v1808 = vld [vmem:[%s858 + $0x70] sm:$0xff]
      %v1809 = vld [vmem:[%s858 + $0x78] sm:$0xff]
      %v1810 = vmul.f32 %v1547, 0.25
      %v1811 = vmul.f32 %v1550, 0.25
      %v1812 = vmul.f32 %v1555, 0.25
      %v1813 = vmul.f32 %v1558, 0.25
      %v1814 = vmul.f32 %v1563, 0.25
      %v1815 = vmul.f32 %v1566, 0.25
      %v1816 = vmul.f32 %v1571, 0.25
      %v1817 = vmul.f32 %v1574, 0.25
      %v1818 = vmul.f32 %v1579, 0.25
      %v1819 = vmul.f32 %v1582, 0.25
      %v1820 = vmul.f32 %v1587, 0.25
      %v1821 = vmul.f32 %v1590, 0.25
      %v1822 = vmul.f32 %v1595, 0.25
      %v1823 = vmul.f32 %v1598, 0.25
      %v1824 = vmul.f32 %v1603, 0.25
      %v1825 = vmul.f32 %v1606, 0.25
      %v1826 = vadd.f32 %v1794, %v1810
      %v1827 = vadd.f32 %v1795, %v1811
      %v1828 = vadd.f32 %v1796, %v1812
      %v1829 = vadd.f32 %v1797, %v1813
      %v1830 = vadd.f32 %v1798, %v1814
      %v1831 = vadd.f32 %v1799, %v1815
      %v1832 = vadd.f32 %v1800, %v1816
      %v1833 = vadd.f32 %v1801, %v1817
      %v1834 = vadd.f32 %v1802, %v1818
      %v1835 = vadd.f32 %v1803, %v1819
      %v1836 = vadd.f32 %v1804, %v1820
      %v1837 = vadd.f32 %v1805, %v1821
      %v1838 = vadd.f32 %v1806, %v1822
      %v1839 = vadd.f32 %v1807, %v1823
      %v1840 = vadd.f32 %v1808, %v1824
      %v1841 = vadd.f32 %v1809, %v1825
      %1842 = vst.msk [vmem:[%s858] sm:$0xff] %vm859, %v1826
      %1843 = vst.msk [vmem:[%s858 + $0x8] sm:$0xff] %vm859, %v1827
      %1844 = vst.msk [vmem:[%s858 + $0x10] sm:$0xff] %vm859, %v1828
      %1845 = vst.msk [vmem:[%s858 + $0x18] sm:$0xff] %vm859, %v1829
      %1846 = vst.msk [vmem:[%s858 + $0x20] sm:$0xff] %vm859, %v1830
      %1847 = vst.msk [vmem:[%s858 + $0x28] sm:$0xff] %vm859, %v1831
      %1848 = vst.msk [vmem:[%s858 + $0x30] sm:$0xff] %vm859, %v1832
      %1849 = vst.msk [vmem:[%s858 + $0x38] sm:$0xff] %vm859, %v1833
      %1850 = vst.msk [vmem:[%s858 + $0x40] sm:$0xff] %vm859, %v1834
      %1851 = vst.msk [vmem:[%s858 + $0x48] sm:$0xff] %vm859, %v1835
      %1852 = vst.msk [vmem:[%s858 + $0x50] sm:$0xff] %vm859, %v1836
      %1853 = vst.msk [vmem:[%s858 + $0x58] sm:$0xff] %vm859, %v1837
      %1854 = vst.msk [vmem:[%s858 + $0x60] sm:$0xff] %vm859, %v1838
      %1855 = vst.msk [vmem:[%s858 + $0x68] sm:$0xff] %vm859, %v1839
      %1856 = vst.msk [vmem:[%s858 + $0x70] sm:$0xff] %vm859, %v1840
      %1857 = vst.msk [vmem:[%s858 + $0x78] sm:$0xff] %vm859, %v1841
      %v1858 = vld [vmem:[%s909] sm:$0xff]
      %v1859 = vld [vmem:[%s909 + $0x8] sm:$0xff]
      %v1860 = vld [vmem:[%s909 + $0x10] sm:$0xff]
      %v1861 = vld [vmem:[%s909 + $0x18] sm:$0xff]
      %v1862 = vld [vmem:[%s909 + $0x20] sm:$0xff]
      %v1863 = vld [vmem:[%s909 + $0x28] sm:$0xff]
      %v1864 = vld [vmem:[%s909 + $0x30] sm:$0xff]
      %v1865 = vld [vmem:[%s909 + $0x38] sm:$0xff]
      %v1866 = vld [vmem:[%s909 + $0x40] sm:$0xff]
      %v1867 = vld [vmem:[%s909 + $0x48] sm:$0xff]
      %v1868 = vld [vmem:[%s909 + $0x50] sm:$0xff]
      %v1869 = vld [vmem:[%s909 + $0x58] sm:$0xff]
      %v1870 = vld [vmem:[%s909 + $0x60] sm:$0xff]
      %v1871 = vld [vmem:[%s909 + $0x68] sm:$0xff]
      %v1872 = vld [vmem:[%s909 + $0x70] sm:$0xff]
      %v1873 = vld [vmem:[%s909 + $0x78] sm:$0xff]
      %v1874 = vld [vmem:[%s909 + $0x80] sm:$0xff]
      %v1875 = vld [vmem:[%s909 + $0x88] sm:$0xff]
      %v1876 = vld [vmem:[%s909 + $0x90] sm:$0xff]
      %v1877 = vld [vmem:[%s909 + $0x98] sm:$0xff]
      %v1878 = vld [vmem:[%s909 + $0xa0] sm:$0xff]
      %v1879 = vld [vmem:[%s909 + $0xa8] sm:$0xff]
      %v1880 = vld [vmem:[%s909 + $0xb0] sm:$0xff]
      %v1881 = vld [vmem:[%s909 + $0xb8] sm:$0xff]
      %v1882 = vld [vmem:[%s909 + $0xc0] sm:$0xff]
      %v1883 = vld [vmem:[%s909 + $0xc8] sm:$0xff]
      %v1884 = vld [vmem:[%s909 + $0xd0] sm:$0xff]
      %v1885 = vld [vmem:[%s909 + $0xd8] sm:$0xff]
      %v1886 = vld [vmem:[%s909 + $0xe0] sm:$0xff]
      %v1887 = vld [vmem:[%s909 + $0xe8] sm:$0xff]
      %v1888 = vld [vmem:[%s909 + $0xf0] sm:$0xff]
      %v1889 = vld [vmem:[%s909 + $0xf8] sm:$0xff]
      %v1890 = vmul.f32 %v1668, 0.25
      %v1891 = vmul.f32 %v1671, 0.25
      %v1892 = vmul.f32 %v1676, 0.25
      %v1893 = vmul.f32 %v1679, 0.25
      %v1894 = vmul.f32 %v1684, 0.25
      %v1895 = vmul.f32 %v1687, 0.25
      %v1896 = vmul.f32 %v1692, 0.25
      %v1897 = vmul.f32 %v1695, 0.25
      %v1898 = vmul.f32 %v1700, 0.25
      %v1899 = vmul.f32 %v1703, 0.25
      %v1900 = vmul.f32 %v1708, 0.25
      %v1901 = vmul.f32 %v1711, 0.25
      %v1902 = vmul.f32 %v1716, 0.25
      %v1903 = vmul.f32 %v1719, 0.25
      %v1904 = vmul.f32 %v1724, 0.25
      %v1905 = vmul.f32 %v1727, 0.25
      %v1906 = vmul.f32 %v1732, 0.25
      %v1907 = vmul.f32 %v1735, 0.25
      %v1908 = vmul.f32 %v1740, 0.25
      %v1909 = vmul.f32 %v1743, 0.25
      %v1910 = vmul.f32 %v1748, 0.25
      %v1911 = vmul.f32 %v1751, 0.25
      %v1912 = vmul.f32 %v1756, 0.25
      %v1913 = vmul.f32 %v1759, 0.25
      %v1914 = vmul.f32 %v1764, 0.25
      %v1915 = vmul.f32 %v1767, 0.25
      %v1916 = vmul.f32 %v1772, 0.25
      %v1917 = vmul.f32 %v1775, 0.25
      %v1918 = vmul.f32 %v1780, 0.25
      %v1919 = vmul.f32 %v1783, 0.25
      %v1920 = vmul.f32 %v1788, 0.25
      %v1921 = vmul.f32 %v1791, 0.25
      %v1922 = vadd.f32 %v1858, %v1890
      %v1923 = vadd.f32 %v1859, %v1891
      %v1924 = vadd.f32 %v1860, %v1892
      %v1925 = vadd.f32 %v1861, %v1893
      %v1926 = vadd.f32 %v1862, %v1894
      %v1927 = vadd.f32 %v1863, %v1895
      %v1928 = vadd.f32 %v1864, %v1896
      %v1929 = vadd.f32 %v1865, %v1897
      %v1930 = vadd.f32 %v1866, %v1898
      %v1931 = vadd.f32 %v1867, %v1899
      %v1932 = vadd.f32 %v1868, %v1900
      %v1933 = vadd.f32 %v1869, %v1901
      %v1934 = vadd.f32 %v1870, %v1902
      %v1935 = vadd.f32 %v1871, %v1903
      %v1936 = vadd.f32 %v1872, %v1904
      %v1937 = vadd.f32 %v1873, %v1905
      %v1938 = vadd.f32 %v1874, %v1906
      %v1939 = vadd.f32 %v1875, %v1907
      %v1940 = vadd.f32 %v1876, %v1908
      %v1941 = vadd.f32 %v1877, %v1909
      %v1942 = vadd.f32 %v1878, %v1910
      %v1943 = vadd.f32 %v1879, %v1911
      %v1944 = vadd.f32 %v1880, %v1912
      %v1945 = vadd.f32 %v1881, %v1913
      %v1946 = vadd.f32 %v1882, %v1914
      %v1947 = vadd.f32 %v1883, %v1915
      %v1948 = vadd.f32 %v1884, %v1916
      %v1949 = vadd.f32 %v1885, %v1917
      %v1950 = vadd.f32 %v1886, %v1918
      %v1951 = vadd.f32 %v1887, %v1919
      %v1952 = vadd.f32 %v1888, %v1920
      %v1953 = vadd.f32 %v1889, %v1921
      %1954 = vst.msk [vmem:[%s909] sm:$0xff] %vm859, %v1922
      %1955 = vst.msk [vmem:[%s909 + $0x8] sm:$0xff] %vm859, %v1923
      %1956 = vst.msk [vmem:[%s909 + $0x10] sm:$0xff] %vm859, %v1924
      %1957 = vst.msk [vmem:[%s909 + $0x18] sm:$0xff] %vm859, %v1925
      %1958 = vst.msk [vmem:[%s909 + $0x20] sm:$0xff] %vm859, %v1926
      %1959 = vst.msk [vmem:[%s909 + $0x28] sm:$0xff] %vm859, %v1927
      %1960 = vst.msk [vmem:[%s909 + $0x30] sm:$0xff] %vm859, %v1928
      %1961 = vst.msk [vmem:[%s909 + $0x38] sm:$0xff] %vm859, %v1929
      %1962 = vst.msk [vmem:[%s909 + $0x40] sm:$0xff] %vm859, %v1930
      %1963 = vst.msk [vmem:[%s909 + $0x48] sm:$0xff] %vm859, %v1931
      %1964 = vst.msk [vmem:[%s909 + $0x50] sm:$0xff] %vm859, %v1932
      %1965 = vst.msk [vmem:[%s909 + $0x58] sm:$0xff] %vm859, %v1933
      %1966 = vst.msk [vmem:[%s909 + $0x60] sm:$0xff] %vm859, %v1934
      %1967 = vst.msk [vmem:[%s909 + $0x68] sm:$0xff] %vm859, %v1935
      %1968 = vst.msk [vmem:[%s909 + $0x70] sm:$0xff] %vm859, %v1936
      %1969 = vst.msk [vmem:[%s909 + $0x78] sm:$0xff] %vm859, %v1937
      %1970 = vst.msk [vmem:[%s909 + $0x80] sm:$0xff] %vm859, %v1938
      %1971 = vst.msk [vmem:[%s909 + $0x88] sm:$0xff] %vm859, %v1939
      %1972 = vst.msk [vmem:[%s909 + $0x90] sm:$0xff] %vm859, %v1940
      %1973 = vst.msk [vmem:[%s909 + $0x98] sm:$0xff] %vm859, %v1941
      %1974 = vst.msk [vmem:[%s909 + $0xa0] sm:$0xff] %vm859, %v1942
      %1975 = vst.msk [vmem:[%s909 + $0xa8] sm:$0xff] %vm859, %v1943
      %1976 = vst.msk [vmem:[%s909 + $0xb0] sm:$0xff] %vm859, %v1944
      %1977 = vst.msk [vmem:[%s909 + $0xb8] sm:$0xff] %vm859, %v1945
      %1978 = vst.msk [vmem:[%s909 + $0xc0] sm:$0xff] %vm859, %v1946
      %1979 = vst.msk [vmem:[%s909 + $0xc8] sm:$0xff] %vm859, %v1947
      %1980 = vst.msk [vmem:[%s909 + $0xd0] sm:$0xff] %vm859, %v1948
      %1981 = vst.msk [vmem:[%s909 + $0xd8] sm:$0xff] %vm859, %v1949
      %1982 = vst.msk [vmem:[%s909 + $0xe0] sm:$0xff] %vm859, %v1950
      %1983 = vst.msk [vmem:[%s909 + $0xe8] sm:$0xff] %vm859, %v1951
      %1984 = vst.msk [vmem:[%s909 + $0xf0] sm:$0xff] %vm859, %v1952
      %1985 = vst.msk [vmem:[%s909 + $0xf8] sm:$0xff] %vm859, %v1953
      %p1986 = scmp.eq.s32.totalorder %s21, 3
      // Predicated region
      $region49: #{_bpr_forward_device.1} parent=47 // pred_check
        %p1987 = pneg %p1986
      $region50: #{_bpr_forward_device.1} parent=47 // pred_check_branch
        %1989 = sbr.rel (%p1987) target = $region52
      $region51: #{_bpr_forward_device.1} parent=47 // pred_region
        %v1990 = vld [vmem:[%s4] sm:$0xff]
        %v1991 = vld [vmem:[%s4 + $0x8] sm:$0xff]
        %v1992 = vld [vmem:[%s4 + $0x10] sm:$0xff]
        %v1993 = vld [vmem:[%s4 + $0x18] sm:$0xff]
        %v1994 = vld [vmem:[%s4 + $0x20] sm:$0xff]
        %v1995 = vld [vmem:[%s4 + $0x28] sm:$0xff]
        %v1996 = vld [vmem:[%s4 + $0x30] sm:$0xff]
        %v1997 = vld [vmem:[%s4 + $0x38] sm:$0xff]
        %v1998 = vpack.c.bf16 %v1991, %v1990
        %v1999 = vpack.c.bf16 %v1993, %v1992
        %v2000 = vpack.c.bf16 %v1995, %v1994
        %v2001 = vpack.c.bf16 %v1997, %v1996
        %v2002 = vld [vmem:[%s5] sm:$0x1]
        %v2003 = vld [vmem:[%s6] sm:$0x1]
        %v2004 = vld [vmem:[%s9] sm:$0xff]
        %v2005 = vld [vmem:[%s9 + $0x8] sm:$0xff]
        %v2006 = vld [vmem:[%s9 + $0x10] sm:$0xff]
        %v2007 = vld [vmem:[%s9 + $0x18] sm:$0xff]
        %v2008 = vld [vmem:[%s9 + $0x20] sm:$0xff]
        %v2009 = vld [vmem:[%s9 + $0x28] sm:$0xff]
        %v2010 = vld [vmem:[%s9 + $0x30] sm:$0xff]
        %v2011 = vld [vmem:[%s9 + $0x38] sm:$0xff]
        %v2012 = vld [vmem:[%s9 + $0x40] sm:$0xff]
        %v2013 = vld [vmem:[%s9 + $0x48] sm:$0xff]
        %v2014 = vld [vmem:[%s9 + $0x50] sm:$0xff]
        %v2015 = vld [vmem:[%s9 + $0x58] sm:$0xff]
        %v2016 = vld [vmem:[%s9 + $0x60] sm:$0xff]
        %v2017 = vld [vmem:[%s9 + $0x68] sm:$0xff]
        %v2018 = vld [vmem:[%s9 + $0x70] sm:$0xff]
        %v2019 = vld [vmem:[%s9 + $0x78] sm:$0xff]
        %v2020 = vld [vmem:[%s9 + $0x80] sm:$0xff]
        %v2021 = vld [vmem:[%s9 + $0x88] sm:$0xff]
        %v2022 = vld [vmem:[%s9 + $0x90] sm:$0xff]
        %v2023 = vld [vmem:[%s9 + $0x98] sm:$0xff]
        %v2024 = vld [vmem:[%s9 + $0xa0] sm:$0xff]
        %v2025 = vld [vmem:[%s9 + $0xa8] sm:$0xff]
        %v2026 = vld [vmem:[%s9 + $0xb0] sm:$0xff]
        %v2027 = vld [vmem:[%s9 + $0xb8] sm:$0xff]
        %v2028 = vld [vmem:[%s9 + $0xc0] sm:$0xff]
        %v2029 = vld [vmem:[%s9 + $0xc8] sm:$0xff]
        %v2030 = vld [vmem:[%s9 + $0xd0] sm:$0xff]
        %v2031 = vld [vmem:[%s9 + $0xd8] sm:$0xff]
        %v2032 = vld [vmem:[%s9 + $0xe0] sm:$0xff]
        %v2033 = vld [vmem:[%s9 + $0xe8] sm:$0xff]
        %v2034 = vld [vmem:[%s9 + $0xf0] sm:$0xff]
        %v2035 = vld [vmem:[%s9 + $0xf8] sm:$0xff]
        %v2036 = vld [vmem:[%s9 + $0x100] sm:$0xff]
        %v2037 = vld [vmem:[%s9 + $0x108] sm:$0xff]
        %v2038 = vld [vmem:[%s9 + $0x110] sm:$0xff]
        %v2039 = vld [vmem:[%s9 + $0x118] sm:$0xff]
        %v2040 = vld [vmem:[%s9 + $0x120] sm:$0xff]
        %v2041 = vld [vmem:[%s9 + $0x128] sm:$0xff]
        %v2042 = vld [vmem:[%s9 + $0x130] sm:$0xff]
        %v2043 = vld [vmem:[%s9 + $0x138] sm:$0xff]
        %v2044 = vld [vmem:[%s9 + $0x140] sm:$0xff]
        %v2045 = vld [vmem:[%s9 + $0x148] sm:$0xff]
        %v2046 = vld [vmem:[%s9 + $0x150] sm:$0xff]
        %v2047 = vld [vmem:[%s9 + $0x158] sm:$0xff]
        %v2048 = vld [vmem:[%s9 + $0x160] sm:$0xff]
        %v2049 = vld [vmem:[%s9 + $0x168] sm:$0xff]
        %v2050 = vld [vmem:[%s9 + $0x170] sm:$0xff]
        %v2051 = vld [vmem:[%s9 + $0x178] sm:$0xff]
        %v2052 = vld [vmem:[%s9 + $0x180] sm:$0xff]
        %v2053 = vld [vmem:[%s9 + $0x188] sm:$0xff]
        %v2054 = vld [vmem:[%s9 + $0x190] sm:$0xff]
        %v2055 = vld [vmem:[%s9 + $0x198] sm:$0xff]
        %v2056 = vld [vmem:[%s9 + $0x1a0] sm:$0xff]
        %v2057 = vld [vmem:[%s9 + $0x1a8] sm:$0xff]
        %v2058 = vld [vmem:[%s9 + $0x1b0] sm:$0xff]
        %v2059 = vld [vmem:[%s9 + $0x1b8] sm:$0xff]
        %v2060 = vld [vmem:[%s9 + $0x1c0] sm:$0xff]
        %v2061 = vld [vmem:[%s9 + $0x1c8] sm:$0xff]
        %v2062 = vld [vmem:[%s9 + $0x1d0] sm:$0xff]
        %v2063 = vld [vmem:[%s9 + $0x1d8] sm:$0xff]
        %v2064 = vld [vmem:[%s9 + $0x1e0] sm:$0xff]
        %v2065 = vld [vmem:[%s9 + $0x1e8] sm:$0xff]
        %v2066 = vld [vmem:[%s9 + $0x1f0] sm:$0xff]
        %v2067 = vld [vmem:[%s9 + $0x1f8] sm:$0xff]
        %v2068 = vld [vmem:[%s1] sm:$0xff]
        %v2069 = vld [vmem:[%s1 + $0x8] sm:$0xff]
        %v2070 = vld [vmem:[%s1 + $0x10] sm:$0xff]
        %v2071 = vld [vmem:[%s1 + $0x18] sm:$0xff]
        %v2072 = vld [vmem:[%s1 + $0x20] sm:$0xff]
        %v2073 = vld [vmem:[%s1 + $0x28] sm:$0xff]
        %v2074 = vld [vmem:[%s1 + $0x30] sm:$0xff]
        %v2075 = vld [vmem:[%s1 + $0x38] sm:$0xff]
        %v2076 = vld [vmem:[%s1 + $0x40] sm:$0xff]
        %v2077 = vld [vmem:[%s1 + $0x48] sm:$0xff]
        %v2078 = vld [vmem:[%s1 + $0x50] sm:$0xff]
        %v2079 = vld [vmem:[%s1 + $0x58] sm:$0xff]
        %v2080 = vld [vmem:[%s1 + $0x60] sm:$0xff]
        %v2081 = vld [vmem:[%s1 + $0x68] sm:$0xff]
        %v2082 = vld [vmem:[%s1 + $0x70] sm:$0xff]
        %v2083 = vld [vmem:[%s1 + $0x78] sm:$0xff]
        %v2084 = vpack.c.bf16 %v2005, %v2004
        %v2085 = vpack.c.bf16 %v2007, %v2006
        %v2086 = vpack.c.bf16 %v2009, %v2008
        %v2087 = vpack.c.bf16 %v2011, %v2010
        %v2088 = vpack.c.bf16 %v2013, %v2012
        %v2089 = vpack.c.bf16 %v2015, %v2014
        %v2090 = vpack.c.bf16 %v2017, %v2016
        %v2091 = vpack.c.bf16 %v2019, %v2018
        %v2092 = vpack.c.bf16 %v2021, %v2020
        %v2093 = vpack.c.bf16 %v2023, %v2022
        %v2094 = vpack.c.bf16 %v2025, %v2024
        %v2095 = vpack.c.bf16 %v2027, %v2026
        %v2096 = vpack.c.bf16 %v2029, %v2028
        %v2097 = vpack.c.bf16 %v2031, %v2030
        %v2098 = vpack.c.bf16 %v2033, %v2032
        %v2099 = vpack.c.bf16 %v2035, %v2034
        %v2100 = vpack.c.bf16 %v2037, %v2036
        %v2101 = vpack.c.bf16 %v2039, %v2038
        %v2102 = vpack.c.bf16 %v2041, %v2040
        %v2103 = vpack.c.bf16 %v2043, %v2042
        %v2104 = vpack.c.bf16 %v2045, %v2044
        %v2105 = vpack.c.bf16 %v2047, %v2046
        %v2106 = vpack.c.bf16 %v2049, %v2048
        %v2107 = vpack.c.bf16 %v2051, %v2050
        %v2108 = vpack.c.bf16 %v2053, %v2052
        %v2109 = vpack.c.bf16 %v2055, %v2054
        %v2110 = vpack.c.bf16 %v2057, %v2056
        %v2111 = vpack.c.bf16 %v2059, %v2058
        %v2112 = vpack.c.bf16 %v2061, %v2060
        %v2113 = vpack.c.bf16 %v2063, %v2062
        %v2114 = vpack.c.bf16 %v2065, %v2064
        %v2115 = vpack.c.bf16 %v2067, %v2066
        %v2117 = vlaneseq
        %v2118 = vshrl.u32 %v2117, 7
        %v2119 = vsub.s32 0, %v2118
        %v2120 = vrot.slane %v2002, %v2119
        %v2123 = vsel %vm859, %v2084, 0
        %v2126 = vsel %vm859, %v2085, 0
        %v2129 = vsel %vm859, %v2086, 0
        %v2132 = vsel %vm859, %v2087, 0
        %v2135 = vsel %vm859, %v2088, 0
        %v2138 = vsel %vm859, %v2089, 0
        %v2141 = vsel %vm859, %v2090, 0
        %v2144 = vsel %vm859, %v2091, 0
        %v2147 = vsel %vm859, %v2092, 0
        %v2150 = vsel %vm859, %v2093, 0
        %v2153 = vsel %vm859, %v2094, 0
        %v2156 = vsel %vm859, %v2095, 0
        %v2159 = vsel %vm859, %v2096, 0
        %v2162 = vsel %vm859, %v2097, 0
        %v2165 = vsel %vm859, %v2098, 0
        %v2168 = vsel %vm859, %v2099, 0
        %v2171 = vsel %vm859, %v2100, 0
        %v2174 = vsel %vm859, %v2101, 0
        %v2177 = vsel %vm859, %v2102, 0
        %v2180 = vsel %vm859, %v2103, 0
        %v2183 = vsel %vm859, %v2104, 0
        %v2186 = vsel %vm859, %v2105, 0
        %v2189 = vsel %vm859, %v2106, 0
        %v2192 = vsel %vm859, %v2107, 0
        %v2195 = vsel %vm859, %v2108, 0
        %v2198 = vsel %vm859, %v2109, 0
        %v2201 = vsel %vm859, %v2110, 0
        %v2204 = vsel %vm859, %v2111, 0
        %v2207 = vsel %vm859, %v2112, 0
        %v2210 = vsel %vm859, %v2113, 0
        %v2213 = vsel %vm859, %v2114, 0
        %v2216 = vsel %vm859, %v2115, 0
        %2218 = vmatprep.subr.bf16.mxu0 0
        %2219 = vmatpush1.bf16.msra.mxu0 0
        %2220 = vmatprep.subr.bf16.mxu0 0
        %2221 = vmatpush1.bf16.msra.mxu0 0
        %2222 = vmatprep.subr.bf16.mxu0 0
        %2223 = vmatpush1.bf16.msra.mxu0 0
        %2224 = vmatprep.subr.bf16.mxu0 0
        %2225 = vmatpush1.bf16.msra.mxu0 0
        %2226 = vmatprep.subr.bf16.mxu0 0
        %2227 = vmatpush1.bf16.msra.mxu0 %v2001
        %2228 = vmatprep.subr.bf16.mxu0 0
        %2229 = vmatpush1.bf16.msra.mxu0 %v2000
        %2230 = vmatprep.subr.bf16.mxu0 0
        %2231 = vmatpush1.bf16.msra.mxu0 %v1999
        %2232 = vmatprep.subr.bf16.mxu0 0
        %2233 = vmatpush1.bf16.msra.mxu0 %v1998
        %2234 = vmatprep.subr.bf16.mxu0 0
        %2235 = vmatpush2.bf16.msra.mxu0 0
        %2236 = vmatprep.subr.bf16.mxu0 0
        %2237 = vmatpush2.bf16.msra.mxu0 0
        %2238 = vmatprep.subr.bf16.mxu0 0
        %2239 = vmatpush2.bf16.msra.mxu0 0
        %2240 = vmatprep.subr.bf16.mxu0 0
        %2241 = vmatpush2.bf16.msra.mxu0 0
        %2242 = vmatprep.subr.bf16.mxu0 0
        %2243 = vmatpush2.bf16.msra.mxu0 0
        %2244 = vmatprep.subr.bf16.mxu0 0
        %2245 = vmatpush2.bf16.msra.mxu0 0
        %2246 = vmatprep.subr.bf16.mxu0 0
        %2247 = vmatpush2.bf16.msra.mxu0 0
        %2248 = vmatprep.subr.bf16.mxu0 0
        %2249 = vmatpush2.bf16.msra.mxu0 0
        %2250 = vmatprep.mubr.bf16.mxu0 0
        %2251 = vmatmul.mubr.bf16.gmra.mxu0 %v2123
        %v2252 = vpop.f32.mrf.mxu0
        %v2253 = vadd.f32 %v2120, %v2252
        %v2254 = vpop.f32.mrf.mxu0
        %v2255 = vpop.f32.mrf.mxu0
        %v2256 = vadd.f32 %v2120, %v2255
        %v2257 = vpop.f32.mrf.mxu0
        %2258 = vmatprep.mubr.bf16.mxu0 0
        %2259 = vmatmul.mubr.bf16.gmra.mxu0 %v2126
        %v2260 = vpop.f32.mrf.mxu0
        %v2261 = vadd.f32 %v2120, %v2260
        %v2262 = vpop.f32.mrf.mxu0
        %v2263 = vpop.f32.mrf.mxu0
        %v2264 = vadd.f32 %v2120, %v2263
        %v2265 = vpop.f32.mrf.mxu0
        %2266 = vmatprep.mubr.bf16.mxu0 0
        %2267 = vmatmul.mubr.bf16.gmra.mxu0 %v2129
        %v2268 = vpop.f32.mrf.mxu0
        %v2269 = vadd.f32 %v2120, %v2268
        %v2270 = vpop.f32.mrf.mxu0
        %v2271 = vpop.f32.mrf.mxu0
        %v2272 = vadd.f32 %v2120, %v2271
        %v2273 = vpop.f32.mrf.mxu0
        %2274 = vmatprep.mubr.bf16.mxu0 0
        %2275 = vmatmul.mubr.bf16.gmra.mxu0 %v2132
        %v2276 = vpop.f32.mrf.mxu0
        %v2277 = vadd.f32 %v2120, %v2276
        %v2278 = vpop.f32.mrf.mxu0
        %v2279 = vpop.f32.mrf.mxu0
        %v2280 = vadd.f32 %v2120, %v2279
        %v2281 = vpop.f32.mrf.mxu0
        %2282 = vmatprep.mubr.bf16.mxu0 0
        %2283 = vmatmul.mubr.bf16.gmra.mxu0 %v2135
        %v2284 = vpop.f32.mrf.mxu0
        %v2285 = vadd.f32 %v2120, %v2284
        %v2286 = vpop.f32.mrf.mxu0
        %v2287 = vpop.f32.mrf.mxu0
        %v2288 = vadd.f32 %v2120, %v2287
        %v2289 = vpop.f32.mrf.mxu0
        %2290 = vmatprep.mubr.bf16.mxu0 0
        %2291 = vmatmul.mubr.bf16.gmra.mxu0 %v2138
        %v2292 = vpop.f32.mrf.mxu0
        %v2293 = vadd.f32 %v2120, %v2292
        %v2294 = vpop.f32.mrf.mxu0
        %v2295 = vpop.f32.mrf.mxu0
        %v2296 = vadd.f32 %v2120, %v2295
        %v2297 = vpop.f32.mrf.mxu0
        %2298 = vmatprep.mubr.bf16.mxu0 0
        %2299 = vmatmul.mubr.bf16.gmra.mxu0 %v2141
        %v2300 = vpop.f32.mrf.mxu0
        %v2301 = vadd.f32 %v2120, %v2300
        %v2302 = vpop.f32.mrf.mxu0
        %v2303 = vpop.f32.mrf.mxu0
        %v2304 = vadd.f32 %v2120, %v2303
        %v2305 = vpop.f32.mrf.mxu0
        %2306 = vmatprep.mubr.bf16.mxu0 0
        %2307 = vmatmul.mubr.bf16.gmra.mxu0 %v2144
        %v2308 = vpop.f32.mrf.mxu0
        %v2309 = vadd.f32 %v2120, %v2308
        %v2310 = vpop.f32.mrf.mxu0
        %v2311 = vpop.f32.mrf.mxu0
        %v2312 = vadd.f32 %v2120, %v2311
        %v2313 = vpop.f32.mrf.mxu0
        %2314 = vmatprep.mubr.bf16.mxu0 0
        %2315 = vmatmul.mubr.bf16.gmra.mxu0 %v2147
        %v2316 = vpop.f32.mrf.mxu0
        %v2317 = vadd.f32 %v2120, %v2316
        %v2318 = vpop.f32.mrf.mxu0
        %v2319 = vpop.f32.mrf.mxu0
        %v2320 = vadd.f32 %v2120, %v2319
        %v2321 = vpop.f32.mrf.mxu0
        %2322 = vmatprep.mubr.bf16.mxu0 0
        %2323 = vmatmul.mubr.bf16.gmra.mxu0 %v2150
        %v2324 = vpop.f32.mrf.mxu0
        %v2325 = vadd.f32 %v2120, %v2324
        %v2326 = vpop.f32.mrf.mxu0
        %v2327 = vpop.f32.mrf.mxu0
        %v2328 = vadd.f32 %v2120, %v2327
        %v2329 = vpop.f32.mrf.mxu0
        %2330 = vmatprep.mubr.bf16.mxu0 0
        %2331 = vmatmul.mubr.bf16.gmra.mxu0 %v2153
        %v2332 = vpop.f32.mrf.mxu0
        %v2333 = vadd.f32 %v2120, %v2332
        %v2334 = vpop.f32.mrf.mxu0
        %v2335 = vpop.f32.mrf.mxu0
        %v2336 = vadd.f32 %v2120, %v2335
        %v2337 = vpop.f32.mrf.mxu0
        %2338 = vmatprep.mubr.bf16.mxu0 0
        %2339 = vmatmul.mubr.bf16.gmra.mxu0 %v2156
        %v2340 = vpop.f32.mrf.mxu0
        %v2341 = vadd.f32 %v2120, %v2340
        %v2342 = vpop.f32.mrf.mxu0
        %v2343 = vpop.f32.mrf.mxu0
        %v2344 = vadd.f32 %v2120, %v2343
        %v2345 = vpop.f32.mrf.mxu0
        %2346 = vmatprep.mubr.bf16.mxu0 0
        %2347 = vmatmul.mubr.bf16.gmra.mxu0 %v2159
        %v2348 = vpop.f32.mrf.mxu0
        %v2349 = vadd.f32 %v2120, %v2348
        %v2350 = vpop.f32.mrf.mxu0
        %v2351 = vpop.f32.mrf.mxu0
        %v2352 = vadd.f32 %v2120, %v2351
        %v2353 = vpop.f32.mrf.mxu0
        %2354 = vmatprep.mubr.bf16.mxu0 0
        %2355 = vmatmul.mubr.bf16.gmra.mxu0 %v2162
        %v2356 = vpop.f32.mrf.mxu0
        %v2357 = vadd.f32 %v2120, %v2356
        %v2358 = vpop.f32.mrf.mxu0
        %v2359 = vpop.f32.mrf.mxu0
        %v2360 = vadd.f32 %v2120, %v2359
        %v2361 = vpop.f32.mrf.mxu0
        %2362 = vmatprep.mubr.bf16.mxu0 0
        %2363 = vmatmul.mubr.bf16.gmra.mxu0 %v2165
        %v2364 = vpop.f32.mrf.mxu0
        %v2365 = vadd.f32 %v2120, %v2364
        %v2366 = vpop.f32.mrf.mxu0
        %v2367 = vpop.f32.mrf.mxu0
        %v2368 = vadd.f32 %v2120, %v2367
        %v2369 = vpop.f32.mrf.mxu0
        %2370 = vmatprep.mubr.bf16.mxu0 0
        %2371 = vmatmul.mubr.bf16.gmra.mxu0 %v2168
        %v2372 = vpop.f32.mrf.mxu0
        %v2373 = vadd.f32 %v2120, %v2372
        %v2374 = vpop.f32.mrf.mxu0
        %v2375 = vpop.f32.mrf.mxu0
        %v2376 = vadd.f32 %v2120, %v2375
        %v2377 = vpop.f32.mrf.mxu0
        %2378 = vmatprep.mubr.bf16.mxu0 0
        %2379 = vmatmul.mubr.bf16.gmra.mxu0 %v2171
        %v2380 = vpop.f32.mrf.mxu0
        %v2381 = vadd.f32 %v2120, %v2380
        %v2382 = vpop.f32.mrf.mxu0
        %v2383 = vpop.f32.mrf.mxu0
        %v2384 = vadd.f32 %v2120, %v2383
        %v2385 = vpop.f32.mrf.mxu0
        %2386 = vmatprep.mubr.bf16.mxu0 0
        %2387 = vmatmul.mubr.bf16.gmra.mxu0 %v2174
        %v2388 = vpop.f32.mrf.mxu0
        %v2389 = vadd.f32 %v2120, %v2388
        %v2390 = vpop.f32.mrf.mxu0
        %v2391 = vpop.f32.mrf.mxu0
        %v2392 = vadd.f32 %v2120, %v2391
        %v2393 = vpop.f32.mrf.mxu0
        %2394 = vmatprep.mubr.bf16.mxu0 0
        %2395 = vmatmul.mubr.bf16.gmra.mxu0 %v2177
        %v2396 = vpop.f32.mrf.mxu0
        %v2397 = vadd.f32 %v2120, %v2396
        %v2398 = vpop.f32.mrf.mxu0
        %v2399 = vpop.f32.mrf.mxu0
        %v2400 = vadd.f32 %v2120, %v2399
        %v2401 = vpop.f32.mrf.mxu0
        %2402 = vmatprep.mubr.bf16.mxu0 0
        %2403 = vmatmul.mubr.bf16.gmra.mxu0 %v2180
        %v2404 = vpop.f32.mrf.mxu0
        %v2405 = vadd.f32 %v2120, %v2404
        %v2406 = vpop.f32.mrf.mxu0
        %v2407 = vpop.f32.mrf.mxu0
        %v2408 = vadd.f32 %v2120, %v2407
        %v2409 = vpop.f32.mrf.mxu0
        %2410 = vmatprep.mubr.bf16.mxu0 0
        %2411 = vmatmul.mubr.bf16.gmra.mxu0 %v2183
        %v2412 = vpop.f32.mrf.mxu0
        %v2413 = vadd.f32 %v2120, %v2412
        %v2414 = vpop.f32.mrf.mxu0
        %v2415 = vpop.f32.mrf.mxu0
        %v2416 = vadd.f32 %v2120, %v2415
        %v2417 = vpop.f32.mrf.mxu0
        %2418 = vmatprep.mubr.bf16.mxu0 0
        %2419 = vmatmul.mubr.bf16.gmra.mxu0 %v2186
        %v2420 = vpop.f32.mrf.mxu0
        %v2421 = vadd.f32 %v2120, %v2420
        %v2422 = vpop.f32.mrf.mxu0
        %v2423 = vpop.f32.mrf.mxu0
        %v2424 = vadd.f32 %v2120, %v2423
        %v2425 = vpop.f32.mrf.mxu0
        %2426 = vmatprep.mubr.bf16.mxu0 0
        %2427 = vmatmul.mubr.bf16.gmra.mxu0 %v2189
        %v2428 = vpop.f32.mrf.mxu0
        %v2429 = vadd.f32 %v2120, %v2428
        %v2430 = vpop.f32.mrf.mxu0
        %v2431 = vpop.f32.mrf.mxu0
        %v2432 = vadd.f32 %v2120, %v2431
        %v2433 = vpop.f32.mrf.mxu0
        %2434 = vmatprep.mubr.bf16.mxu0 0
        %2435 = vmatmul.mubr.bf16.gmra.mxu0 %v2192
        %v2436 = vpop.f32.mrf.mxu0
        %v2437 = vadd.f32 %v2120, %v2436
        %v2438 = vpop.f32.mrf.mxu0
        %v2439 = vpop.f32.mrf.mxu0
        %v2440 = vadd.f32 %v2120, %v2439
        %v2441 = vpop.f32.mrf.mxu0
        %2442 = vmatprep.mubr.bf16.mxu0 0
        %2443 = vmatmul.mubr.bf16.gmra.mxu0 %v2195
        %v2444 = vpop.f32.mrf.mxu0
        %v2445 = vadd.f32 %v2120, %v2444
        %v2446 = vpop.f32.mrf.mxu0
        %v2447 = vpop.f32.mrf.mxu0
        %v2448 = vadd.f32 %v2120, %v2447
        %v2449 = vpop.f32.mrf.mxu0
        %2450 = vmatprep.mubr.bf16.mxu0 0
        %2451 = vmatmul.mubr.bf16.gmra.mxu0 %v2198
        %v2452 = vpop.f32.mrf.mxu0
        %v2453 = vadd.f32 %v2120, %v2452
        %v2454 = vpop.f32.mrf.mxu0
        %v2455 = vpop.f32.mrf.mxu0
        %v2456 = vadd.f32 %v2120, %v2455
        %v2457 = vpop.f32.mrf.mxu0
        %2458 = vmatprep.mubr.bf16.mxu0 0
        %2459 = vmatmul.mubr.bf16.gmra.mxu0 %v2201
        %v2460 = vpop.f32.mrf.mxu0
        %v2461 = vadd.f32 %v2120, %v2460
        %v2462 = vpop.f32.mrf.mxu0
        %v2463 = vpop.f32.mrf.mxu0
        %v2464 = vadd.f32 %v2120, %v2463
        %v2465 = vpop.f32.mrf.mxu0
        %2466 = vmatprep.mubr.bf16.mxu0 0
        %2467 = vmatmul.mubr.bf16.gmra.mxu0 %v2204
        %v2468 = vpop.f32.mrf.mxu0
        %v2469 = vadd.f32 %v2120, %v2468
        %v2470 = vpop.f32.mrf.mxu0
        %v2471 = vpop.f32.mrf.mxu0
        %v2472 = vadd.f32 %v2120, %v2471
        %v2473 = vpop.f32.mrf.mxu0
        %2474 = vmatprep.mubr.bf16.mxu0 0
        %2475 = vmatmul.mubr.bf16.gmra.mxu0 %v2207
        %v2476 = vpop.f32.mrf.mxu0
        %v2477 = vadd.f32 %v2120, %v2476
        %v2478 = vpop.f32.mrf.mxu0
        %v2479 = vpop.f32.mrf.mxu0
        %v2480 = vadd.f32 %v2120, %v2479
        %v2481 = vpop.f32.mrf.mxu0
        %2482 = vmatprep.mubr.bf16.mxu0 0
        %2483 = vmatmul.mubr.bf16.gmra.mxu0 %v2210
        %v2484 = vpop.f32.mrf.mxu0
        %v2485 = vadd.f32 %v2120, %v2484
        %v2486 = vpop.f32.mrf.mxu0
        %v2487 = vpop.f32.mrf.mxu0
        %v2488 = vadd.f32 %v2120, %v2487
        %v2489 = vpop.f32.mrf.mxu0
        %2490 = vmatprep.mubr.bf16.mxu0 0
        %2491 = vmatmul.mubr.bf16.gmra.mxu0 %v2213
        %v2492 = vpop.f32.mrf.mxu0
        %v2493 = vadd.f32 %v2120, %v2492
        %v2494 = vpop.f32.mrf.mxu0
        %v2495 = vpop.f32.mrf.mxu0
        %v2496 = vadd.f32 %v2120, %v2495
        %v2497 = vpop.f32.mrf.mxu0
        %2498 = vmatprep.mubr.bf16.mxu0 0
        %2499 = vmatmul.mubr.bf16.gmra.mxu0 %v2216
        %v2500 = vpop.f32.mrf.mxu0
        %v2501 = vadd.f32 %v2120, %v2500
        %v2502 = vpop.f32.mrf.mxu0
        %v2503 = vpop.f32.mrf.mxu0
        %v2504 = vadd.f32 %v2120, %v2503
        %v2505 = vpop.f32.mrf.mxu0
        %2506 = vdwg.mxu0
        %v2507 = vtanh.pop %v2253
        %v2508 = vtanh.pop %v2256
        %v2509 = vtanh.pop %v2261
        %v2510 = vtanh.pop %v2264
        %v2511 = vtanh.pop %v2269
        %v2512 = vtanh.pop %v2272
        %v2513 = vtanh.pop %v2277
        %v2514 = vtanh.pop %v2280
        %v2515 = vtanh.pop %v2285
        %v2516 = vtanh.pop %v2288
        %v2517 = vtanh.pop %v2293
        %v2518 = vtanh.pop %v2296
        %v2519 = vtanh.pop %v2301
        %v2520 = vtanh.pop %v2304
        %v2521 = vtanh.pop %v2309
        %v2522 = vtanh.pop %v2312
        %v2523 = vtanh.pop %v2317
        %v2524 = vtanh.pop %v2320
        %v2525 = vtanh.pop %v2325
        %v2526 = vtanh.pop %v2328
        %v2527 = vtanh.pop %v2333
        %v2528 = vtanh.pop %v2336
        %v2529 = vtanh.pop %v2341
        %v2530 = vtanh.pop %v2344
        %v2531 = vtanh.pop %v2349
        %v2532 = vtanh.pop %v2352
        %v2533 = vtanh.pop %v2357
        %v2534 = vtanh.pop %v2360
        %v2535 = vtanh.pop %v2365
        %v2536 = vtanh.pop %v2368
        %v2537 = vtanh.pop %v2373
        %v2538 = vtanh.pop %v2376
        %v2539 = vtanh.pop %v2381
        %v2540 = vtanh.pop %v2384
        %v2541 = vtanh.pop %v2389
        %v2542 = vtanh.pop %v2392
        %v2543 = vtanh.pop %v2397
        %v2544 = vtanh.pop %v2400
        %v2545 = vtanh.pop %v2405
        %v2546 = vtanh.pop %v2408
        %v2547 = vtanh.pop %v2413
        %v2548 = vtanh.pop %v2416
        %v2549 = vtanh.pop %v2421
        %v2550 = vtanh.pop %v2424
        %v2551 = vtanh.pop %v2429
        %v2552 = vtanh.pop %v2432
        %v2553 = vtanh.pop %v2437
        %v2554 = vtanh.pop %v2440
        %v2555 = vtanh.pop %v2445
        %v2556 = vtanh.pop %v2448
        %v2557 = vtanh.pop %v2453
        %v2558 = vtanh.pop %v2456
        %v2559 = vtanh.pop %v2461
        %v2560 = vtanh.pop %v2464
        %v2561 = vtanh.pop %v2469
        %v2562 = vtanh.pop %v2472
        %v2563 = vtanh.pop %v2477
        %v2564 = vtanh.pop %v2480
        %v2565 = vtanh.pop %v2485
        %v2566 = vtanh.pop %v2488
        %v2567 = vtanh.pop %v2493
        %v2568 = vtanh.pop %v2496
        %v2569 = vtanh.pop %v2501
        %v2570 = vtanh.pop %v2504
        %v2572 = vlaneseq
        %v2573 = vshrl.u32 %v2572, 7
        %v2574 = vsub.s32 0, %v2573
        %v2575 = vrot.slane %v2003, %v2574
        %v2577 = vmul.f32 %v2507, %v2575
        %v2578 = vmul.f32 %v2508, %v2575
        %v2579 = vmul.f32 %v2509, %v2575
        %v2580 = vmul.f32 %v2510, %v2575
        %v2581 = vmul.f32 %v2511, %v2575
        %v2582 = vmul.f32 %v2512, %v2575
        %v2583 = vmul.f32 %v2513, %v2575
        %v2584 = vmul.f32 %v2514, %v2575
        %v2585 = vmul.f32 %v2515, %v2575
        %v2586 = vmul.f32 %v2516, %v2575
        %v2587 = vmul.f32 %v2517, %v2575
        %v2588 = vmul.f32 %v2518, %v2575
        %v2589 = vmul.f32 %v2519, %v2575
        %v2590 = vmul.f32 %v2520, %v2575
        %v2591 = vmul.f32 %v2521, %v2575
        %v2592 = vmul.f32 %v2522, %v2575
        %v2593 = vmul.f32 %v2523, %v2575
        %v2594 = vmul.f32 %v2524, %v2575
        %v2595 = vmul.f32 %v2525, %v2575
        %v2596 = vmul.f32 %v2526, %v2575
        %v2597 = vmul.f32 %v2527, %v2575
        %v2598 = vmul.f32 %v2528, %v2575
        %v2599 = vmul.f32 %v2529, %v2575
        %v2600 = vmul.f32 %v2530, %v2575
        %v2601 = vmul.f32 %v2531, %v2575
        %v2602 = vmul.f32 %v2532, %v2575
        %v2603 = vmul.f32 %v2533, %v2575
        %v2604 = vmul.f32 %v2534, %v2575
        %v2605 = vmul.f32 %v2535, %v2575
        %v2606 = vmul.f32 %v2536, %v2575
        %v2607 = vmul.f32 %v2537, %v2575
        %v2608 = vmul.f32 %v2538, %v2575
        %v2609 = vmul.f32 %v2539, %v2575
        %v2610 = vmul.f32 %v2540, %v2575
        %v2611 = vmul.f32 %v2541, %v2575
        %v2612 = vmul.f32 %v2542, %v2575
        %v2613 = vmul.f32 %v2543, %v2575
        %v2614 = vmul.f32 %v2544, %v2575
        %v2615 = vmul.f32 %v2545, %v2575
        %v2616 = vmul.f32 %v2546, %v2575
        %v2617 = vmul.f32 %v2547, %v2575
        %v2618 = vmul.f32 %v2548, %v2575
        %v2619 = vmul.f32 %v2549, %v2575
        %v2620 = vmul.f32 %v2550, %v2575
        %v2621 = vmul.f32 %v2551, %v2575
        %v2622 = vmul.f32 %v2552, %v2575
        %v2623 = vmul.f32 %v2553, %v2575
        %v2624 = vmul.f32 %v2554, %v2575
        %v2625 = vmul.f32 %v2555, %v2575
        %v2626 = vmul.f32 %v2556, %v2575
        %v2627 = vmul.f32 %v2557, %v2575
        %v2628 = vmul.f32 %v2558, %v2575
        %v2629 = vmul.f32 %v2559, %v2575
        %v2630 = vmul.f32 %v2560, %v2575
        %v2631 = vmul.f32 %v2561, %v2575
        %v2632 = vmul.f32 %v2562, %v2575
        %v2633 = vmul.f32 %v2563, %v2575
        %v2634 = vmul.f32 %v2564, %v2575
        %v2635 = vmul.f32 %v2565, %v2575
        %v2636 = vmul.f32 %v2566, %v2575
        %v2637 = vmul.f32 %v2567, %v2575
        %v2638 = vmul.f32 %v2568, %v2575
        %v2639 = vmul.f32 %v2569, %v2575
        %v2640 = vmul.f32 %v2570, %v2575
        %v2641 = vsel %vm859, %v2577, 0.0
        %2642 = vadd.xlane.f32.xlu0 %v2641
        %v2643 = vpop.xlane.xlu0 %2642
        %v2644 = vsel %vm859, %v2578, 0.0
        %2645 = vadd.xlane.f32.xlu0 %v2644
        %v2646 = vpop.xlane.xlu0 %2645
        %v2647 = vsel %vm859, %v2579, 0.0
        %2648 = vadd.xlane.f32.xlu0 %v2647
        %v2649 = vpop.xlane.xlu0 %2648
        %v2650 = vsel %vm859, %v2580, 0.0
        %2651 = vadd.xlane.f32.xlu0 %v2650
        %v2652 = vpop.xlane.xlu0 %2651
        %v2653 = vsel %vm859, %v2581, 0.0
        %2654 = vadd.xlane.f32.xlu0 %v2653
        %v2655 = vpop.xlane.xlu0 %2654
        %v2656 = vsel %vm859, %v2582, 0.0
        %2657 = vadd.xlane.f32.xlu0 %v2656
        %v2658 = vpop.xlane.xlu0 %2657
        %v2659 = vsel %vm859, %v2583, 0.0
        %2660 = vadd.xlane.f32.xlu0 %v2659
        %v2661 = vpop.xlane.xlu0 %2660
        %v2662 = vsel %vm859, %v2584, 0.0
        %2663 = vadd.xlane.f32.xlu0 %v2662
        %v2664 = vpop.xlane.xlu0 %2663
        %v2665 = vsel %vm859, %v2585, 0.0
        %2666 = vadd.xlane.f32.xlu0 %v2665
        %v2667 = vpop.xlane.xlu0 %2666
        %v2668 = vsel %vm859, %v2586, 0.0
        %2669 = vadd.xlane.f32.xlu0 %v2668
        %v2670 = vpop.xlane.xlu0 %2669
        %v2671 = vsel %vm859, %v2587, 0.0
        %2672 = vadd.xlane.f32.xlu0 %v2671
        %v2673 = vpop.xlane.xlu0 %2672
        %v2674 = vsel %vm859, %v2588, 0.0
        %2675 = vadd.xlane.f32.xlu0 %v2674
        %v2676 = vpop.xlane.xlu0 %2675
        %v2677 = vsel %vm859, %v2589, 0.0
        %2678 = vadd.xlane.f32.xlu0 %v2677
        %v2679 = vpop.xlane.xlu0 %2678
        %v2680 = vsel %vm859, %v2590, 0.0
        %2681 = vadd.xlane.f32.xlu0 %v2680
        %v2682 = vpop.xlane.xlu0 %2681
        %v2683 = vsel %vm859, %v2591, 0.0
        %2684 = vadd.xlane.f32.xlu0 %v2683
        %v2685 = vpop.xlane.xlu0 %2684
        %v2686 = vsel %vm859, %v2592, 0.0
        %2687 = vadd.xlane.f32.xlu0 %v2686
        %v2688 = vpop.xlane.xlu0 %2687
        %v2689 = vsel %vm859, %v2593, 0.0
        %2690 = vadd.xlane.f32.xlu0 %v2689
        %v2691 = vpop.xlane.xlu0 %2690
        %v2692 = vsel %vm859, %v2594, 0.0
        %2693 = vadd.xlane.f32.xlu0 %v2692
        %v2694 = vpop.xlane.xlu0 %2693
        %v2695 = vsel %vm859, %v2595, 0.0
        %2696 = vadd.xlane.f32.xlu0 %v2695
        %v2697 = vpop.xlane.xlu0 %2696
        %v2698 = vsel %vm859, %v2596, 0.0
        %2699 = vadd.xlane.f32.xlu0 %v2698
        %v2700 = vpop.xlane.xlu0 %2699
        %v2701 = vsel %vm859, %v2597, 0.0
        %2702 = vadd.xlane.f32.xlu0 %v2701
        %v2703 = vpop.xlane.xlu0 %2702
        %v2704 = vsel %vm859, %v2598, 0.0
        %2705 = vadd.xlane.f32.xlu0 %v2704
        %v2706 = vpop.xlane.xlu0 %2705
        %v2707 = vsel %vm859, %v2599, 0.0
        %2708 = vadd.xlane.f32.xlu0 %v2707
        %v2709 = vpop.xlane.xlu0 %2708
        %v2710 = vsel %vm859, %v2600, 0.0
        %2711 = vadd.xlane.f32.xlu0 %v2710
        %v2712 = vpop.xlane.xlu0 %2711
        %v2713 = vsel %vm859, %v2601, 0.0
        %2714 = vadd.xlane.f32.xlu0 %v2713
        %v2715 = vpop.xlane.xlu0 %2714
        %v2716 = vsel %vm859, %v2602, 0.0
        %2717 = vadd.xlane.f32.xlu0 %v2716
        %v2718 = vpop.xlane.xlu0 %2717
        %v2719 = vsel %vm859, %v2603, 0.0
        %2720 = vadd.xlane.f32.xlu0 %v2719
        %v2721 = vpop.xlane.xlu0 %2720
        %v2722 = vsel %vm859, %v2604, 0.0
        %2723 = vadd.xlane.f32.xlu0 %v2722
        %v2724 = vpop.xlane.xlu0 %2723
        %v2725 = vsel %vm859, %v2605, 0.0
        %2726 = vadd.xlane.f32.xlu0 %v2725
        %v2727 = vpop.xlane.xlu0 %2726
        %v2728 = vsel %vm859, %v2606, 0.0
        %2729 = vadd.xlane.f32.xlu0 %v2728
        %v2730 = vpop.xlane.xlu0 %2729
        %v2731 = vsel %vm859, %v2607, 0.0
        %2732 = vadd.xlane.f32.xlu0 %v2731
        %v2733 = vpop.xlane.xlu0 %2732
        %v2734 = vsel %vm859, %v2608, 0.0
        %2735 = vadd.xlane.f32.xlu0 %v2734
        %v2736 = vpop.xlane.xlu0 %2735
        %v2737 = vsel %vm859, %v2609, 0.0
        %2738 = vadd.xlane.f32.xlu0 %v2737
        %v2739 = vpop.xlane.xlu0 %2738
        %v2740 = vsel %vm859, %v2610, 0.0
        %2741 = vadd.xlane.f32.xlu0 %v2740
        %v2742 = vpop.xlane.xlu0 %2741
        %v2743 = vsel %vm859, %v2611, 0.0
        %2744 = vadd.xlane.f32.xlu0 %v2743
        %v2745 = vpop.xlane.xlu0 %2744
        %v2746 = vsel %vm859, %v2612, 0.0
        %2747 = vadd.xlane.f32.xlu0 %v2746
        %v2748 = vpop.xlane.xlu0 %2747
        %v2749 = vsel %vm859, %v2613, 0.0
        %2750 = vadd.xlane.f32.xlu0 %v2749
        %v2751 = vpop.xlane.xlu0 %2750
        %v2752 = vsel %vm859, %v2614, 0.0
        %2753 = vadd.xlane.f32.xlu0 %v2752
        %v2754 = vpop.xlane.xlu0 %2753
        %v2755 = vsel %vm859, %v2615, 0.0
        %2756 = vadd.xlane.f32.xlu0 %v2755
        %v2757 = vpop.xlane.xlu0 %2756
        %v2758 = vsel %vm859, %v2616, 0.0
        %2759 = vadd.xlane.f32.xlu0 %v2758
        %v2760 = vpop.xlane.xlu0 %2759
        %v2761 = vsel %vm859, %v2617, 0.0
        %2762 = vadd.xlane.f32.xlu0 %v2761
        %v2763 = vpop.xlane.xlu0 %2762
        %v2764 = vsel %vm859, %v2618, 0.0
        %2765 = vadd.xlane.f32.xlu0 %v2764
        %v2766 = vpop.xlane.xlu0 %2765
        %v2767 = vsel %vm859, %v2619, 0.0
        %2768 = vadd.xlane.f32.xlu0 %v2767
        %v2769 = vpop.xlane.xlu0 %2768
        %v2770 = vsel %vm859, %v2620, 0.0
        %2771 = vadd.xlane.f32.xlu0 %v2770
        %v2772 = vpop.xlane.xlu0 %2771
        %v2773 = vsel %vm859, %v2621, 0.0
        %2774 = vadd.xlane.f32.xlu0 %v2773
        %v2775 = vpop.xlane.xlu0 %2774
        %v2776 = vsel %vm859, %v2622, 0.0
        %2777 = vadd.xlane.f32.xlu0 %v2776
        %v2778 = vpop.xlane.xlu0 %2777
        %v2779 = vsel %vm859, %v2623, 0.0
        %2780 = vadd.xlane.f32.xlu0 %v2779
        %v2781 = vpop.xlane.xlu0 %2780
        %v2782 = vsel %vm859, %v2624, 0.0
        %2783 = vadd.xlane.f32.xlu0 %v2782
        %v2784 = vpop.xlane.xlu0 %2783
        %v2785 = vsel %vm859, %v2625, 0.0
        %2786 = vadd.xlane.f32.xlu0 %v2785
        %v2787 = vpop.xlane.xlu0 %2786
        %v2788 = vsel %vm859, %v2626, 0.0
        %2789 = vadd.xlane.f32.xlu0 %v2788
        %v2790 = vpop.xlane.xlu0 %2789
        %v2791 = vsel %vm859, %v2627, 0.0
        %2792 = vadd.xlane.f32.xlu0 %v2791
        %v2793 = vpop.xlane.xlu0 %2792
        %v2794 = vsel %vm859, %v2628, 0.0
        %2795 = vadd.xlane.f32.xlu0 %v2794
        %v2796 = vpop.xlane.xlu0 %2795
        %v2797 = vsel %vm859, %v2629, 0.0
        %2798 = vadd.xlane.f32.xlu0 %v2797
        %v2799 = vpop.xlane.xlu0 %2798
        %v2800 = vsel %vm859, %v2630, 0.0
        %2801 = vadd.xlane.f32.xlu0 %v2800
        %v2802 = vpop.xlane.xlu0 %2801
        %v2803 = vsel %vm859, %v2631, 0.0
        %2804 = vadd.xlane.f32.xlu0 %v2803
        %v2805 = vpop.xlane.xlu0 %2804
        %v2806 = vsel %vm859, %v2632, 0.0
        %2807 = vadd.xlane.f32.xlu0 %v2806
        %v2808 = vpop.xlane.xlu0 %2807
        %v2809 = vsel %vm859, %v2633, 0.0
        %2810 = vadd.xlane.f32.xlu0 %v2809
        %v2811 = vpop.xlane.xlu0 %2810
        %v2812 = vsel %vm859, %v2634, 0.0
        %2813 = vadd.xlane.f32.xlu0 %v2812
        %v2814 = vpop.xlane.xlu0 %2813
        %v2815 = vsel %vm859, %v2635, 0.0
        %2816 = vadd.xlane.f32.xlu0 %v2815
        %v2817 = vpop.xlane.xlu0 %2816
        %v2818 = vsel %vm859, %v2636, 0.0
        %2819 = vadd.xlane.f32.xlu0 %v2818
        %v2820 = vpop.xlane.xlu0 %2819
        %v2821 = vsel %vm859, %v2637, 0.0
        %2822 = vadd.xlane.f32.xlu0 %v2821
        %v2823 = vpop.xlane.xlu0 %2822
        %v2824 = vsel %vm859, %v2638, 0.0
        %2825 = vadd.xlane.f32.xlu0 %v2824
        %v2826 = vpop.xlane.xlu0 %2825
        %v2827 = vsel %vm859, %v2639, 0.0
        %2828 = vadd.xlane.f32.xlu0 %v2827
        %v2829 = vpop.xlane.xlu0 %2828
        %v2830 = vsel %vm859, %v2640, 0.0
        %2831 = vadd.xlane.f32.xlu0 %v2830
        %v2832 = vpop.xlane.xlu0 %2831
        %v2833 = vmul.f32 %v2643, %v2643
        %v2834 = vmul.f32 %v2646, %v2646
        %v2835 = vmul.f32 %v2649, %v2649
        %v2836 = vmul.f32 %v2652, %v2652
        %v2837 = vmul.f32 %v2655, %v2655
        %v2838 = vmul.f32 %v2658, %v2658
        %v2839 = vmul.f32 %v2661, %v2661
        %v2840 = vmul.f32 %v2664, %v2664
        %v2841 = vmul.f32 %v2667, %v2667
        %v2842 = vmul.f32 %v2670, %v2670
        %v2843 = vmul.f32 %v2673, %v2673
        %v2844 = vmul.f32 %v2676, %v2676
        %v2845 = vmul.f32 %v2679, %v2679
        %v2846 = vmul.f32 %v2682, %v2682
        %v2847 = vmul.f32 %v2685, %v2685
        %v2848 = vmul.f32 %v2688, %v2688
        %v2849 = vmul.f32 %v2691, %v2691
        %v2850 = vmul.f32 %v2694, %v2694
        %v2851 = vmul.f32 %v2697, %v2697
        %v2852 = vmul.f32 %v2700, %v2700
        %v2853 = vmul.f32 %v2703, %v2703
        %v2854 = vmul.f32 %v2706, %v2706
        %v2855 = vmul.f32 %v2709, %v2709
        %v2856 = vmul.f32 %v2712, %v2712
        %v2857 = vmul.f32 %v2715, %v2715
        %v2858 = vmul.f32 %v2718, %v2718
        %v2859 = vmul.f32 %v2721, %v2721
        %v2860 = vmul.f32 %v2724, %v2724
        %v2861 = vmul.f32 %v2727, %v2727
        %v2862 = vmul.f32 %v2730, %v2730
        %v2863 = vmul.f32 %v2733, %v2733
        %v2864 = vmul.f32 %v2736, %v2736
        %v2865 = vmul.f32 %v2739, %v2739
        %v2866 = vmul.f32 %v2742, %v2742
        %v2867 = vmul.f32 %v2745, %v2745
        %v2868 = vmul.f32 %v2748, %v2748
        %v2869 = vmul.f32 %v2751, %v2751
        %v2870 = vmul.f32 %v2754, %v2754
        %v2871 = vmul.f32 %v2757, %v2757
        %v2872 = vmul.f32 %v2760, %v2760
        %v2873 = vmul.f32 %v2763, %v2763
        %v2874 = vmul.f32 %v2766, %v2766
        %v2875 = vmul.f32 %v2769, %v2769
        %v2876 = vmul.f32 %v2772, %v2772
        %v2877 = vmul.f32 %v2775, %v2775
        %v2878 = vmul.f32 %v2778, %v2778
        %v2879 = vmul.f32 %v2781, %v2781
        %v2880 = vmul.f32 %v2784, %v2784
        %v2881 = vmul.f32 %v2787, %v2787
        %v2882 = vmul.f32 %v2790, %v2790
        %v2883 = vmul.f32 %v2793, %v2793
        %v2884 = vmul.f32 %v2796, %v2796
        %v2885 = vmul.f32 %v2799, %v2799
        %v2886 = vmul.f32 %v2802, %v2802
        %v2887 = vmul.f32 %v2805, %v2805
        %v2888 = vmul.f32 %v2808, %v2808
        %v2889 = vmul.f32 %v2811, %v2811
        %v2890 = vmul.f32 %v2814, %v2814
        %v2891 = vmul.f32 %v2817, %v2817
        %v2892 = vmul.f32 %v2820, %v2820
        %v2893 = vmul.f32 %v2823, %v2823
        %v2894 = vmul.f32 %v2826, %v2826
        %v2895 = vmul.f32 %v2829, %v2829
        %v2896 = vmul.f32 %v2832, %v2832
        %v2897 = vadd.f32 %v2833, %v2849
        %v2898 = vadd.f32 %v2897, %v2865
        %v2899 = vadd.f32 %v2898, %v2881
        %v2900 = vadd.f32 %v2834, %v2850
        %v2901 = vadd.f32 %v2900, %v2866
        %v2902 = vadd.f32 %v2901, %v2882
        %v2903 = vadd.f32 %v2835, %v2851
        %v2904 = vadd.f32 %v2903, %v2867
        %v2905 = vadd.f32 %v2904, %v2883
        %v2906 = vadd.f32 %v2836, %v2852
        %v2907 = vadd.f32 %v2906, %v2868
        %v2908 = vadd.f32 %v2907, %v2884
        %v2909 = vadd.f32 %v2837, %v2853
        %v2910 = vadd.f32 %v2909, %v2869
        %v2911 = vadd.f32 %v2910, %v2885
        %v2912 = vadd.f32 %v2838, %v2854
        %v2913 = vadd.f32 %v2912, %v2870
        %v2914 = vadd.f32 %v2913, %v2886
        %v2915 = vadd.f32 %v2839, %v2855
        %v2916 = vadd.f32 %v2915, %v2871
        %v2917 = vadd.f32 %v2916, %v2887
        %v2918 = vadd.f32 %v2840, %v2856
        %v2919 = vadd.f32 %v2918, %v2872
        %v2920 = vadd.f32 %v2919, %v2888
        %v2921 = vadd.f32 %v2841, %v2857
        %v2922 = vadd.f32 %v2921, %v2873
        %v2923 = vadd.f32 %v2922, %v2889
        %v2924 = vadd.f32 %v2842, %v2858
        %v2925 = vadd.f32 %v2924, %v2874
        %v2926 = vadd.f32 %v2925, %v2890
        %v2927 = vadd.f32 %v2843, %v2859
        %v2928 = vadd.f32 %v2927, %v2875
        %v2929 = vadd.f32 %v2928, %v2891
        %v2930 = vadd.f32 %v2844, %v2860
        %v2931 = vadd.f32 %v2930, %v2876
        %v2932 = vadd.f32 %v2931, %v2892
        %v2933 = vadd.f32 %v2845, %v2861
        %v2934 = vadd.f32 %v2933, %v2877
        %v2935 = vadd.f32 %v2934, %v2893
        %v2936 = vadd.f32 %v2846, %v2862
        %v2937 = vadd.f32 %v2936, %v2878
        %v2938 = vadd.f32 %v2937, %v2894
        %v2939 = vadd.f32 %v2847, %v2863
        %v2940 = vadd.f32 %v2939, %v2879
        %v2941 = vadd.f32 %v2940, %v2895
        %v2942 = vadd.f32 %v2848, %v2864
        %v2943 = vadd.f32 %v2942, %v2880
        %v2944 = vadd.f32 %v2943, %v2896
        %v2945 = vmax.f32 %v2899, 1e-24
        %v2946 = vmax.f32 %v2902, 1e-24
        %v2947 = vmax.f32 %v2905, 1e-24
        %v2948 = vmax.f32 %v2908, 1e-24
        %v2949 = vmax.f32 %v2911, 1e-24
        %v2950 = vmax.f32 %v2914, 1e-24
        %v2951 = vmax.f32 %v2917, 1e-24
        %v2952 = vmax.f32 %v2920, 1e-24
        %v2953 = vmax.f32 %v2923, 1e-24
        %v2954 = vmax.f32 %v2926, 1e-24
        %v2955 = vmax.f32 %v2929, 1e-24
        %v2956 = vmax.f32 %v2932, 1e-24
        %v2957 = vmax.f32 %v2935, 1e-24
        %v2958 = vmax.f32 %v2938, 1e-24
        %v2959 = vmax.f32 %v2941, 1e-24
        %v2960 = vmax.f32 %v2944, 1e-24
        %v2961 = vrsqrt.pop %v2945
        %v2962 = vrsqrt.pop %v2946
        %v2963 = vrsqrt.pop %v2947
        %v2964 = vrsqrt.pop %v2948
        %v2965 = vrsqrt.pop %v2949
        %v2966 = vrsqrt.pop %v2950
        %v2967 = vrsqrt.pop %v2951
        %v2968 = vrsqrt.pop %v2952
        %v2969 = vrsqrt.pop %v2953
        %v2970 = vrsqrt.pop %v2954
        %v2971 = vrsqrt.pop %v2955
        %v2972 = vrsqrt.pop %v2956
        %v2973 = vrsqrt.pop %v2957
        %v2974 = vrsqrt.pop %v2958
        %v2975 = vrsqrt.pop %v2959
        %v2976 = vrsqrt.pop %v2960
        %v2977 = vmul.f32 %v2643, %v2961
        %v2978 = vmul.f32 %v2646, %v2962
        %v2979 = vmul.f32 %v2649, %v2963
        %v2980 = vmul.f32 %v2652, %v2964
        %v2981 = vmul.f32 %v2655, %v2965
        %v2982 = vmul.f32 %v2658, %v2966
        %v2983 = vmul.f32 %v2661, %v2967
        %v2984 = vmul.f32 %v2664, %v2968
        %v2985 = vmul.f32 %v2667, %v2969
        %v2986 = vmul.f32 %v2670, %v2970
        %v2987 = vmul.f32 %v2673, %v2971
        %v2988 = vmul.f32 %v2676, %v2972
        %v2989 = vmul.f32 %v2679, %v2973
        %v2990 = vmul.f32 %v2682, %v2974
        %v2991 = vmul.f32 %v2685, %v2975
        %v2992 = vmul.f32 %v2688, %v2976
        %v2993 = vmul.f32 %v2691, %v2961
        %v2994 = vmul.f32 %v2694, %v2962
        %v2995 = vmul.f32 %v2697, %v2963
        %v2996 = vmul.f32 %v2700, %v2964
        %v2997 = vmul.f32 %v2703, %v2965
        %v2998 = vmul.f32 %v2706, %v2966
        %v2999 = vmul.f32 %v2709, %v2967
        %v3000 = vmul.f32 %v2712, %v2968
        %v3001 = vmul.f32 %v2715, %v2969
        %v3002 = vmul.f32 %v2718, %v2970
        %v3003 = vmul.f32 %v2721, %v2971
        %v3004 = vmul.f32 %v2724, %v2972
        %v3005 = vmul.f32 %v2727, %v2973
        %v3006 = vmul.f32 %v2730, %v2974
        %v3007 = vmul.f32 %v2733, %v2975
        %v3008 = vmul.f32 %v2736, %v2976
        %v3009 = vmul.f32 %v2739, %v2961
        %v3010 = vmul.f32 %v2742, %v2962
        %v3011 = vmul.f32 %v2745, %v2963
        %v3012 = vmul.f32 %v2748, %v2964
        %v3013 = vmul.f32 %v2751, %v2965
        %v3014 = vmul.f32 %v2754, %v2966
        %v3015 = vmul.f32 %v2757, %v2967
        %v3016 = vmul.f32 %v2760, %v2968
        %v3017 = vmul.f32 %v2763, %v2969
        %v3018 = vmul.f32 %v2766, %v2970
        %v3019 = vmul.f32 %v2769, %v2971
        %v3020 = vmul.f32 %v2772, %v2972
        %v3021 = vmul.f32 %v2775, %v2973
        %v3022 = vmul.f32 %v2778, %v2974
        %v3023 = vmul.f32 %v2781, %v2975
        %v3024 = vmul.f32 %v2784, %v2976
        %v3025 = vmul.f32 %v2787, %v2961
        %v3026 = vmul.f32 %v2790, %v2962
        %v3027 = vmul.f32 %v2793, %v2963
        %v3028 = vmul.f32 %v2796, %v2964
        %v3029 = vmul.f32 %v2799, %v2965
        %v3030 = vmul.f32 %v2802, %v2966
        %v3031 = vmul.f32 %v2805, %v2967
        %v3032 = vmul.f32 %v2808, %v2968
        %v3033 = vmul.f32 %v2811, %v2969
        %v3034 = vmul.f32 %v2814, %v2970
        %v3035 = vmul.f32 %v2817, %v2971
        %v3036 = vmul.f32 %v2820, %v2972
        %v3037 = vmul.f32 %v2823, %v2973
        %v3038 = vmul.f32 %v2826, %v2974
        %v3039 = vmul.f32 %v2829, %v2975
        %v3040 = vmul.f32 %v2832, %v2976
        %v3041 = vmul.f32 %v2977, %v2004
        %v3042 = vmul.f32 %v2978, %v2005
        %v3043 = vmul.f32 %v2979, %v2006
        %v3044 = vmul.f32 %v2980, %v2007
        %v3045 = vmul.f32 %v2981, %v2008
        %v3046 = vmul.f32 %v2982, %v2009
        %v3047 = vmul.f32 %v2983, %v2010
        %v3048 = vmul.f32 %v2984, %v2011
        %v3049 = vmul.f32 %v2985, %v2012
        %v3050 = vmul.f32 %v2986, %v2013
        %v3051 = vmul.f32 %v2987, %v2014
        %v3052 = vmul.f32 %v2988, %v2015
        %v3053 = vmul.f32 %v2989, %v2016
        %v3054 = vmul.f32 %v2990, %v2017
        %v3055 = vmul.f32 %v2991, %v2018
        %v3056 = vmul.f32 %v2992, %v2019
        %v3057 = vmul.f32 %v2993, %v2020
        %v3058 = vmul.f32 %v2994, %v2021
        %v3059 = vmul.f32 %v2995, %v2022
        %v3060 = vmul.f32 %v2996, %v2023
        %v3061 = vmul.f32 %v2997, %v2024
        %v3062 = vmul.f32 %v2998, %v2025
        %v3063 = vmul.f32 %v2999, %v2026
        %v3064 = vmul.f32 %v3000, %v2027
        %v3065 = vmul.f32 %v3001, %v2028
        %v3066 = vmul.f32 %v3002, %v2029
        %v3067 = vmul.f32 %v3003, %v2030
        %v3068 = vmul.f32 %v3004, %v2031
        %v3069 = vmul.f32 %v3005, %v2032
        %v3070 = vmul.f32 %v3006, %v2033
        %v3071 = vmul.f32 %v3007, %v2034
        %v3072 = vmul.f32 %v3008, %v2035
        %v3073 = vmul.f32 %v3009, %v2036
        %v3074 = vmul.f32 %v3010, %v2037
        %v3075 = vmul.f32 %v3011, %v2038
        %v3076 = vmul.f32 %v3012, %v2039
        %v3077 = vmul.f32 %v3013, %v2040
        %v3078 = vmul.f32 %v3014, %v2041
        %v3079 = vmul.f32 %v3015, %v2042
        %v3080 = vmul.f32 %v3016, %v2043
        %v3081 = vmul.f32 %v3017, %v2044
        %v3082 = vmul.f32 %v3018, %v2045
        %v3083 = vmul.f32 %v3019, %v2046
        %v3084 = vmul.f32 %v3020, %v2047
        %v3085 = vmul.f32 %v3021, %v2048
        %v3086 = vmul.f32 %v3022, %v2049
        %v3087 = vmul.f32 %v3023, %v2050
        %v3088 = vmul.f32 %v3024, %v2051
        %v3089 = vmul.f32 %v3025, %v2052
        %v3090 = vmul.f32 %v3026, %v2053
        %v3091 = vmul.f32 %v3027, %v2054
        %v3092 = vmul.f32 %v3028, %v2055
        %v3093 = vmul.f32 %v3029, %v2056
        %v3094 = vmul.f32 %v3030, %v2057
        %v3095 = vmul.f32 %v3031, %v2058
        %v3096 = vmul.f32 %v3032, %v2059
        %v3097 = vmul.f32 %v3033, %v2060
        %v3098 = vmul.f32 %v3034, %v2061
        %v3099 = vmul.f32 %v3035, %v2062
        %v3100 = vmul.f32 %v3036, %v2063
        %v3101 = vmul.f32 %v3037, %v2064
        %v3102 = vmul.f32 %v3038, %v2065
        %v3103 = vmul.f32 %v3039, %v2066
        %v3104 = vmul.f32 %v3040, %v2067
        %v3105 = vsel %vm859, %v3041, 0.0
        %v3106 = vsel %vm859, %v3057, 0.0
        %v3107 = vadd.f32 %v3105, %v3106
        %v3108 = vsel %vm859, %v3073, 0.0
        %v3109 = vadd.f32 %v3107, %v3108
        %v3110 = vsel %vm859, %v3089, 0.0
        %v3111 = vadd.f32 %v3109, %v3110
        %v3112 = vsel %vm859, %v3042, 0.0
        %v3113 = vsel %vm859, %v3058, 0.0
        %v3114 = vadd.f32 %v3112, %v3113
        %v3115 = vsel %vm859, %v3074, 0.0
        %v3116 = vadd.f32 %v3114, %v3115
        %v3117 = vsel %vm859, %v3090, 0.0
        %v3118 = vadd.f32 %v3116, %v3117
        %v3119 = vsel %vm859, %v3043, 0.0
        %v3120 = vsel %vm859, %v3059, 0.0
        %v3121 = vadd.f32 %v3119, %v3120
        %v3122 = vsel %vm859, %v3075, 0.0
        %v3123 = vadd.f32 %v3121, %v3122
        %v3124 = vsel %vm859, %v3091, 0.0
        %v3125 = vadd.f32 %v3123, %v3124
        %v3126 = vsel %vm859, %v3044, 0.0
        %v3127 = vsel %vm859, %v3060, 0.0
        %v3128 = vadd.f32 %v3126, %v3127
        %v3129 = vsel %vm859, %v3076, 0.0
        %v3130 = vadd.f32 %v3128, %v3129
        %v3131 = vsel %vm859, %v3092, 0.0
        %v3132 = vadd.f32 %v3130, %v3131
        %v3133 = vsel %vm859, %v3045, 0.0
        %v3134 = vsel %vm859, %v3061, 0.0
        %v3135 = vadd.f32 %v3133, %v3134
        %v3136 = vsel %vm859, %v3077, 0.0
        %v3137 = vadd.f32 %v3135, %v3136
        %v3138 = vsel %vm859, %v3093, 0.0
        %v3139 = vadd.f32 %v3137, %v3138
        %v3140 = vsel %vm859, %v3046, 0.0
        %v3141 = vsel %vm859, %v3062, 0.0
        %v3142 = vadd.f32 %v3140, %v3141
        %v3143 = vsel %vm859, %v3078, 0.0
        %v3144 = vadd.f32 %v3142, %v3143
        %v3145 = vsel %vm859, %v3094, 0.0
        %v3146 = vadd.f32 %v3144, %v3145
        %v3147 = vsel %vm859, %v3047, 0.0
        %v3148 = vsel %vm859, %v3063, 0.0
        %v3149 = vadd.f32 %v3147, %v3148
        %v3150 = vsel %vm859, %v3079, 0.0
        %v3151 = vadd.f32 %v3149, %v3150
        %v3152 = vsel %vm859, %v3095, 0.0
        %v3153 = vadd.f32 %v3151, %v3152
        %v3154 = vsel %vm859, %v3048, 0.0
        %v3155 = vsel %vm859, %v3064, 0.0
        %v3156 = vadd.f32 %v3154, %v3155
        %v3157 = vsel %vm859, %v3080, 0.0
        %v3158 = vadd.f32 %v3156, %v3157
        %v3159 = vsel %vm859, %v3096, 0.0
        %v3160 = vadd.f32 %v3158, %v3159
        %v3161 = vsel %vm859, %v3049, 0.0
        %v3162 = vsel %vm859, %v3065, 0.0
        %v3163 = vadd.f32 %v3161, %v3162
        %v3164 = vsel %vm859, %v3081, 0.0
        %v3165 = vadd.f32 %v3163, %v3164
        %v3166 = vsel %vm859, %v3097, 0.0
        %v3167 = vadd.f32 %v3165, %v3166
        %v3168 = vsel %vm859, %v3050, 0.0
        %v3169 = vsel %vm859, %v3066, 0.0
        %v3170 = vadd.f32 %v3168, %v3169
        %v3171 = vsel %vm859, %v3082, 0.0
        %v3172 = vadd.f32 %v3170, %v3171
        %v3173 = vsel %vm859, %v3098, 0.0
        %v3174 = vadd.f32 %v3172, %v3173
        %v3175 = vsel %vm859, %v3051, 0.0
        %v3176 = vsel %vm859, %v3067, 0.0
        %v3177 = vadd.f32 %v3175, %v3176
        %v3178 = vsel %vm859, %v3083, 0.0
        %v3179 = vadd.f32 %v3177, %v3178
        %v3180 = vsel %vm859, %v3099, 0.0
        %v3181 = vadd.f32 %v3179, %v3180
        %v3182 = vsel %vm859, %v3052, 0.0
        %v3183 = vsel %vm859, %v3068, 0.0
        %v3184 = vadd.f32 %v3182, %v3183
        %v3185 = vsel %vm859, %v3084, 0.0
        %v3186 = vadd.f32 %v3184, %v3185
        %v3187 = vsel %vm859, %v3100, 0.0
        %v3188 = vadd.f32 %v3186, %v3187
        %v3189 = vsel %vm859, %v3053, 0.0
        %v3190 = vsel %vm859, %v3069, 0.0
        %v3191 = vadd.f32 %v3189, %v3190
        %v3192 = vsel %vm859, %v3085, 0.0
        %v3193 = vadd.f32 %v3191, %v3192
        %v3194 = vsel %vm859, %v3101, 0.0
        %v3195 = vadd.f32 %v3193, %v3194
        %v3196 = vsel %vm859, %v3054, 0.0
        %v3197 = vsel %vm859, %v3070, 0.0
        %v3198 = vadd.f32 %v3196, %v3197
        %v3199 = vsel %vm859, %v3086, 0.0
        %v3200 = vadd.f32 %v3198, %v3199
        %v3201 = vsel %vm859, %v3102, 0.0
        %v3202 = vadd.f32 %v3200, %v3201
        %v3203 = vsel %vm859, %v3055, 0.0
        %v3204 = vsel %vm859, %v3071, 0.0
        %v3205 = vadd.f32 %v3203, %v3204
        %v3206 = vsel %vm859, %v3087, 0.0
        %v3207 = vadd.f32 %v3205, %v3206
        %v3208 = vsel %vm859, %v3103, 0.0
        %v3209 = vadd.f32 %v3207, %v3208
        %v3210 = vsel %vm859, %v3056, 0.0
        %v3211 = vsel %vm859, %v3072, 0.0
        %v3212 = vadd.f32 %v3210, %v3211
        %v3213 = vsel %vm859, %v3088, 0.0
        %v3214 = vadd.f32 %v3212, %v3213
        %v3215 = vsel %vm859, %v3104, 0.0
        %v3216 = vadd.f32 %v3214, %v3215
        %v3217 = vadd.f32 %v2068, %v3111
        %v3218 = vadd.f32 %v2069, %v3118
        %v3219 = vadd.f32 %v2070, %v3125
        %v3220 = vadd.f32 %v2071, %v3132
        %v3221 = vadd.f32 %v2072, %v3139
        %v3222 = vadd.f32 %v2073, %v3146
        %v3223 = vadd.f32 %v2074, %v3153
        %v3224 = vadd.f32 %v2075, %v3160
        %v3225 = vadd.f32 %v2076, %v3167
        %v3226 = vadd.f32 %v2077, %v3174
        %v3227 = vadd.f32 %v2078, %v3181
        %v3228 = vadd.f32 %v2079, %v3188
        %v3229 = vadd.f32 %v2080, %v3195
        %v3230 = vadd.f32 %v2081, %v3202
        %v3231 = vadd.f32 %v2082, %v3209
        %v3232 = vadd.f32 %v2083, %v3216
        %3233 = vst.msk [vmem:[%s7] sm:$0xff] %vm859, %v3217
        %3234 = vst.msk [vmem:[%s7 + $0x8] sm:$0xff] %vm859, %v3218
        %3235 = vst.msk [vmem:[%s7 + $0x10] sm:$0xff] %vm859, %v3219
        %3236 = vst.msk [vmem:[%s7 + $0x18] sm:$0xff] %vm859, %v3220
        %3237 = vst.msk [vmem:[%s7 + $0x20] sm:$0xff] %vm859, %v3221
        %3238 = vst.msk [vmem:[%s7 + $0x28] sm:$0xff] %vm859, %v3222
        %3239 = vst.msk [vmem:[%s7 + $0x30] sm:$0xff] %vm859, %v3223
        %3240 = vst.msk [vmem:[%s7 + $0x38] sm:$0xff] %vm859, %v3224
        %3241 = vst.msk [vmem:[%s7 + $0x40] sm:$0xff] %vm859, %v3225
        %3242 = vst.msk [vmem:[%s7 + $0x48] sm:$0xff] %vm859, %v3226
        %3243 = vst.msk [vmem:[%s7 + $0x50] sm:$0xff] %vm859, %v3227
        %3244 = vst.msk [vmem:[%s7 + $0x58] sm:$0xff] %vm859, %v3228
        %3245 = vst.msk [vmem:[%s7 + $0x60] sm:$0xff] %vm859, %v3229
        %3246 = vst.msk [vmem:[%s7 + $0x68] sm:$0xff] %vm859, %v3230
        %3247 = vst.msk [vmem:[%s7 + $0x70] sm:$0xff] %vm859, %v3231
        %3248 = vst.msk [vmem:[%s7 + $0x78] sm:$0xff] %vm859, %v3232
        %v3249 = vld [vmem:[#allocation2] sm:$0xff]
        %v3250 = vld [vmem:[#allocation2 + $0x8] sm:$0xff]
        %v3251 = vld [vmem:[#allocation2 + $0x10] sm:$0xff]
        %v3252 = vld [vmem:[#allocation2 + $0x18] sm:$0xff]
        %v3253 = vld [vmem:[#allocation2 + $0x20] sm:$0xff]
        %v3254 = vld [vmem:[#allocation2 + $0x28] sm:$0xff]
        %v3255 = vld [vmem:[#allocation2 + $0x30] sm:$0xff]
        %v3256 = vld [vmem:[#allocation2 + $0x38] sm:$0xff]
        %v3257 = vld [vmem:[#allocation2 + $0x40] sm:$0xff]
        %v3258 = vld [vmem:[#allocation2 + $0x48] sm:$0xff]
        %v3259 = vld [vmem:[#allocation2 + $0x50] sm:$0xff]
        %v3260 = vld [vmem:[#allocation2 + $0x58] sm:$0xff]
        %v3261 = vld [vmem:[#allocation2 + $0x60] sm:$0xff]
        %v3262 = vld [vmem:[#allocation2 + $0x68] sm:$0xff]
        %v3263 = vld [vmem:[#allocation2 + $0x70] sm:$0xff]
        %v3264 = vld [vmem:[#allocation2 + $0x78] sm:$0xff]
        %v3265 = vld [vmem:[#allocation2 + $0x80] sm:$0xff]
        %v3266 = vld [vmem:[#allocation2 + $0x88] sm:$0xff]
        %v3267 = vld [vmem:[#allocation2 + $0x90] sm:$0xff]
        %v3268 = vld [vmem:[#allocation2 + $0x98] sm:$0xff]
        %v3269 = vld [vmem:[#allocation2 + $0xa0] sm:$0xff]
        %v3270 = vld [vmem:[#allocation2 + $0xa8] sm:$0xff]
        %v3271 = vld [vmem:[#allocation2 + $0xb0] sm:$0xff]
        %v3272 = vld [vmem:[#allocation2 + $0xb8] sm:$0xff]
        %v3273 = vld [vmem:[#allocation2 + $0xc0] sm:$0xff]
        %v3274 = vld [vmem:[#allocation2 + $0xc8] sm:$0xff]
        %v3275 = vld [vmem:[#allocation2 + $0xd0] sm:$0xff]
        %v3276 = vld [vmem:[#allocation2 + $0xd8] sm:$0xff]
        %v3277 = vld [vmem:[#allocation2 + $0xe0] sm:$0xff]
        %v3278 = vld [vmem:[#allocation2 + $0xe8] sm:$0xff]
        %v3279 = vld [vmem:[#allocation2 + $0xf0] sm:$0xff]
        %v3280 = vld [vmem:[#allocation2 + $0xf8] sm:$0xff]
        %v3281 = vld [vmem:[#allocation2 + $0x100] sm:$0xff]
        %v3282 = vld [vmem:[#allocation2 + $0x108] sm:$0xff]
        %v3283 = vld [vmem:[#allocation2 + $0x110] sm:$0xff]
        %v3284 = vld [vmem:[#allocation2 + $0x118] sm:$0xff]
        %v3285 = vld [vmem:[#allocation2 + $0x120] sm:$0xff]
        %v3286 = vld [vmem:[#allocation2 + $0x128] sm:$0xff]
        %v3287 = vld [vmem:[#allocation2 + $0x130] sm:$0xff]
        %v3288 = vld [vmem:[#allocation2 + $0x138] sm:$0xff]
        %v3289 = vld [vmem:[#allocation2 + $0x140] sm:$0xff]
        %v3290 = vld [vmem:[#allocation2 + $0x148] sm:$0xff]
        %v3291 = vld [vmem:[#allocation2 + $0x150] sm:$0xff]
        %v3292 = vld [vmem:[#allocation2 + $0x158] sm:$0xff]
        %v3293 = vld [vmem:[#allocation2 + $0x160] sm:$0xff]
        %v3294 = vld [vmem:[#allocation2 + $0x168] sm:$0xff]
        %v3295 = vld [vmem:[#allocation2 + $0x170] sm:$0xff]
        %v3296 = vld [vmem:[#allocation2 + $0x178] sm:$0xff]
        %v3297 = vld [vmem:[#allocation2 + $0x180] sm:$0xff]
        %v3298 = vld [vmem:[#allocation2 + $0x188] sm:$0xff]
        %v3299 = vld [vmem:[#allocation2 + $0x190] sm:$0xff]
        %v3300 = vld [vmem:[#allocation2 + $0x198] sm:$0xff]
        %v3301 = vld [vmem:[#allocation2 + $0x1a0] sm:$0xff]
        %v3302 = vld [vmem:[#allocation2 + $0x1a8] sm:$0xff]
        %v3303 = vld [vmem:[#allocation2 + $0x1b0] sm:$0xff]
        %v3304 = vld [vmem:[#allocation2 + $0x1b8] sm:$0xff]
        %v3305 = vld [vmem:[#allocation2 + $0x1c0] sm:$0xff]
        %v3306 = vld [vmem:[#allocation2 + $0x1c8] sm:$0xff]
        %v3307 = vld [vmem:[#allocation2 + $0x1d0] sm:$0xff]
        %v3308 = vld [vmem:[#allocation2 + $0x1d8] sm:$0xff]
        %v3309 = vld [vmem:[#allocation2 + $0x1e0] sm:$0xff]
        %v3310 = vld [vmem:[#allocation2 + $0x1e8] sm:$0xff]
        %v3311 = vld [vmem:[#allocation2 + $0x1f0] sm:$0xff]
        %v3312 = vld [vmem:[#allocation2 + $0x1f8] sm:$0xff]
        %v3313 = vld [vmem:[#allocation2 + $0x200] sm:$0xff]
        %v3314 = vld [vmem:[#allocation2 + $0x208] sm:$0xff]
        %v3315 = vld [vmem:[#allocation2 + $0x210] sm:$0xff]
        %v3316 = vld [vmem:[#allocation2 + $0x218] sm:$0xff]
        %v3317 = vld [vmem:[#allocation2 + $0x220] sm:$0xff]
        %v3318 = vld [vmem:[#allocation2 + $0x228] sm:$0xff]
        %v3319 = vld [vmem:[#allocation2 + $0x230] sm:$0xff]
        %v3320 = vld [vmem:[#allocation2 + $0x238] sm:$0xff]
        %v3321 = vld [vmem:[#allocation2 + $0x240] sm:$0xff]
        %v3322 = vld [vmem:[#allocation2 + $0x248] sm:$0xff]
        %v3323 = vld [vmem:[#allocation2 + $0x250] sm:$0xff]
        %v3324 = vld [vmem:[#allocation2 + $0x258] sm:$0xff]
        %v3325 = vld [vmem:[#allocation2 + $0x260] sm:$0xff]
        %v3326 = vld [vmem:[#allocation2 + $0x268] sm:$0xff]
        %v3327 = vld [vmem:[#allocation2 + $0x270] sm:$0xff]
        %v3328 = vld [vmem:[#allocation2 + $0x278] sm:$0xff]
        %v3329 = vld [vmem:[#allocation2 + $0x280] sm:$0xff]
        %v3330 = vld [vmem:[#allocation2 + $0x288] sm:$0xff]
        %v3331 = vld [vmem:[#allocation2 + $0x290] sm:$0xff]
        %v3332 = vld [vmem:[#allocation2 + $0x298] sm:$0xff]
        %v3333 = vld [vmem:[#allocation2 + $0x2a0] sm:$0xff]
        %v3334 = vld [vmem:[#allocation2 + $0x2a8] sm:$0xff]
        %v3335 = vld [vmem:[#allocation2 + $0x2b0] sm:$0xff]
        %v3336 = vld [vmem:[#allocation2 + $0x2b8] sm:$0xff]
        %v3337 = vld [vmem:[#allocation2 + $0x2c0] sm:$0xff]
        %v3338 = vld [vmem:[#allocation2 + $0x2c8] sm:$0xff]
        %v3339 = vld [vmem:[#allocation2 + $0x2d0] sm:$0xff]
        %v3340 = vld [vmem:[#allocation2 + $0x2d8] sm:$0xff]
        %v3341 = vld [vmem:[#allocation2 + $0x2e0] sm:$0xff]
        %v3342 = vld [vmem:[#allocation2 + $0x2e8] sm:$0xff]
        %v3343 = vld [vmem:[#allocation2 + $0x2f0] sm:$0xff]
        %v3344 = vld [vmem:[#allocation2 + $0x2f8] sm:$0xff]
        %v3345 = vld [vmem:[#allocation2 + $0x300] sm:$0xff]
        %v3346 = vld [vmem:[#allocation2 + $0x308] sm:$0xff]
        %v3347 = vld [vmem:[#allocation2 + $0x310] sm:$0xff]
        %v3348 = vld [vmem:[#allocation2 + $0x318] sm:$0xff]
        %v3349 = vld [vmem:[#allocation2 + $0x320] sm:$0xff]
        %v3350 = vld [vmem:[#allocation2 + $0x328] sm:$0xff]
        %v3351 = vld [vmem:[#allocation2 + $0x330] sm:$0xff]
        %v3352 = vld [vmem:[#allocation2 + $0x338] sm:$0xff]
        %v3353 = vld [vmem:[#allocation2 + $0x340] sm:$0xff]
        %v3354 = vld [vmem:[#allocation2 + $0x348] sm:$0xff]
        %v3355 = vld [vmem:[#allocation2 + $0x350] sm:$0xff]
        %v3356 = vld [vmem:[#allocation2 + $0x358] sm:$0xff]
        %v3357 = vld [vmem:[#allocation2 + $0x360] sm:$0xff]
        %v3358 = vld [vmem:[#allocation2 + $0x368] sm:$0xff]
        %v3359 = vld [vmem:[#allocation2 + $0x370] sm:$0xff]
        %v3360 = vld [vmem:[#allocation2 + $0x378] sm:$0xff]
        %v3361 = vld [vmem:[#allocation2 + $0x380] sm:$0xff]
        %v3362 = vld [vmem:[#allocation2 + $0x388] sm:$0xff]
        %v3363 = vld [vmem:[#allocation2 + $0x390] sm:$0xff]
        %v3364 = vld [vmem:[#allocation2 + $0x398] sm:$0xff]
        %v3365 = vld [vmem:[#allocation2 + $0x3a0] sm:$0xff]
        %v3366 = vld [vmem:[#allocation2 + $0x3a8] sm:$0xff]
        %v3367 = vld [vmem:[#allocation2 + $0x3b0] sm:$0xff]
        %v3368 = vld [vmem:[#allocation2 + $0x3b8] sm:$0xff]
        %v3369 = vld [vmem:[#allocation2 + $0x3c0] sm:$0xff]
        %v3370 = vld [vmem:[#allocation2 + $0x3c8] sm:$0xff]
        %v3371 = vld [vmem:[#allocation2 + $0x3d0] sm:$0xff]
        %v3372 = vld [vmem:[#allocation2 + $0x3d8] sm:$0xff]
        %v3373 = vld [vmem:[#allocation2 + $0x3e0] sm:$0xff]
        %v3374 = vld [vmem:[#allocation2 + $0x3e8] sm:$0xff]
        %v3375 = vld [vmem:[#allocation2 + $0x3f0] sm:$0xff]
        %v3376 = vld [vmem:[#allocation2 + $0x3f8] sm:$0xff]
        %v3377 = vld [vmem:[%s2] sm:$0xff]
        %v3378 = vld [vmem:[%s2 + $0x8] sm:$0xff]
        %v3379 = vld [vmem:[%s2 + $0x10] sm:$0xff]
        %v3380 = vld [vmem:[%s2 + $0x18] sm:$0xff]
        %v3381 = vld [vmem:[%s2 + $0x20] sm:$0xff]
        %v3382 = vld [vmem:[%s2 + $0x28] sm:$0xff]
        %v3383 = vld [vmem:[%s2 + $0x30] sm:$0xff]
        %v3384 = vld [vmem:[%s2 + $0x38] sm:$0xff]
        %v3385 = vld [vmem:[%s2 + $0x40] sm:$0xff]
        %v3386 = vld [vmem:[%s2 + $0x48] sm:$0xff]
        %v3387 = vld [vmem:[%s2 + $0x50] sm:$0xff]
        %v3388 = vld [vmem:[%s2 + $0x58] sm:$0xff]
        %v3389 = vld [vmem:[%s2 + $0x60] sm:$0xff]
        %v3390 = vld [vmem:[%s2 + $0x68] sm:$0xff]
        %v3391 = vld [vmem:[%s2 + $0x70] sm:$0xff]
        %v3392 = vld [vmem:[%s2 + $0x78] sm:$0xff]
        %v3393 = vld [vmem:[%s2 + $0x80] sm:$0xff]
        %v3394 = vld [vmem:[%s2 + $0x88] sm:$0xff]
        %v3395 = vld [vmem:[%s2 + $0x90] sm:$0xff]
        %v3396 = vld [vmem:[%s2 + $0x98] sm:$0xff]
        %v3397 = vld [vmem:[%s2 + $0xa0] sm:$0xff]
        %v3398 = vld [vmem:[%s2 + $0xa8] sm:$0xff]
        %v3399 = vld [vmem:[%s2 + $0xb0] sm:$0xff]
        %v3400 = vld [vmem:[%s2 + $0xb8] sm:$0xff]
        %v3401 = vld [vmem:[%s2 + $0xc0] sm:$0xff]
        %v3402 = vld [vmem:[%s2 + $0xc8] sm:$0xff]
        %v3403 = vld [vmem:[%s2 + $0xd0] sm:$0xff]
        %v3404 = vld [vmem:[%s2 + $0xd8] sm:$0xff]
        %v3405 = vld [vmem:[%s2 + $0xe0] sm:$0xff]
        %v3406 = vld [vmem:[%s2 + $0xe8] sm:$0xff]
        %v3407 = vld [vmem:[%s2 + $0xf0] sm:$0xff]
        %v3408 = vld [vmem:[%s2 + $0xf8] sm:$0xff]
        %v3409 = vpack.c.bf16 %v3250, %v3249
        %v3410 = vpack.c.bf16 %v3252, %v3251
        %v3411 = vpack.c.bf16 %v3254, %v3253
        %v3412 = vpack.c.bf16 %v3256, %v3255
        %v3413 = vpack.c.bf16 %v3258, %v3257
        %v3414 = vpack.c.bf16 %v3260, %v3259
        %v3415 = vpack.c.bf16 %v3262, %v3261
        %v3416 = vpack.c.bf16 %v3264, %v3263
        %v3417 = vpack.c.bf16 %v3266, %v3265
        %v3418 = vpack.c.bf16 %v3268, %v3267
        %v3419 = vpack.c.bf16 %v3270, %v3269
        %v3420 = vpack.c.bf16 %v3272, %v3271
        %v3421 = vpack.c.bf16 %v3274, %v3273
        %v3422 = vpack.c.bf16 %v3276, %v3275
        %v3423 = vpack.c.bf16 %v3278, %v3277
        %v3424 = vpack.c.bf16 %v3280, %v3279
        %v3425 = vpack.c.bf16 %v3282, %v3281
        %v3426 = vpack.c.bf16 %v3284, %v3283
        %v3427 = vpack.c.bf16 %v3286, %v3285
        %v3428 = vpack.c.bf16 %v3288, %v3287
        %v3429 = vpack.c.bf16 %v3290, %v3289
        %v3430 = vpack.c.bf16 %v3292, %v3291
        %v3431 = vpack.c.bf16 %v3294, %v3293
        %v3432 = vpack.c.bf16 %v3296, %v3295
        %v3433 = vpack.c.bf16 %v3298, %v3297
        %v3434 = vpack.c.bf16 %v3300, %v3299
        %v3435 = vpack.c.bf16 %v3302, %v3301
        %v3436 = vpack.c.bf16 %v3304, %v3303
        %v3437 = vpack.c.bf16 %v3306, %v3305
        %v3438 = vpack.c.bf16 %v3308, %v3307
        %v3439 = vpack.c.bf16 %v3310, %v3309
        %v3440 = vpack.c.bf16 %v3312, %v3311
        %v3441 = vpack.c.bf16 %v3314, %v3313
        %v3442 = vpack.c.bf16 %v3316, %v3315
        %v3443 = vpack.c.bf16 %v3318, %v3317
        %v3444 = vpack.c.bf16 %v3320, %v3319
        %v3445 = vpack.c.bf16 %v3322, %v3321
        %v3446 = vpack.c.bf16 %v3324, %v3323
        %v3447 = vpack.c.bf16 %v3326, %v3325
        %v3448 = vpack.c.bf16 %v3328, %v3327
        %v3449 = vpack.c.bf16 %v3330, %v3329
        %v3450 = vpack.c.bf16 %v3332, %v3331
        %v3451 = vpack.c.bf16 %v3334, %v3333
        %v3452 = vpack.c.bf16 %v3336, %v3335
        %v3453 = vpack.c.bf16 %v3338, %v3337
        %v3454 = vpack.c.bf16 %v3340, %v3339
        %v3455 = vpack.c.bf16 %v3342, %v3341
        %v3456 = vpack.c.bf16 %v3344, %v3343
        %v3457 = vpack.c.bf16 %v3346, %v3345
        %v3458 = vpack.c.bf16 %v3348, %v3347
        %v3459 = vpack.c.bf16 %v3350, %v3349
        %v3460 = vpack.c.bf16 %v3352, %v3351
        %v3461 = vpack.c.bf16 %v3354, %v3353
        %v3462 = vpack.c.bf16 %v3356, %v3355
        %v3463 = vpack.c.bf16 %v3358, %v3357
        %v3464 = vpack.c.bf16 %v3360, %v3359
        %v3465 = vpack.c.bf16 %v3362, %v3361
        %v3466 = vpack.c.bf16 %v3364, %v3363
        %v3467 = vpack.c.bf16 %v3366, %v3365
        %v3468 = vpack.c.bf16 %v3368, %v3367
        %v3469 = vpack.c.bf16 %v3370, %v3369
        %v3470 = vpack.c.bf16 %v3372, %v3371
        %v3471 = vpack.c.bf16 %v3374, %v3373
        %v3472 = vpack.c.bf16 %v3376, %v3375
        %v3474 = vsel %vm859, %v3409, 0
        %v3477 = vsel %vm859, %v3410, 0
        %v3480 = vsel %vm859, %v3411, 0
        %v3483 = vsel %vm859, %v3412, 0
        %v3486 = vsel %vm859, %v3413, 0
        %v3489 = vsel %vm859, %v3414, 0
        %v3492 = vsel %vm859, %v3415, 0
        %v3495 = vsel %vm859, %v3416, 0
        %v3498 = vsel %vm859, %v3417, 0
        %v3501 = vsel %vm859, %v3418, 0
        %v3504 = vsel %vm859, %v3419, 0
        %v3507 = vsel %vm859, %v3420, 0
        %v3510 = vsel %vm859, %v3421, 0
        %v3513 = vsel %vm859, %v3422, 0
        %v3516 = vsel %vm859, %v3423, 0
        %v3519 = vsel %vm859, %v3424, 0
        %v3522 = vsel %vm859, %v3425, 0
        %v3525 = vsel %vm859, %v3426, 0
        %v3528 = vsel %vm859, %v3427, 0
        %v3531 = vsel %vm859, %v3428, 0
        %v3534 = vsel %vm859, %v3429, 0
        %v3537 = vsel %vm859, %v3430, 0
        %v3540 = vsel %vm859, %v3431, 0
        %v3543 = vsel %vm859, %v3432, 0
        %v3546 = vsel %vm859, %v3433, 0
        %v3549 = vsel %vm859, %v3434, 0
        %v3552 = vsel %vm859, %v3435, 0
        %v3555 = vsel %vm859, %v3436, 0
        %v3558 = vsel %vm859, %v3437, 0
        %v3561 = vsel %vm859, %v3438, 0
        %v3564 = vsel %vm859, %v3439, 0
        %v3567 = vsel %vm859, %v3440, 0
        %v3570 = vsel %vm859, %v3441, 0
        %v3573 = vsel %vm859, %v3442, 0
        %v3576 = vsel %vm859, %v3443, 0
        %v3579 = vsel %vm859, %v3444, 0
        %v3582 = vsel %vm859, %v3445, 0
        %v3585 = vsel %vm859, %v3446, 0
        %v3588 = vsel %vm859, %v3447, 0
        %v3591 = vsel %vm859, %v3448, 0
        %v3594 = vsel %vm859, %v3449, 0
        %v3597 = vsel %vm859, %v3450, 0
        %v3600 = vsel %vm859, %v3451, 0
        %v3603 = vsel %vm859, %v3452, 0
        %v3606 = vsel %vm859, %v3453, 0
        %v3609 = vsel %vm859, %v3454, 0
        %v3612 = vsel %vm859, %v3455, 0
        %v3615 = vsel %vm859, %v3456, 0
        %v3618 = vsel %vm859, %v3457, 0
        %v3621 = vsel %vm859, %v3458, 0
        %v3624 = vsel %vm859, %v3459, 0
        %v3627 = vsel %vm859, %v3460, 0
        %v3630 = vsel %vm859, %v3461, 0
        %v3633 = vsel %vm859, %v3462, 0
        %v3636 = vsel %vm859, %v3463, 0
        %v3639 = vsel %vm859, %v3464, 0
        %v3642 = vsel %vm859, %v3465, 0
        %v3645 = vsel %vm859, %v3466, 0
        %v3648 = vsel %vm859, %v3467, 0
        %v3651 = vsel %vm859, %v3468, 0
        %v3654 = vsel %vm859, %v3469, 0
        %v3657 = vsel %vm859, %v3470, 0
        %v3660 = vsel %vm859, %v3471, 0
        %v3663 = vsel %vm859, %v3472, 0
        %3665 = vmatprep.subr.bf16.mxu0 0
        %3666 = vmatpush1.bf16.msra.mxu0 0
        %3667 = vmatprep.subr.bf16.mxu0 0
        %3668 = vmatpush1.bf16.msra.mxu0 0
        %3669 = vmatprep.subr.bf16.mxu0 0
        %3670 = vmatpush1.bf16.msra.mxu0 0
        %3671 = vmatprep.subr.bf16.mxu0 0
        %3672 = vmatpush1.bf16.msra.mxu0 0
        %3673 = vmatprep.subr.bf16.mxu0 0
        %3674 = vmatpush1.bf16.msra.mxu0 %v2001
        %3675 = vmatprep.subr.bf16.mxu0 0
        %3676 = vmatpush1.bf16.msra.mxu0 %v2000
        %3677 = vmatprep.subr.bf16.mxu0 0
        %3678 = vmatpush1.bf16.msra.mxu0 %v1999
        %3679 = vmatprep.subr.bf16.mxu0 0
        %3680 = vmatpush1.bf16.msra.mxu0 %v1998
        %3681 = vmatprep.subr.bf16.mxu0 0
        %3682 = vmatpush2.bf16.msra.mxu0 0
        %3683 = vmatprep.subr.bf16.mxu0 0
        %3684 = vmatpush2.bf16.msra.mxu0 0
        %3685 = vmatprep.subr.bf16.mxu0 0
        %3686 = vmatpush2.bf16.msra.mxu0 0
        %3687 = vmatprep.subr.bf16.mxu0 0
        %3688 = vmatpush2.bf16.msra.mxu0 0
        %3689 = vmatprep.subr.bf16.mxu0 0
        %3690 = vmatpush2.bf16.msra.mxu0 0
        %3691 = vmatprep.subr.bf16.mxu0 0
        %3692 = vmatpush2.bf16.msra.mxu0 0
        %3693 = vmatprep.subr.bf16.mxu0 0
        %3694 = vmatpush2.bf16.msra.mxu0 0
        %3695 = vmatprep.subr.bf16.mxu0 0
        %3696 = vmatpush2.bf16.msra.mxu0 0
        %3697 = vmatprep.mubr.bf16.mxu0 0
        %3698 = vmatmul.mubr.bf16.gmra.mxu0 %v3474
        %v3699 = vpop.f32.mrf.mxu0
        %v3700 = vadd.f32 %v2120, %v3699
        %v3701 = vpop.f32.mrf.mxu0
        %v3702 = vpop.f32.mrf.mxu0
        %v3703 = vadd.f32 %v2120, %v3702
        %v3704 = vpop.f32.mrf.mxu0
        %3705 = vmatprep.mubr.bf16.mxu0 0
        %3706 = vmatmul.mubr.bf16.gmra.mxu0 %v3477
        %v3707 = vpop.f32.mrf.mxu0
        %v3708 = vadd.f32 %v2120, %v3707
        %v3709 = vpop.f32.mrf.mxu0
        %v3710 = vpop.f32.mrf.mxu0
        %v3711 = vadd.f32 %v2120, %v3710
        %v3712 = vpop.f32.mrf.mxu0
        %3713 = vmatprep.mubr.bf16.mxu0 0
        %3714 = vmatmul.mubr.bf16.gmra.mxu0 %v3480
        %v3715 = vpop.f32.mrf.mxu0
        %v3716 = vadd.f32 %v2120, %v3715
        %v3717 = vpop.f32.mrf.mxu0
        %v3718 = vpop.f32.mrf.mxu0
        %v3719 = vadd.f32 %v2120, %v3718
        %v3720 = vpop.f32.mrf.mxu0
        %3721 = vmatprep.mubr.bf16.mxu0 0
        %3722 = vmatmul.mubr.bf16.gmra.mxu0 %v3483
        %v3723 = vpop.f32.mrf.mxu0
        %v3724 = vadd.f32 %v2120, %v3723
        %v3725 = vpop.f32.mrf.mxu0
        %v3726 = vpop.f32.mrf.mxu0
        %v3727 = vadd.f32 %v2120, %v3726
        %v3728 = vpop.f32.mrf.mxu0
        %3729 = vmatprep.mubr.bf16.mxu0 0
        %3730 = vmatmul.mubr.bf16.gmra.mxu0 %v3486
        %v3731 = vpop.f32.mrf.mxu0
        %v3732 = vadd.f32 %v2120, %v3731
        %v3733 = vpop.f32.mrf.mxu0
        %v3734 = vpop.f32.mrf.mxu0
        %v3735 = vadd.f32 %v2120, %v3734
        %v3736 = vpop.f32.mrf.mxu0
        %3737 = vmatprep.mubr.bf16.mxu0 0
        %3738 = vmatmul.mubr.bf16.gmra.mxu0 %v3489
        %v3739 = vpop.f32.mrf.mxu0
        %v3740 = vadd.f32 %v2120, %v3739
        %v3741 = vpop.f32.mrf.mxu0
        %v3742 = vpop.f32.mrf.mxu0
        %v3743 = vadd.f32 %v2120, %v3742
        %v3744 = vpop.f32.mrf.mxu0
        %3745 = vmatprep.mubr.bf16.mxu0 0
        %3746 = vmatmul.mubr.bf16.gmra.mxu0 %v3492
        %v3747 = vpop.f32.mrf.mxu0
        %v3748 = vadd.f32 %v2120, %v3747
        %v3749 = vpop.f32.mrf.mxu0
        %v3750 = vpop.f32.mrf.mxu0
        %v3751 = vadd.f32 %v2120, %v3750
        %v3752 = vpop.f32.mrf.mxu0
        %3753 = vmatprep.mubr.bf16.mxu0 0
        %3754 = vmatmul.mubr.bf16.gmra.mxu0 %v3495
        %v3755 = vpop.f32.mrf.mxu0
        %v3756 = vadd.f32 %v2120, %v3755
        %v3757 = vpop.f32.mrf.mxu0
        %v3758 = vpop.f32.mrf.mxu0
        %v3759 = vadd.f32 %v2120, %v3758
        %v3760 = vpop.f32.mrf.mxu0
        %3761 = vmatprep.mubr.bf16.mxu0 0
        %3762 = vmatmul.mubr.bf16.gmra.mxu0 %v3498
        %v3763 = vpop.f32.mrf.mxu0
        %v3764 = vadd.f32 %v2120, %v3763
        %v3765 = vpop.f32.mrf.mxu0
        %v3766 = vpop.f32.mrf.mxu0
        %v3767 = vadd.f32 %v2120, %v3766
        %v3768 = vpop.f32.mrf.mxu0
        %3769 = vmatprep.mubr.bf16.mxu0 0
        %3770 = vmatmul.mubr.bf16.gmra.mxu0 %v3501
        %v3771 = vpop.f32.mrf.mxu0
        %v3772 = vadd.f32 %v2120, %v3771
        %v3773 = vpop.f32.mrf.mxu0
        %v3774 = vpop.f32.mrf.mxu0
        %v3775 = vadd.f32 %v2120, %v3774
        %v3776 = vpop.f32.mrf.mxu0
        %3777 = vmatprep.mubr.bf16.mxu0 0
        %3778 = vmatmul.mubr.bf16.gmra.mxu0 %v3504
        %v3779 = vpop.f32.mrf.mxu0
        %v3780 = vadd.f32 %v2120, %v3779
        %v3781 = vpop.f32.mrf.mxu0
        %v3782 = vpop.f32.mrf.mxu0
        %v3783 = vadd.f32 %v2120, %v3782
        %v3784 = vpop.f32.mrf.mxu0
        %3785 = vmatprep.mubr.bf16.mxu0 0
        %3786 = vmatmul.mubr.bf16.gmra.mxu0 %v3507
        %v3787 = vpop.f32.mrf.mxu0
        %v3788 = vadd.f32 %v2120, %v3787
        %v3789 = vpop.f32.mrf.mxu0
        %v3790 = vpop.f32.mrf.mxu0
        %v3791 = vadd.f32 %v2120, %v3790
        %v3792 = vpop.f32.mrf.mxu0
        %3793 = vmatprep.mubr.bf16.mxu0 0
        %3794 = vmatmul.mubr.bf16.gmra.mxu0 %v3510
        %v3795 = vpop.f32.mrf.mxu0
        %v3796 = vadd.f32 %v2120, %v3795
        %v3797 = vpop.f32.mrf.mxu0
        %v3798 = vpop.f32.mrf.mxu0
        %v3799 = vadd.f32 %v2120, %v3798
        %v3800 = vpop.f32.mrf.mxu0
        %3801 = vmatprep.mubr.bf16.mxu0 0
        %3802 = vmatmul.mubr.bf16.gmra.mxu0 %v3513
        %v3803 = vpop.f32.mrf.mxu0
        %v3804 = vadd.f32 %v2120, %v3803
        %v3805 = vpop.f32.mrf.mxu0
        %v3806 = vpop.f32.mrf.mxu0
        %v3807 = vadd.f32 %v2120, %v3806
        %v3808 = vpop.f32.mrf.mxu0
        %3809 = vmatprep.mubr.bf16.mxu0 0
        %3810 = vmatmul.mubr.bf16.gmra.mxu0 %v3516
        %v3811 = vpop.f32.mrf.mxu0
        %v3812 = vadd.f32 %v2120, %v3811
        %v3813 = vpop.f32.mrf.mxu0
        %v3814 = vpop.f32.mrf.mxu0
        %v3815 = vadd.f32 %v2120, %v3814
        %v3816 = vpop.f32.mrf.mxu0
        %3817 = vmatprep.mubr.bf16.mxu0 0
        %3818 = vmatmul.mubr.bf16.gmra.mxu0 %v3519
        %v3819 = vpop.f32.mrf.mxu0
        %v3820 = vadd.f32 %v2120, %v3819
        %v3821 = vpop.f32.mrf.mxu0
        %v3822 = vpop.f32.mrf.mxu0
        %v3823 = vadd.f32 %v2120, %v3822
        %v3824 = vpop.f32.mrf.mxu0
        %3825 = vmatprep.mubr.bf16.mxu0 0
        %3826 = vmatmul.mubr.bf16.gmra.mxu0 %v3522
        %v3827 = vpop.f32.mrf.mxu0
        %v3828 = vadd.f32 %v2120, %v3827
        %v3829 = vpop.f32.mrf.mxu0
        %v3830 = vpop.f32.mrf.mxu0
        %v3831 = vadd.f32 %v2120, %v3830
        %v3832 = vpop.f32.mrf.mxu0
        %3833 = vmatprep.mubr.bf16.mxu0 0
        %3834 = vmatmul.mubr.bf16.gmra.mxu0 %v3525
        %v3835 = vpop.f32.mrf.mxu0
        %v3836 = vadd.f32 %v2120, %v3835
        %v3837 = vpop.f32.mrf.mxu0
        %v3838 = vpop.f32.mrf.mxu0
        %v3839 = vadd.f32 %v2120, %v3838
        %v3840 = vpop.f32.mrf.mxu0
        %3841 = vmatprep.mubr.bf16.mxu0 0
        %3842 = vmatmul.mubr.bf16.gmra.mxu0 %v3528
        %v3843 = vpop.f32.mrf.mxu0
        %v3844 = vadd.f32 %v2120, %v3843
        %v3845 = vpop.f32.mrf.mxu0
        %v3846 = vpop.f32.mrf.mxu0
        %v3847 = vadd.f32 %v2120, %v3846
        %v3848 = vpop.f32.mrf.mxu0
        %3849 = vmatprep.mubr.bf16.mxu0 0
        %3850 = vmatmul.mubr.bf16.gmra.mxu0 %v3531
        %v3851 = vpop.f32.mrf.mxu0
        %v3852 = vadd.f32 %v2120, %v3851
        %v3853 = vpop.f32.mrf.mxu0
        %v3854 = vpop.f32.mrf.mxu0
        %v3855 = vadd.f32 %v2120, %v3854
        %v3856 = vpop.f32.mrf.mxu0
        %3857 = vmatprep.mubr.bf16.mxu0 0
        %3858 = vmatmul.mubr.bf16.gmra.mxu0 %v3534
        %v3859 = vpop.f32.mrf.mxu0
        %v3860 = vadd.f32 %v2120, %v3859
        %v3861 = vpop.f32.mrf.mxu0
        %v3862 = vpop.f32.mrf.mxu0
        %v3863 = vadd.f32 %v2120, %v3862
        %v3864 = vpop.f32.mrf.mxu0
        %3865 = vmatprep.mubr.bf16.mxu0 0
        %3866 = vmatmul.mubr.bf16.gmra.mxu0 %v3537
        %v3867 = vpop.f32.mrf.mxu0
        %v3868 = vadd.f32 %v2120, %v3867
        %v3869 = vpop.f32.mrf.mxu0
        %v3870 = vpop.f32.mrf.mxu0
        %v3871 = vadd.f32 %v2120, %v3870
        %v3872 = vpop.f32.mrf.mxu0
        %3873 = vmatprep.mubr.bf16.mxu0 0
        %3874 = vmatmul.mubr.bf16.gmra.mxu0 %v3540
        %v3875 = vpop.f32.mrf.mxu0
        %v3876 = vadd.f32 %v2120, %v3875
        %v3877 = vpop.f32.mrf.mxu0
        %v3878 = vpop.f32.mrf.mxu0
        %v3879 = vadd.f32 %v2120, %v3878
        %v3880 = vpop.f32.mrf.mxu0
        %3881 = vmatprep.mubr.bf16.mxu0 0
        %3882 = vmatmul.mubr.bf16.gmra.mxu0 %v3543
        %v3883 = vpop.f32.mrf.mxu0
        %v3884 = vadd.f32 %v2120, %v3883
        %v3885 = vpop.f32.mrf.mxu0
        %v3886 = vpop.f32.mrf.mxu0
        %v3887 = vadd.f32 %v2120, %v3886
        %v3888 = vpop.f32.mrf.mxu0
        %3889 = vmatprep.mubr.bf16.mxu0 0
        %3890 = vmatmul.mubr.bf16.gmra.mxu0 %v3546
        %v3891 = vpop.f32.mrf.mxu0
        %v3892 = vadd.f32 %v2120, %v3891
        %v3893 = vpop.f32.mrf.mxu0
        %v3894 = vpop.f32.mrf.mxu0
        %v3895 = vadd.f32 %v2120, %v3894
        %v3896 = vpop.f32.mrf.mxu0
        %3897 = vmatprep.mubr.bf16.mxu0 0
        %3898 = vmatmul.mubr.bf16.gmra.mxu0 %v3549
        %v3899 = vpop.f32.mrf.mxu0
        %v3900 = vadd.f32 %v2120, %v3899
        %v3901 = vpop.f32.mrf.mxu0
        %v3902 = vpop.f32.mrf.mxu0
        %v3903 = vadd.f32 %v2120, %v3902
        %v3904 = vpop.f32.mrf.mxu0
        %3905 = vmatprep.mubr.bf16.mxu0 0
        %3906 = vmatmul.mubr.bf16.gmra.mxu0 %v3552
        %v3907 = vpop.f32.mrf.mxu0
        %v3908 = vadd.f32 %v2120, %v3907
        %v3909 = vpop.f32.mrf.mxu0
        %v3910 = vpop.f32.mrf.mxu0
        %v3911 = vadd.f32 %v2120, %v3910
        %v3912 = vpop.f32.mrf.mxu0
        %3913 = vmatprep.mubr.bf16.mxu0 0
        %3914 = vmatmul.mubr.bf16.gmra.mxu0 %v3555
        %v3915 = vpop.f32.mrf.mxu0
        %v3916 = vadd.f32 %v2120, %v3915
        %v3917 = vpop.f32.mrf.mxu0
        %v3918 = vpop.f32.mrf.mxu0
        %v3919 = vadd.f32 %v2120, %v3918
        %v3920 = vpop.f32.mrf.mxu0
        %3921 = vmatprep.mubr.bf16.mxu0 0
        %3922 = vmatmul.mubr.bf16.gmra.mxu0 %v3558
        %v3923 = vpop.f32.mrf.mxu0
        %v3924 = vadd.f32 %v2120, %v3923
        %v3925 = vpop.f32.mrf.mxu0
        %v3926 = vpop.f32.mrf.mxu0
        %v3927 = vadd.f32 %v2120, %v3926
        %v3928 = vpop.f32.mrf.mxu0
        %3929 = vmatprep.mubr.bf16.mxu0 0
        %3930 = vmatmul.mubr.bf16.gmra.mxu0 %v3561
        %v3931 = vpop.f32.mrf.mxu0
        %v3932 = vadd.f32 %v2120, %v3931
        %v3933 = vpop.f32.mrf.mxu0
        %v3934 = vpop.f32.mrf.mxu0
        %v3935 = vadd.f32 %v2120, %v3934
        %v3936 = vpop.f32.mrf.mxu0
        %3937 = vmatprep.mubr.bf16.mxu0 0
        %3938 = vmatmul.mubr.bf16.gmra.mxu0 %v3564
        %v3939 = vpop.f32.mrf.mxu0
        %v3940 = vadd.f32 %v2120, %v3939
        %v3941 = vpop.f32.mrf.mxu0
        %v3942 = vpop.f32.mrf.mxu0
        %v3943 = vadd.f32 %v2120, %v3942
        %v3944 = vpop.f32.mrf.mxu0
        %3945 = vmatprep.mubr.bf16.mxu0 0
        %3946 = vmatmul.mubr.bf16.gmra.mxu0 %v3567
        %v3947 = vpop.f32.mrf.mxu0
        %v3948 = vadd.f32 %v2120, %v3947
        %v3949 = vpop.f32.mrf.mxu0
        %v3950 = vpop.f32.mrf.mxu0
        %v3951 = vadd.f32 %v2120, %v3950
        %v3952 = vpop.f32.mrf.mxu0
        %3953 = vmatprep.mubr.bf16.mxu0 0
        %3954 = vmatmul.mubr.bf16.gmra.mxu0 %v3570
        %v3955 = vpop.f32.mrf.mxu0
        %v3956 = vadd.f32 %v2120, %v3955
        %v3957 = vpop.f32.mrf.mxu0
        %v3958 = vpop.f32.mrf.mxu0
        %v3959 = vadd.f32 %v2120, %v3958
        %v3960 = vpop.f32.mrf.mxu0
        %3961 = vmatprep.mubr.bf16.mxu0 0
        %3962 = vmatmul.mubr.bf16.gmra.mxu0 %v3573
        %v3963 = vpop.f32.mrf.mxu0
        %v3964 = vadd.f32 %v2120, %v3963
        %v3965 = vpop.f32.mrf.mxu0
        %v3966 = vpop.f32.mrf.mxu0
        %v3967 = vadd.f32 %v2120, %v3966
        %v3968 = vpop.f32.mrf.mxu0
        %3969 = vmatprep.mubr.bf16.mxu0 0
        %3970 = vmatmul.mubr.bf16.gmra.mxu0 %v3576
        %v3971 = vpop.f32.mrf.mxu0
        %v3972 = vadd.f32 %v2120, %v3971
        %v3973 = vpop.f32.mrf.mxu0
        %v3974 = vpop.f32.mrf.mxu0
        %v3975 = vadd.f32 %v2120, %v3974
        %v3976 = vpop.f32.mrf.mxu0
        %3977 = vmatprep.mubr.bf16.mxu0 0
        %3978 = vmatmul.mubr.bf16.gmra.mxu0 %v3579
        %v3979 = vpop.f32.mrf.mxu0
        %v3980 = vadd.f32 %v2120, %v3979
        %v3981 = vpop.f32.mrf.mxu0
        %v3982 = vpop.f32.mrf.mxu0
        %v3983 = vadd.f32 %v2120, %v3982
        %v3984 = vpop.f32.mrf.mxu0
        %3985 = vmatprep.mubr.bf16.mxu0 0
        %3986 = vmatmul.mubr.bf16.gmra.mxu0 %v3582
        %v3987 = vpop.f32.mrf.mxu0
        %v3988 = vadd.f32 %v2120, %v3987
        %v3989 = vpop.f32.mrf.mxu0
        %v3990 = vpop.f32.mrf.mxu0
        %v3991 = vadd.f32 %v2120, %v3990
        %v3992 = vpop.f32.mrf.mxu0
        %3993 = vmatprep.mubr.bf16.mxu0 0
        %3994 = vmatmul.mubr.bf16.gmra.mxu0 %v3585
        %v3995 = vpop.f32.mrf.mxu0
        %v3996 = vadd.f32 %v2120, %v3995
        %v3997 = vpop.f32.mrf.mxu0
        %v3998 = vpop.f32.mrf.mxu0
        %v3999 = vadd.f32 %v2120, %v3998
        %v4000 = vpop.f32.mrf.mxu0
        %4001 = vmatprep.mubr.bf16.mxu0 0
        %4002 = vmatmul.mubr.bf16.gmra.mxu0 %v3588
        %v4003 = vpop.f32.mrf.mxu0
        %v4004 = vadd.f32 %v2120, %v4003
        %v4005 = vpop.f32.mrf.mxu0
        %v4006 = vpop.f32.mrf.mxu0
        %v4007 = vadd.f32 %v2120, %v4006
        %v4008 = vpop.f32.mrf.mxu0
        %4009 = vmatprep.mubr.bf16.mxu0 0
        %4010 = vmatmul.mubr.bf16.gmra.mxu0 %v3591
        %v4011 = vpop.f32.mrf.mxu0
        %v4012 = vadd.f32 %v2120, %v4011
        %v4013 = vpop.f32.mrf.mxu0
        %v4014 = vpop.f32.mrf.mxu0
        %v4015 = vadd.f32 %v2120, %v4014
        %v4016 = vpop.f32.mrf.mxu0
        %4017 = vmatprep.mubr.bf16.mxu0 0
        %4018 = vmatmul.mubr.bf16.gmra.mxu0 %v3594
        %v4019 = vpop.f32.mrf.mxu0
        %v4020 = vadd.f32 %v2120, %v4019
        %v4021 = vpop.f32.mrf.mxu0
        %v4022 = vpop.f32.mrf.mxu0
        %v4023 = vadd.f32 %v2120, %v4022
        %v4024 = vpop.f32.mrf.mxu0
        %4025 = vmatprep.mubr.bf16.mxu0 0
        %4026 = vmatmul.mubr.bf16.gmra.mxu0 %v3597
        %v4027 = vpop.f32.mrf.mxu0
        %v4028 = vadd.f32 %v2120, %v4027
        %v4029 = vpop.f32.mrf.mxu0
        %v4030 = vpop.f32.mrf.mxu0
        %v4031 = vadd.f32 %v2120, %v4030
        %v4032 = vpop.f32.mrf.mxu0
        %4033 = vmatprep.mubr.bf16.mxu0 0
        %4034 = vmatmul.mubr.bf16.gmra.mxu0 %v3600
        %v4035 = vpop.f32.mrf.mxu0
        %v4036 = vadd.f32 %v2120, %v4035
        %v4037 = vpop.f32.mrf.mxu0
        %v4038 = vpop.f32.mrf.mxu0
        %v4039 = vadd.f32 %v2120, %v4038
        %v4040 = vpop.f32.mrf.mxu0
        %4041 = vmatprep.mubr.bf16.mxu0 0
        %4042 = vmatmul.mubr.bf16.gmra.mxu0 %v3603
        %v4043 = vpop.f32.mrf.mxu0
        %v4044 = vadd.f32 %v2120, %v4043
        %v4045 = vpop.f32.mrf.mxu0
        %v4046 = vpop.f32.mrf.mxu0
        %v4047 = vadd.f32 %v2120, %v4046
        %v4048 = vpop.f32.mrf.mxu0
        %4049 = vmatprep.mubr.bf16.mxu0 0
        %4050 = vmatmul.mubr.bf16.gmra.mxu0 %v3606
        %v4051 = vpop.f32.mrf.mxu0
        %v4052 = vadd.f32 %v2120, %v4051
        %v4053 = vpop.f32.mrf.mxu0
        %v4054 = vpop.f32.mrf.mxu0
        %v4055 = vadd.f32 %v2120, %v4054
        %v4056 = vpop.f32.mrf.mxu0
        %4057 = vmatprep.mubr.bf16.mxu0 0
        %4058 = vmatmul.mubr.bf16.gmra.mxu0 %v3609
        %v4059 = vpop.f32.mrf.mxu0
        %v4060 = vadd.f32 %v2120, %v4059
        %v4061 = vpop.f32.mrf.mxu0
        %v4062 = vpop.f32.mrf.mxu0
        %v4063 = vadd.f32 %v2120, %v4062
        %v4064 = vpop.f32.mrf.mxu0
        %4065 = vmatprep.mubr.bf16.mxu0 0
        %4066 = vmatmul.mubr.bf16.gmra.mxu0 %v3612
        %v4067 = vpop.f32.mrf.mxu0
        %v4068 = vadd.f32 %v2120, %v4067
        %v4069 = vpop.f32.mrf.mxu0
        %v4070 = vpop.f32.mrf.mxu0
        %v4071 = vadd.f32 %v2120, %v4070
        %v4072 = vpop.f32.mrf.mxu0
        %4073 = vmatprep.mubr.bf16.mxu0 0
        %4074 = vmatmul.mubr.bf16.gmra.mxu0 %v3615
        %v4075 = vpop.f32.mrf.mxu0
        %v4076 = vadd.f32 %v2120, %v4075
        %v4077 = vpop.f32.mrf.mxu0
        %v4078 = vpop.f32.mrf.mxu0
        %v4079 = vadd.f32 %v2120, %v4078
        %v4080 = vpop.f32.mrf.mxu0
        %4081 = vmatprep.mubr.bf16.mxu0 0
        %4082 = vmatmul.mubr.bf16.gmra.mxu0 %v3618
        %v4083 = vpop.f32.mrf.mxu0
        %v4084 = vadd.f32 %v2120, %v4083
        %v4085 = vpop.f32.mrf.mxu0
        %v4086 = vpop.f32.mrf.mxu0
        %v4087 = vadd.f32 %v2120, %v4086
        %v4088 = vpop.f32.mrf.mxu0
        %4089 = vmatprep.mubr.bf16.mxu0 0
        %4090 = vmatmul.mubr.bf16.gmra.mxu0 %v3621
        %v4091 = vpop.f32.mrf.mxu0
        %v4092 = vadd.f32 %v2120, %v4091
        %v4093 = vpop.f32.mrf.mxu0
        %v4094 = vpop.f32.mrf.mxu0
        %v4095 = vadd.f32 %v2120, %v4094
        %v4096 = vpop.f32.mrf.mxu0
        %4097 = vmatprep.mubr.bf16.mxu0 0
        %4098 = vmatmul.mubr.bf16.gmra.mxu0 %v3624
        %v4099 = vpop.f32.mrf.mxu0
        %v4100 = vadd.f32 %v2120, %v4099
        %v4101 = vpop.f32.mrf.mxu0
        %v4102 = vpop.f32.mrf.mxu0
        %v4103 = vadd.f32 %v2120, %v4102
        %v4104 = vpop.f32.mrf.mxu0
        %4105 = vmatprep.mubr.bf16.mxu0 0
        %4106 = vmatmul.mubr.bf16.gmra.mxu0 %v3627
        %v4107 = vpop.f32.mrf.mxu0
        %v4108 = vadd.f32 %v2120, %v4107
        %v4109 = vpop.f32.mrf.mxu0
        %v4110 = vpop.f32.mrf.mxu0
        %v4111 = vadd.f32 %v2120, %v4110
        %v4112 = vpop.f32.mrf.mxu0
        %4113 = vmatprep.mubr.bf16.mxu0 0
        %4114 = vmatmul.mubr.bf16.gmra.mxu0 %v3630
        %v4115 = vpop.f32.mrf.mxu0
        %v4116 = vadd.f32 %v2120, %v4115
        %v4117 = vpop.f32.mrf.mxu0
        %v4118 = vpop.f32.mrf.mxu0
        %v4119 = vadd.f32 %v2120, %v4118
        %v4120 = vpop.f32.mrf.mxu0
        %4121 = vmatprep.mubr.bf16.mxu0 0
        %4122 = vmatmul.mubr.bf16.gmra.mxu0 %v3633
        %v4123 = vpop.f32.mrf.mxu0
        %v4124 = vadd.f32 %v2120, %v4123
        %v4125 = vpop.f32.mrf.mxu0
        %v4126 = vpop.f32.mrf.mxu0
        %v4127 = vadd.f32 %v2120, %v4126
        %v4128 = vpop.f32.mrf.mxu0
        %4129 = vmatprep.mubr.bf16.mxu0 0
        %4130 = vmatmul.mubr.bf16.gmra.mxu0 %v3636
        %v4131 = vpop.f32.mrf.mxu0
        %v4132 = vadd.f32 %v2120, %v4131
        %v4133 = vpop.f32.mrf.mxu0
        %v4134 = vpop.f32.mrf.mxu0
        %v4135 = vadd.f32 %v2120, %v4134
        %v4136 = vpop.f32.mrf.mxu0
        %4137 = vmatprep.mubr.bf16.mxu0 0
        %4138 = vmatmul.mubr.bf16.gmra.mxu0 %v3639
        %v4139 = vpop.f32.mrf.mxu0
        %v4140 = vadd.f32 %v2120, %v4139
        %v4141 = vpop.f32.mrf.mxu0
        %v4142 = vpop.f32.mrf.mxu0
        %v4143 = vadd.f32 %v2120, %v4142
        %v4144 = vpop.f32.mrf.mxu0
        %4145 = vmatprep.mubr.bf16.mxu0 0
        %4146 = vmatmul.mubr.bf16.gmra.mxu0 %v3642
        %v4147 = vpop.f32.mrf.mxu0
        %v4148 = vadd.f32 %v2120, %v4147
        %v4149 = vpop.f32.mrf.mxu0
        %v4150 = vpop.f32.mrf.mxu0
        %v4151 = vadd.f32 %v2120, %v4150
        %v4152 = vpop.f32.mrf.mxu0
        %4153 = vmatprep.mubr.bf16.mxu0 0
        %4154 = vmatmul.mubr.bf16.gmra.mxu0 %v3645
        %v4155 = vpop.f32.mrf.mxu0
        %v4156 = vadd.f32 %v2120, %v4155
        %v4157 = vpop.f32.mrf.mxu0
        %v4158 = vpop.f32.mrf.mxu0
        %v4159 = vadd.f32 %v2120, %v4158
        %v4160 = vpop.f32.mrf.mxu0
        %4161 = vmatprep.mubr.bf16.mxu0 0
        %4162 = vmatmul.mubr.bf16.gmra.mxu0 %v3648
        %v4163 = vpop.f32.mrf.mxu0
        %v4164 = vadd.f32 %v2120, %v4163
        %v4165 = vpop.f32.mrf.mxu0
        %v4166 = vpop.f32.mrf.mxu0
        %v4167 = vadd.f32 %v2120, %v4166
        %v4168 = vpop.f32.mrf.mxu0
        %4169 = vmatprep.mubr.bf16.mxu0 0
        %4170 = vmatmul.mubr.bf16.gmra.mxu0 %v3651
        %v4171 = vpop.f32.mrf.mxu0
        %v4172 = vadd.f32 %v2120, %v4171
        %v4173 = vpop.f32.mrf.mxu0
        %v4174 = vpop.f32.mrf.mxu0
        %v4175 = vadd.f32 %v2120, %v4174
        %v4176 = vpop.f32.mrf.mxu0
        %4177 = vmatprep.mubr.bf16.mxu0 0
        %4178 = vmatmul.mubr.bf16.gmra.mxu0 %v3654
        %v4179 = vpop.f32.mrf.mxu0
        %v4180 = vadd.f32 %v2120, %v4179
        %v4181 = vpop.f32.mrf.mxu0
        %v4182 = vpop.f32.mrf.mxu0
        %v4183 = vadd.f32 %v2120, %v4182
        %v4184 = vpop.f32.mrf.mxu0
        %4185 = vmatprep.mubr.bf16.mxu0 0
        %4186 = vmatmul.mubr.bf16.gmra.mxu0 %v3657
        %v4187 = vpop.f32.mrf.mxu0
        %v4188 = vadd.f32 %v2120, %v4187
        %v4189 = vpop.f32.mrf.mxu0
        %v4190 = vpop.f32.mrf.mxu0
        %v4191 = vadd.f32 %v2120, %v4190
        %v4192 = vpop.f32.mrf.mxu0
        %4193 = vmatprep.mubr.bf16.mxu0 0
        %4194 = vmatmul.mubr.bf16.gmra.mxu0 %v3660
        %v4195 = vpop.f32.mrf.mxu0
        %v4196 = vadd.f32 %v2120, %v4195
        %v4197 = vpop.f32.mrf.mxu0
        %v4198 = vpop.f32.mrf.mxu0
        %v4199 = vadd.f32 %v2120, %v4198
        %v4200 = vpop.f32.mrf.mxu0
        %4201 = vmatprep.mubr.bf16.mxu0 0
        %4202 = vmatmul.mubr.bf16.gmra.mxu0 %v3663
        %v4203 = vpop.f32.mrf.mxu0
        %v4204 = vadd.f32 %v2120, %v4203
        %v4205 = vpop.f32.mrf.mxu0
        %v4206 = vpop.f32.mrf.mxu0
        %v4207 = vadd.f32 %v2120, %v4206
        %v4208 = vpop.f32.mrf.mxu0
        %4209 = vdwg.mxu0
        %v4210 = vtanh.pop %v3700
        %v4211 = vtanh.pop %v3703
        %v4212 = vtanh.pop %v3708
        %v4213 = vtanh.pop %v3711
        %v4214 = vtanh.pop %v3716
        %v4215 = vtanh.pop %v3719
        %v4216 = vtanh.pop %v3724
        %v4217 = vtanh.pop %v3727
        %v4218 = vtanh.pop %v3732
        %v4219 = vtanh.pop %v3735
        %v4220 = vtanh.pop %v3740
        %v4221 = vtanh.pop %v3743
        %v4222 = vtanh.pop %v3748
        %v4223 = vtanh.pop %v3751
        %v4224 = vtanh.pop %v3756
        %v4225 = vtanh.pop %v3759
        %v4226 = vtanh.pop %v3764
        %v4227 = vtanh.pop %v3767
        %v4228 = vtanh.pop %v3772
        %v4229 = vtanh.pop %v3775
        %v4230 = vtanh.pop %v3780
        %v4231 = vtanh.pop %v3783
        %v4232 = vtanh.pop %v3788
        %v4233 = vtanh.pop %v3791
        %v4234 = vtanh.pop %v3796
        %v4235 = vtanh.pop %v3799
        %v4236 = vtanh.pop %v3804
        %v4237 = vtanh.pop %v3807
        %v4238 = vtanh.pop %v3812
        %v4239 = vtanh.pop %v3815
        %v4240 = vtanh.pop %v3820
        %v4241 = vtanh.pop %v3823
        %v4242 = vtanh.pop %v3828
        %v4243 = vtanh.pop %v3831
        %v4244 = vtanh.pop %v3836
        %v4245 = vtanh.pop %v3839
        %v4246 = vtanh.pop %v3844
        %v4247 = vtanh.pop %v3847
        %v4248 = vtanh.pop %v3852
        %v4249 = vtanh.pop %v3855
        %v4250 = vtanh.pop %v3860
        %v4251 = vtanh.pop %v3863
        %v4252 = vtanh.pop %v3868
        %v4253 = vtanh.pop %v3871
        %v4254 = vtanh.pop %v3876
        %v4255 = vtanh.pop %v3879
        %v4256 = vtanh.pop %v3884
        %v4257 = vtanh.pop %v3887
        %v4258 = vtanh.pop %v3892
        %v4259 = vtanh.pop %v3895
        %v4260 = vtanh.pop %v3900
        %v4261 = vtanh.pop %v3903
        %v4262 = vtanh.pop %v3908
        %v4263 = vtanh.pop %v3911
        %v4264 = vtanh.pop %v3916
        %v4265 = vtanh.pop %v3919
        %v4266 = vtanh.pop %v3924
        %v4267 = vtanh.pop %v3927
        %v4268 = vtanh.pop %v3932
        %v4269 = vtanh.pop %v3935
        %v4270 = vtanh.pop %v3940
        %v4271 = vtanh.pop %v3943
        %v4272 = vtanh.pop %v3948
        %v4273 = vtanh.pop %v3951
        %v4274 = vtanh.pop %v3956
        %v4275 = vtanh.pop %v3959
        %v4276 = vtanh.pop %v3964
        %v4277 = vtanh.pop %v3967
        %v4278 = vtanh.pop %v3972
        %v4279 = vtanh.pop %v3975
        %v4280 = vtanh.pop %v3980
        %v4281 = vtanh.pop %v3983
        %v4282 = vtanh.pop %v3988
        %v4283 = vtanh.pop %v3991
        %v4284 = vtanh.pop %v3996
        %v4285 = vtanh.pop %v3999
        %v4286 = vtanh.pop %v4004
        %v4287 = vtanh.pop %v4007
        %v4288 = vtanh.pop %v4012
        %v4289 = vtanh.pop %v4015
        %v4290 = vtanh.pop %v4020
        %v4291 = vtanh.pop %v4023
        %v4292 = vtanh.pop %v4028
        %v4293 = vtanh.pop %v4031
        %v4294 = vtanh.pop %v4036
        %v4295 = vtanh.pop %v4039
        %v4296 = vtanh.pop %v4044
        %v4297 = vtanh.pop %v4047
        %v4298 = vtanh.pop %v4052
        %v4299 = vtanh.pop %v4055
        %v4300 = vtanh.pop %v4060
        %v4301 = vtanh.pop %v4063
        %v4302 = vtanh.pop %v4068
        %v4303 = vtanh.pop %v4071
        %v4304 = vtanh.pop %v4076
        %v4305 = vtanh.pop %v4079
        %v4306 = vtanh.pop %v4084
        %v4307 = vtanh.pop %v4087
        %v4308 = vtanh.pop %v4092
        %v4309 = vtanh.pop %v4095
        %v4310 = vtanh.pop %v4100
        %v4311 = vtanh.pop %v4103
        %v4312 = vtanh.pop %v4108
        %v4313 = vtanh.pop %v4111
        %v4314 = vtanh.pop %v4116
        %v4315 = vtanh.pop %v4119
        %v4316 = vtanh.pop %v4124
        %v4317 = vtanh.pop %v4127
        %v4318 = vtanh.pop %v4132
        %v4319 = vtanh.pop %v4135
        %v4320 = vtanh.pop %v4140
        %v4321 = vtanh.pop %v4143
        %v4322 = vtanh.pop %v4148
        %v4323 = vtanh.pop %v4151
        %v4324 = vtanh.pop %v4156
        %v4325 = vtanh.pop %v4159
        %v4326 = vtanh.pop %v4164
        %v4327 = vtanh.pop %v4167
        %v4328 = vtanh.pop %v4172
        %v4329 = vtanh.pop %v4175
        %v4330 = vtanh.pop %v4180
        %v4331 = vtanh.pop %v4183
        %v4332 = vtanh.pop %v4188
        %v4333 = vtanh.pop %v4191
        %v4334 = vtanh.pop %v4196
        %v4335 = vtanh.pop %v4199
        %v4336 = vtanh.pop %v4204
        %v4337 = vtanh.pop %v4207
        %v4338 = vmul.f32 %v4210, %v2575
        %v4339 = vmul.f32 %v4211, %v2575
        %v4340 = vmul.f32 %v4212, %v2575
        %v4341 = vmul.f32 %v4213, %v2575
        %v4342 = vmul.f32 %v4214, %v2575
        %v4343 = vmul.f32 %v4215, %v2575
        %v4344 = vmul.f32 %v4216, %v2575
        %v4345 = vmul.f32 %v4217, %v2575
        %v4346 = vmul.f32 %v4218, %v2575
        %v4347 = vmul.f32 %v4219, %v2575
        %v4348 = vmul.f32 %v4220, %v2575
        %v4349 = vmul.f32 %v4221, %v2575
        %v4350 = vmul.f32 %v4222, %v2575
        %v4351 = vmul.f32 %v4223, %v2575
        %v4352 = vmul.f32 %v4224, %v2575
        %v4353 = vmul.f32 %v4225, %v2575
        %v4354 = vmul.f32 %v4226, %v2575
        %v4355 = vmul.f32 %v4227, %v2575
        %v4356 = vmul.f32 %v4228, %v2575
        %v4357 = vmul.f32 %v4229, %v2575
        %v4358 = vmul.f32 %v4230, %v2575
        %v4359 = vmul.f32 %v4231, %v2575
        %v4360 = vmul.f32 %v4232, %v2575
        %v4361 = vmul.f32 %v4233, %v2575
        %v4362 = vmul.f32 %v4234, %v2575
        %v4363 = vmul.f32 %v4235, %v2575
        %v4364 = vmul.f32 %v4236, %v2575
        %v4365 = vmul.f32 %v4237, %v2575
        %v4366 = vmul.f32 %v4238, %v2575
        %v4367 = vmul.f32 %v4239, %v2575
        %v4368 = vmul.f32 %v4240, %v2575
        %v4369 = vmul.f32 %v4241, %v2575
        %v4370 = vmul.f32 %v4242, %v2575
        %v4371 = vmul.f32 %v4243, %v2575
        %v4372 = vmul.f32 %v4244, %v2575
        %v4373 = vmul.f32 %v4245, %v2575
        %v4374 = vmul.f32 %v4246, %v2575
        %v4375 = vmul.f32 %v4247, %v2575
        %v4376 = vmul.f32 %v4248, %v2575
        %v4377 = vmul.f32 %v4249, %v2575
        %v4378 = vmul.f32 %v4250, %v2575
        %v4379 = vmul.f32 %v4251, %v2575
        %v4380 = vmul.f32 %v4252, %v2575
        %v4381 = vmul.f32 %v4253, %v2575
        %v4382 = vmul.f32 %v4254, %v2575
        %v4383 = vmul.f32 %v4255, %v2575
        %v4384 = vmul.f32 %v4256, %v2575
        %v4385 = vmul.f32 %v4257, %v2575
        %v4386 = vmul.f32 %v4258, %v2575
        %v4387 = vmul.f32 %v4259, %v2575
        %v4388 = vmul.f32 %v4260, %v2575
        %v4389 = vmul.f32 %v4261, %v2575
        %v4390 = vmul.f32 %v4262, %v2575
        %v4391 = vmul.f32 %v4263, %v2575
        %v4392 = vmul.f32 %v4264, %v2575
        %v4393 = vmul.f32 %v4265, %v2575
        %v4394 = vmul.f32 %v4266, %v2575
        %v4395 = vmul.f32 %v4267, %v2575
        %v4396 = vmul.f32 %v4268, %v2575
        %v4397 = vmul.f32 %v4269, %v2575
        %v4398 = vmul.f32 %v4270, %v2575
        %v4399 = vmul.f32 %v4271, %v2575
        %v4400 = vmul.f32 %v4272, %v2575
        %v4401 = vmul.f32 %v4273, %v2575
        %v4402 = vmul.f32 %v4274, %v2575
        %v4403 = vmul.f32 %v4275, %v2575
        %v4404 = vmul.f32 %v4276, %v2575
        %v4405 = vmul.f32 %v4277, %v2575
        %v4406 = vmul.f32 %v4278, %v2575
        %v4407 = vmul.f32 %v4279, %v2575
        %v4408 = vmul.f32 %v4280, %v2575
        %v4409 = vmul.f32 %v4281, %v2575
        %v4410 = vmul.f32 %v4282, %v2575
        %v4411 = vmul.f32 %v4283, %v2575
        %v4412 = vmul.f32 %v4284, %v2575
        %v4413 = vmul.f32 %v4285, %v2575
        %v4414 = vmul.f32 %v4286, %v2575
        %v4415 = vmul.f32 %v4287, %v2575
        %v4416 = vmul.f32 %v4288, %v2575
        %v4417 = vmul.f32 %v4289, %v2575
        %v4418 = vmul.f32 %v4290, %v2575
        %v4419 = vmul.f32 %v4291, %v2575
        %v4420 = vmul.f32 %v4292, %v2575
        %v4421 = vmul.f32 %v4293, %v2575
        %v4422 = vmul.f32 %v4294, %v2575
        %v4423 = vmul.f32 %v4295, %v2575
        %v4424 = vmul.f32 %v4296, %v2575
        %v4425 = vmul.f32 %v4297, %v2575
        %v4426 = vmul.f32 %v4298, %v2575
        %v4427 = vmul.f32 %v4299, %v2575
        %v4428 = vmul.f32 %v4300, %v2575
        %v4429 = vmul.f32 %v4301, %v2575
        %v4430 = vmul.f32 %v4302, %v2575
        %v4431 = vmul.f32 %v4303, %v2575
        %v4432 = vmul.f32 %v4304, %v2575
        %v4433 = vmul.f32 %v4305, %v2575
        %v4434 = vmul.f32 %v4306, %v2575
        %v4435 = vmul.f32 %v4307, %v2575
        %v4436 = vmul.f32 %v4308, %v2575
        %v4437 = vmul.f32 %v4309, %v2575
        %v4438 = vmul.f32 %v4310, %v2575
        %v4439 = vmul.f32 %v4311, %v2575
        %v4440 = vmul.f32 %v4312, %v2575
        %v4441 = vmul.f32 %v4313, %v2575
        %v4442 = vmul.f32 %v4314, %v2575
        %v4443 = vmul.f32 %v4315, %v2575
        %v4444 = vmul.f32 %v4316, %v2575
        %v4445 = vmul.f32 %v4317, %v2575
        %v4446 = vmul.f32 %v4318, %v2575
        %v4447 = vmul.f32 %v4319, %v2575
        %v4448 = vmul.f32 %v4320, %v2575
        %v4449 = vmul.f32 %v4321, %v2575
        %v4450 = vmul.f32 %v4322, %v2575
        %v4451 = vmul.f32 %v4323, %v2575
        %v4452 = vmul.f32 %v4324, %v2575
        %v4453 = vmul.f32 %v4325, %v2575
        %v4454 = vmul.f32 %v4326, %v2575
        %v4455 = vmul.f32 %v4327, %v2575
        %v4456 = vmul.f32 %v4328, %v2575
        %v4457 = vmul.f32 %v4329, %v2575
        %v4458 = vmul.f32 %v4330, %v2575
        %v4459 = vmul.f32 %v4331, %v2575
        %v4460 = vmul.f32 %v4332, %v2575
        %v4461 = vmul.f32 %v4333, %v2575
        %v4462 = vmul.f32 %v4334, %v2575
        %v4463 = vmul.f32 %v4335, %v2575
        %v4464 = vmul.f32 %v4336, %v2575
        %v4465 = vmul.f32 %v4337, %v2575
        %v4466 = vsel %vm859, %v4338, 0.0
        %4467 = vadd.xlane.f32.xlu0 %v4466
        %v4468 = vpop.xlane.xlu0 %4467
        %v4469 = vsel %vm859, %v4339, 0.0
        %4470 = vadd.xlane.f32.xlu0 %v4469
        %v4471 = vpop.xlane.xlu0 %4470
        %v4472 = vsel %vm859, %v4340, 0.0
        %4473 = vadd.xlane.f32.xlu0 %v4472
        %v4474 = vpop.xlane.xlu0 %4473
        %v4475 = vsel %vm859, %v4341, 0.0
        %4476 = vadd.xlane.f32.xlu0 %v4475
        %v4477 = vpop.xlane.xlu0 %4476
        %v4478 = vsel %vm859, %v4342, 0.0
        %4479 = vadd.xlane.f32.xlu0 %v4478
        %v4480 = vpop.xlane.xlu0 %4479
        %v4481 = vsel %vm859, %v4343, 0.0
        %4482 = vadd.xlane.f32.xlu0 %v4481
        %v4483 = vpop.xlane.xlu0 %4482
        %v4484 = vsel %vm859, %v4344, 0.0
        %4485 = vadd.xlane.f32.xlu0 %v4484
        %v4486 = vpop.xlane.xlu0 %4485
        %v4487 = vsel %vm859, %v4345, 0.0
        %4488 = vadd.xlane.f32.xlu0 %v4487
        %v4489 = vpop.xlane.xlu0 %4488
        %v4490 = vsel %vm859, %v4346, 0.0
        %4491 = vadd.xlane.f32.xlu0 %v4490
        %v4492 = vpop.xlane.xlu0 %4491
        %v4493 = vsel %vm859, %v4347, 0.0
        %4494 = vadd.xlane.f32.xlu0 %v4493
        %v4495 = vpop.xlane.xlu0 %4494
        %v4496 = vsel %vm859, %v4348, 0.0
        %4497 = vadd.xlane.f32.xlu0 %v4496
        %v4498 = vpop.xlane.xlu0 %4497
        %v4499 = vsel %vm859, %v4349, 0.0
        %4500 = vadd.xlane.f32.xlu0 %v4499
        %v4501 = vpop.xlane.xlu0 %4500
        %v4502 = vsel %vm859, %v4350, 0.0
        %4503 = vadd.xlane.f32.xlu0 %v4502
        %v4504 = vpop.xlane.xlu0 %4503
        %v4505 = vsel %vm859, %v4351, 0.0
        %4506 = vadd.xlane.f32.xlu0 %v4505
        %v4507 = vpop.xlane.xlu0 %4506
        %v4508 = vsel %vm859, %v4352, 0.0
        %4509 = vadd.xlane.f32.xlu0 %v4508
        %v4510 = vpop.xlane.xlu0 %4509
        %v4511 = vsel %vm859, %v4353, 0.0
        %4512 = vadd.xlane.f32.xlu0 %v4511
        %v4513 = vpop.xlane.xlu0 %4512
        %v4514 = vsel %vm859, %v4354, 0.0
        %4515 = vadd.xlane.f32.xlu0 %v4514
        %v4516 = vpop.xlane.xlu0 %4515
        %v4517 = vsel %vm859, %v4355, 0.0
        %4518 = vadd.xlane.f32.xlu0 %v4517
        %v4519 = vpop.xlane.xlu0 %4518
        %v4520 = vsel %vm859, %v4356, 0.0
        %4521 = vadd.xlane.f32.xlu0 %v4520
        %v4522 = vpop.xlane.xlu0 %4521
        %v4523 = vsel %vm859, %v4357, 0.0
        %4524 = vadd.xlane.f32.xlu0 %v4523
        %v4525 = vpop.xlane.xlu0 %4524
        %v4526 = vsel %vm859, %v4358, 0.0
        %4527 = vadd.xlane.f32.xlu0 %v4526
        %v4528 = vpop.xlane.xlu0 %4527
        %v4529 = vsel %vm859, %v4359, 0.0
        %4530 = vadd.xlane.f32.xlu0 %v4529
        %v4531 = vpop.xlane.xlu0 %4530
        %v4532 = vsel %vm859, %v4360, 0.0
        %4533 = vadd.xlane.f32.xlu0 %v4532
        %v4534 = vpop.xlane.xlu0 %4533
        %v4535 = vsel %vm859, %v4361, 0.0
        %4536 = vadd.xlane.f32.xlu0 %v4535
        %v4537 = vpop.xlane.xlu0 %4536
        %v4538 = vsel %vm859, %v4362, 0.0
        %4539 = vadd.xlane.f32.xlu0 %v4538
        %v4540 = vpop.xlane.xlu0 %4539
        %v4541 = vsel %vm859, %v4363, 0.0
        %4542 = vadd.xlane.f32.xlu0 %v4541
        %v4543 = vpop.xlane.xlu0 %4542
        %v4544 = vsel %vm859, %v4364, 0.0
        %4545 = vadd.xlane.f32.xlu0 %v4544
        %v4546 = vpop.xlane.xlu0 %4545
        %v4547 = vsel %vm859, %v4365, 0.0
        %4548 = vadd.xlane.f32.xlu0 %v4547
        %v4549 = vpop.xlane.xlu0 %4548
        %v4550 = vsel %vm859, %v4366, 0.0
        %4551 = vadd.xlane.f32.xlu0 %v4550
        %v4552 = vpop.xlane.xlu0 %4551
        %v4553 = vsel %vm859, %v4367, 0.0
        %4554 = vadd.xlane.f32.xlu0 %v4553
        %v4555 = vpop.xlane.xlu0 %4554
        %v4556 = vsel %vm859, %v4368, 0.0
        %4557 = vadd.xlane.f32.xlu0 %v4556
        %v4558 = vpop.xlane.xlu0 %4557
        %v4559 = vsel %vm859, %v4369, 0.0
        %4560 = vadd.xlane.f32.xlu0 %v4559
        %v4561 = vpop.xlane.xlu0 %4560
        %v4562 = vsel %vm859, %v4370, 0.0
        %4563 = vadd.xlane.f32.xlu0 %v4562
        %v4564 = vpop.xlane.xlu0 %4563
        %v4565 = vsel %vm859, %v4371, 0.0
        %4566 = vadd.xlane.f32.xlu0 %v4565
        %v4567 = vpop.xlane.xlu0 %4566
        %v4568 = vsel %vm859, %v4372, 0.0
        %4569 = vadd.xlane.f32.xlu0 %v4568
        %v4570 = vpop.xlane.xlu0 %4569
        %v4571 = vsel %vm859, %v4373, 0.0
        %4572 = vadd.xlane.f32.xlu0 %v4571
        %v4573 = vpop.xlane.xlu0 %4572
        %v4574 = vsel %vm859, %v4374, 0.0
        %4575 = vadd.xlane.f32.xlu0 %v4574
        %v4576 = vpop.xlane.xlu0 %4575
        %v4577 = vsel %vm859, %v4375, 0.0
        %4578 = vadd.xlane.f32.xlu0 %v4577
        %v4579 = vpop.xlane.xlu0 %4578
        %v4580 = vsel %vm859, %v4376, 0.0
        %4581 = vadd.xlane.f32.xlu0 %v4580
        %v4582 = vpop.xlane.xlu0 %4581
        %v4583 = vsel %vm859, %v4377, 0.0
        %4584 = vadd.xlane.f32.xlu0 %v4583
        %v4585 = vpop.xlane.xlu0 %4584
        %v4586 = vsel %vm859, %v4378, 0.0
        %4587 = vadd.xlane.f32.xlu0 %v4586
        %v4588 = vpop.xlane.xlu0 %4587
        %v4589 = vsel %vm859, %v4379, 0.0
        %4590 = vadd.xlane.f32.xlu0 %v4589
        %v4591 = vpop.xlane.xlu0 %4590
        %v4592 = vsel %vm859, %v4380, 0.0
        %4593 = vadd.xlane.f32.xlu0 %v4592
        %v4594 = vpop.xlane.xlu0 %4593
        %v4595 = vsel %vm859, %v4381, 0.0
        %4596 = vadd.xlane.f32.xlu0 %v4595
        %v4597 = vpop.xlane.xlu0 %4596
        %v4598 = vsel %vm859, %v4382, 0.0
        %4599 = vadd.xlane.f32.xlu0 %v4598
        %v4600 = vpop.xlane.xlu0 %4599
        %v4601 = vsel %vm859, %v4383, 0.0
        %4602 = vadd.xlane.f32.xlu0 %v4601
        %v4603 = vpop.xlane.xlu0 %4602
        %v4604 = vsel %vm859, %v4384, 0.0
        %4605 = vadd.xlane.f32.xlu0 %v4604
        %v4606 = vpop.xlane.xlu0 %4605
        %v4607 = vsel %vm859, %v4385, 0.0
        %4608 = vadd.xlane.f32.xlu0 %v4607
        %v4609 = vpop.xlane.xlu0 %4608
        %v4610 = vsel %vm859, %v4386, 0.0
        %4611 = vadd.xlane.f32.xlu0 %v4610
        %v4612 = vpop.xlane.xlu0 %4611
        %v4613 = vsel %vm859, %v4387, 0.0
        %4614 = vadd.xlane.f32.xlu0 %v4613
        %v4615 = vpop.xlane.xlu0 %4614
        %v4616 = vsel %vm859, %v4388, 0.0
        %4617 = vadd.xlane.f32.xlu0 %v4616
        %v4618 = vpop.xlane.xlu0 %4617
        %v4619 = vsel %vm859, %v4389, 0.0
        %4620 = vadd.xlane.f32.xlu0 %v4619
        %v4621 = vpop.xlane.xlu0 %4620
        %v4622 = vsel %vm859, %v4390, 0.0
        %4623 = vadd.xlane.f32.xlu0 %v4622
        %v4624 = vpop.xlane.xlu0 %4623
        %v4625 = vsel %vm859, %v4391, 0.0
        %4626 = vadd.xlane.f32.xlu0 %v4625
        %v4627 = vpop.xlane.xlu0 %4626
        %v4628 = vsel %vm859, %v4392, 0.0
        %4629 = vadd.xlane.f32.xlu0 %v4628
        %v4630 = vpop.xlane.xlu0 %4629
        %v4631 = vsel %vm859, %v4393, 0.0
        %4632 = vadd.xlane.f32.xlu0 %v4631
        %v4633 = vpop.xlane.xlu0 %4632
        %v4634 = vsel %vm859, %v4394, 0.0
        %4635 = vadd.xlane.f32.xlu0 %v4634
        %v4636 = vpop.xlane.xlu0 %4635
        %v4637 = vsel %vm859, %v4395, 0.0
        %4638 = vadd.xlane.f32.xlu0 %v4637
        %v4639 = vpop.xlane.xlu0 %4638
        %v4640 = vsel %vm859, %v4396, 0.0
        %4641 = vadd.xlane.f32.xlu0 %v4640
        %v4642 = vpop.xlane.xlu0 %4641
        %v4643 = vsel %vm859, %v4397, 0.0
        %4644 = vadd.xlane.f32.xlu0 %v4643
        %v4645 = vpop.xlane.xlu0 %4644
        %v4646 = vsel %vm859, %v4398, 0.0
        %4647 = vadd.xlane.f32.xlu0 %v4646
        %v4648 = vpop.xlane.xlu0 %4647
        %v4649 = vsel %vm859, %v4399, 0.0
        %4650 = vadd.xlane.f32.xlu0 %v4649
        %v4651 = vpop.xlane.xlu0 %4650
        %v4652 = vsel %vm859, %v4400, 0.0
        %4653 = vadd.xlane.f32.xlu0 %v4652
        %v4654 = vpop.xlane.xlu0 %4653
        %v4655 = vsel %vm859, %v4401, 0.0
        %4656 = vadd.xlane.f32.xlu0 %v4655
        %v4657 = vpop.xlane.xlu0 %4656
        %v4658 = vsel %vm859, %v4402, 0.0
        %4659 = vadd.xlane.f32.xlu0 %v4658
        %v4660 = vpop.xlane.xlu0 %4659
        %v4661 = vsel %vm859, %v4403, 0.0
        %4662 = vadd.xlane.f32.xlu0 %v4661
        %v4663 = vpop.xlane.xlu0 %4662
        %v4664 = vsel %vm859, %v4404, 0.0
        %4665 = vadd.xlane.f32.xlu0 %v4664
        %v4666 = vpop.xlane.xlu0 %4665
        %v4667 = vsel %vm859, %v4405, 0.0
        %4668 = vadd.xlane.f32.xlu0 %v4667
        %v4669 = vpop.xlane.xlu0 %4668
        %v4670 = vsel %vm859, %v4406, 0.0
        %4671 = vadd.xlane.f32.xlu0 %v4670
        %v4672 = vpop.xlane.xlu0 %4671
        %v4673 = vsel %vm859, %v4407, 0.0
        %4674 = vadd.xlane.f32.xlu0 %v4673
        %v4675 = vpop.xlane.xlu0 %4674
        %v4676 = vsel %vm859, %v4408, 0.0
        %4677 = vadd.xlane.f32.xlu0 %v4676
        %v4678 = vpop.xlane.xlu0 %4677
        %v4679 = vsel %vm859, %v4409, 0.0
        %4680 = vadd.xlane.f32.xlu0 %v4679
        %v4681 = vpop.xlane.xlu0 %4680
        %v4682 = vsel %vm859, %v4410, 0.0
        %4683 = vadd.xlane.f32.xlu0 %v4682
        %v4684 = vpop.xlane.xlu0 %4683
        %v4685 = vsel %vm859, %v4411, 0.0
        %4686 = vadd.xlane.f32.xlu0 %v4685
        %v4687 = vpop.xlane.xlu0 %4686
        %v4688 = vsel %vm859, %v4412, 0.0
        %4689 = vadd.xlane.f32.xlu0 %v4688
        %v4690 = vpop.xlane.xlu0 %4689
        %v4691 = vsel %vm859, %v4413, 0.0
        %4692 = vadd.xlane.f32.xlu0 %v4691
        %v4693 = vpop.xlane.xlu0 %4692
        %v4694 = vsel %vm859, %v4414, 0.0
        %4695 = vadd.xlane.f32.xlu0 %v4694
        %v4696 = vpop.xlane.xlu0 %4695
        %v4697 = vsel %vm859, %v4415, 0.0
        %4698 = vadd.xlane.f32.xlu0 %v4697
        %v4699 = vpop.xlane.xlu0 %4698
        %v4700 = vsel %vm859, %v4416, 0.0
        %4701 = vadd.xlane.f32.xlu0 %v4700
        %v4702 = vpop.xlane.xlu0 %4701
        %v4703 = vsel %vm859, %v4417, 0.0
        %4704 = vadd.xlane.f32.xlu0 %v4703
        %v4705 = vpop.xlane.xlu0 %4704
        %v4706 = vsel %vm859, %v4418, 0.0
        %4707 = vadd.xlane.f32.xlu0 %v4706
        %v4708 = vpop.xlane.xlu0 %4707
        %v4709 = vsel %vm859, %v4419, 0.0
        %4710 = vadd.xlane.f32.xlu0 %v4709
        %v4711 = vpop.xlane.xlu0 %4710
        %v4712 = vsel %vm859, %v4420, 0.0
        %4713 = vadd.xlane.f32.xlu0 %v4712
        %v4714 = vpop.xlane.xlu0 %4713
        %v4715 = vsel %vm859, %v4421, 0.0
        %4716 = vadd.xlane.f32.xlu0 %v4715
        %v4717 = vpop.xlane.xlu0 %4716
        %v4718 = vsel %vm859, %v4422, 0.0
        %4719 = vadd.xlane.f32.xlu0 %v4718
        %v4720 = vpop.xlane.xlu0 %4719
        %v4721 = vsel %vm859, %v4423, 0.0
        %4722 = vadd.xlane.f32.xlu0 %v4721
        %v4723 = vpop.xlane.xlu0 %4722
        %v4724 = vsel %vm859, %v4424, 0.0
        %4725 = vadd.xlane.f32.xlu0 %v4724
        %v4726 = vpop.xlane.xlu0 %4725
        %v4727 = vsel %vm859, %v4425, 0.0
        %4728 = vadd.xlane.f32.xlu0 %v4727
        %v4729 = vpop.xlane.xlu0 %4728
        %v4730 = vsel %vm859, %v4426, 0.0
        %4731 = vadd.xlane.f32.xlu0 %v4730
        %v4732 = vpop.xlane.xlu0 %4731
        %v4733 = vsel %vm859, %v4427, 0.0
        %4734 = vadd.xlane.f32.xlu0 %v4733
        %v4735 = vpop.xlane.xlu0 %4734
        %v4736 = vsel %vm859, %v4428, 0.0
        %4737 = vadd.xlane.f32.xlu0 %v4736
        %v4738 = vpop.xlane.xlu0 %4737
        %v4739 = vsel %vm859, %v4429, 0.0
        %4740 = vadd.xlane.f32.xlu0 %v4739
        %v4741 = vpop.xlane.xlu0 %4740
        %v4742 = vsel %vm859, %v4430, 0.0
        %4743 = vadd.xlane.f32.xlu0 %v4742
        %v4744 = vpop.xlane.xlu0 %4743
        %v4745 = vsel %vm859, %v4431, 0.0
        %4746 = vadd.xlane.f32.xlu0 %v4745
        %v4747 = vpop.xlane.xlu0 %4746
        %v4748 = vsel %vm859, %v4432, 0.0
        %4749 = vadd.xlane.f32.xlu0 %v4748
        %v4750 = vpop.xlane.xlu0 %4749
        %v4751 = vsel %vm859, %v4433, 0.0
        %4752 = vadd.xlane.f32.xlu0 %v4751
        %v4753 = vpop.xlane.xlu0 %4752
        %v4754 = vsel %vm859, %v4434, 0.0
        %4755 = vadd.xlane.f32.xlu0 %v4754
        %v4756 = vpop.xlane.xlu0 %4755
        %v4757 = vsel %vm859, %v4435, 0.0
        %4758 = vadd.xlane.f32.xlu0 %v4757
        %v4759 = vpop.xlane.xlu0 %4758
        %v4760 = vsel %vm859, %v4436, 0.0
        %4761 = vadd.xlane.f32.xlu0 %v4760
        %v4762 = vpop.xlane.xlu0 %4761
        %v4763 = vsel %vm859, %v4437, 0.0
        %4764 = vadd.xlane.f32.xlu0 %v4763
        %v4765 = vpop.xlane.xlu0 %4764
        %v4766 = vsel %vm859, %v4438, 0.0
        %4767 = vadd.xlane.f32.xlu0 %v4766
        %v4768 = vpop.xlane.xlu0 %4767
        %v4769 = vsel %vm859, %v4439, 0.0
        %4770 = vadd.xlane.f32.xlu0 %v4769
        %v4771 = vpop.xlane.xlu0 %4770
        %v4772 = vsel %vm859, %v4440, 0.0
        %4773 = vadd.xlane.f32.xlu0 %v4772
        %v4774 = vpop.xlane.xlu0 %4773
        %v4775 = vsel %vm859, %v4441, 0.0
        %4776 = vadd.xlane.f32.xlu0 %v4775
        %v4777 = vpop.xlane.xlu0 %4776
        %v4778 = vsel %vm859, %v4442, 0.0
        %4779 = vadd.xlane.f32.xlu0 %v4778
        %v4780 = vpop.xlane.xlu0 %4779
        %v4781 = vsel %vm859, %v4443, 0.0
        %4782 = vadd.xlane.f32.xlu0 %v4781
        %v4783 = vpop.xlane.xlu0 %4782
        %v4784 = vsel %vm859, %v4444, 0.0
        %4785 = vadd.xlane.f32.xlu0 %v4784
        %v4786 = vpop.xlane.xlu0 %4785
        %v4787 = vsel %vm859, %v4445, 0.0
        %4788 = vadd.xlane.f32.xlu0 %v4787
        %v4789 = vpop.xlane.xlu0 %4788
        %v4790 = vsel %vm859, %v4446, 0.0
        %4791 = vadd.xlane.f32.xlu0 %v4790
        %v4792 = vpop.xlane.xlu0 %4791
        %v4793 = vsel %vm859, %v4447, 0.0
        %4794 = vadd.xlane.f32.xlu0 %v4793
        %v4795 = vpop.xlane.xlu0 %4794
        %v4796 = vsel %vm859, %v4448, 0.0
        %4797 = vadd.xlane.f32.xlu0 %v4796
        %v4798 = vpop.xlane.xlu0 %4797
        %v4799 = vsel %vm859, %v4449, 0.0
        %4800 = vadd.xlane.f32.xlu0 %v4799
        %v4801 = vpop.xlane.xlu0 %4800
        %v4802 = vsel %vm859, %v4450, 0.0
        %4803 = vadd.xlane.f32.xlu0 %v4802
        %v4804 = vpop.xlane.xlu0 %4803
        %v4805 = vsel %vm859, %v4451, 0.0
        %4806 = vadd.xlane.f32.xlu0 %v4805
        %v4807 = vpop.xlane.xlu0 %4806
        %v4808 = vsel %vm859, %v4452, 0.0
        %4809 = vadd.xlane.f32.xlu0 %v4808
        %v4810 = vpop.xlane.xlu0 %4809
        %v4811 = vsel %vm859, %v4453, 0.0
        %4812 = vadd.xlane.f32.xlu0 %v4811
        %v4813 = vpop.xlane.xlu0 %4812
        %v4814 = vsel %vm859, %v4454, 0.0
        %4815 = vadd.xlane.f32.xlu0 %v4814
        %v4816 = vpop.xlane.xlu0 %4815
        %v4817 = vsel %vm859, %v4455, 0.0
        %4818 = vadd.xlane.f32.xlu0 %v4817
        %v4819 = vpop.xlane.xlu0 %4818
        %v4820 = vsel %vm859, %v4456, 0.0
        %4821 = vadd.xlane.f32.xlu0 %v4820
        %v4822 = vpop.xlane.xlu0 %4821
        %v4823 = vsel %vm859, %v4457, 0.0
        %4824 = vadd.xlane.f32.xlu0 %v4823
        %v4825 = vpop.xlane.xlu0 %4824
        %v4826 = vsel %vm859, %v4458, 0.0
        %4827 = vadd.xlane.f32.xlu0 %v4826
        %v4828 = vpop.xlane.xlu0 %4827
        %v4829 = vsel %vm859, %v4459, 0.0
        %4830 = vadd.xlane.f32.xlu0 %v4829
        %v4831 = vpop.xlane.xlu0 %4830
        %v4832 = vsel %vm859, %v4460, 0.0
        %4833 = vadd.xlane.f32.xlu0 %v4832
        %v4834 = vpop.xlane.xlu0 %4833
        %v4835 = vsel %vm859, %v4461, 0.0
        %4836 = vadd.xlane.f32.xlu0 %v4835
        %v4837 = vpop.xlane.xlu0 %4836
        %v4838 = vsel %vm859, %v4462, 0.0
        %4839 = vadd.xlane.f32.xlu0 %v4838
        %v4840 = vpop.xlane.xlu0 %4839
        %v4841 = vsel %vm859, %v4463, 0.0
        %4842 = vadd.xlane.f32.xlu0 %v4841
        %v4843 = vpop.xlane.xlu0 %4842
        %v4844 = vsel %vm859, %v4464, 0.0
        %4845 = vadd.xlane.f32.xlu0 %v4844
        %v4846 = vpop.xlane.xlu0 %4845
        %v4847 = vsel %vm859, %v4465, 0.0
        %4848 = vadd.xlane.f32.xlu0 %v4847
        %v4849 = vpop.xlane.xlu0 %4848
        %v4850 = vmul.f32 %v4468, %v4468
        %v4851 = vmul.f32 %v4471, %v4471
        %v4852 = vmul.f32 %v4474, %v4474
        %v4853 = vmul.f32 %v4477, %v4477
        %v4854 = vmul.f32 %v4480, %v4480
        %v4855 = vmul.f32 %v4483, %v4483
        %v4856 = vmul.f32 %v4486, %v4486
        %v4857 = vmul.f32 %v4489, %v4489
        %v4858 = vmul.f32 %v4492, %v4492
        %v4859 = vmul.f32 %v4495, %v4495
        %v4860 = vmul.f32 %v4498, %v4498
        %v4861 = vmul.f32 %v4501, %v4501
        %v4862 = vmul.f32 %v4504, %v4504
        %v4863 = vmul.f32 %v4507, %v4507
        %v4864 = vmul.f32 %v4510, %v4510
        %v4865 = vmul.f32 %v4513, %v4513
        %v4866 = vmul.f32 %v4516, %v4516
        %v4867 = vmul.f32 %v4519, %v4519
        %v4868 = vmul.f32 %v4522, %v4522
        %v4869 = vmul.f32 %v4525, %v4525
        %v4870 = vmul.f32 %v4528, %v4528
        %v4871 = vmul.f32 %v4531, %v4531
        %v4872 = vmul.f32 %v4534, %v4534
        %v4873 = vmul.f32 %v4537, %v4537
        %v4874 = vmul.f32 %v4540, %v4540
        %v4875 = vmul.f32 %v4543, %v4543
        %v4876 = vmul.f32 %v4546, %v4546
        %v4877 = vmul.f32 %v4549, %v4549
        %v4878 = vmul.f32 %v4552, %v4552
        %v4879 = vmul.f32 %v4555, %v4555
        %v4880 = vmul.f32 %v4558, %v4558
        %v4881 = vmul.f32 %v4561, %v4561
        %v4882 = vmul.f32 %v4564, %v4564
        %v4883 = vmul.f32 %v4567, %v4567
        %v4884 = vmul.f32 %v4570, %v4570
        %v4885 = vmul.f32 %v4573, %v4573
        %v4886 = vmul.f32 %v4576, %v4576
        %v4887 = vmul.f32 %v4579, %v4579
        %v4888 = vmul.f32 %v4582, %v4582
        %v4889 = vmul.f32 %v4585, %v4585
        %v4890 = vmul.f32 %v4588, %v4588
        %v4891 = vmul.f32 %v4591, %v4591
        %v4892 = vmul.f32 %v4594, %v4594
        %v4893 = vmul.f32 %v4597, %v4597
        %v4894 = vmul.f32 %v4600, %v4600
        %v4895 = vmul.f32 %v4603, %v4603
        %v4896 = vmul.f32 %v4606, %v4606
        %v4897 = vmul.f32 %v4609, %v4609
        %v4898 = vmul.f32 %v4612, %v4612
        %v4899 = vmul.f32 %v4615, %v4615
        %v4900 = vmul.f32 %v4618, %v4618
        %v4901 = vmul.f32 %v4621, %v4621
        %v4902 = vmul.f32 %v4624, %v4624
        %v4903 = vmul.f32 %v4627, %v4627
        %v4904 = vmul.f32 %v4630, %v4630
        %v4905 = vmul.f32 %v4633, %v4633
        %v4906 = vmul.f32 %v4636, %v4636
        %v4907 = vmul.f32 %v4639, %v4639
        %v4908 = vmul.f32 %v4642, %v4642
        %v4909 = vmul.f32 %v4645, %v4645
        %v4910 = vmul.f32 %v4648, %v4648
        %v4911 = vmul.f32 %v4651, %v4651
        %v4912 = vmul.f32 %v4654, %v4654
        %v4913 = vmul.f32 %v4657, %v4657
        %v4914 = vmul.f32 %v4660, %v4660
        %v4915 = vmul.f32 %v4663, %v4663
        %v4916 = vmul.f32 %v4666, %v4666
        %v4917 = vmul.f32 %v4669, %v4669
        %v4918 = vmul.f32 %v4672, %v4672
        %v4919 = vmul.f32 %v4675, %v4675
        %v4920 = vmul.f32 %v4678, %v4678
        %v4921 = vmul.f32 %v4681, %v4681
        %v4922 = vmul.f32 %v4684, %v4684
        %v4923 = vmul.f32 %v4687, %v4687
        %v4924 = vmul.f32 %v4690, %v4690
        %v4925 = vmul.f32 %v4693, %v4693
        %v4926 = vmul.f32 %v4696, %v4696
        %v4927 = vmul.f32 %v4699, %v4699
        %v4928 = vmul.f32 %v4702, %v4702
        %v4929 = vmul.f32 %v4705, %v4705
        %v4930 = vmul.f32 %v4708, %v4708
        %v4931 = vmul.f32 %v4711, %v4711
        %v4932 = vmul.f32 %v4714, %v4714
        %v4933 = vmul.f32 %v4717, %v4717
        %v4934 = vmul.f32 %v4720, %v4720
        %v4935 = vmul.f32 %v4723, %v4723
        %v4936 = vmul.f32 %v4726, %v4726
        %v4937 = vmul.f32 %v4729, %v4729
        %v4938 = vmul.f32 %v4732, %v4732
        %v4939 = vmul.f32 %v4735, %v4735
        %v4940 = vmul.f32 %v4738, %v4738
        %v4941 = vmul.f32 %v4741, %v4741
        %v4942 = vmul.f32 %v4744, %v4744
        %v4943 = vmul.f32 %v4747, %v4747
        %v4944 = vmul.f32 %v4750, %v4750
        %v4945 = vmul.f32 %v4753, %v4753
        %v4946 = vmul.f32 %v4756, %v4756
        %v4947 = vmul.f32 %v4759, %v4759
        %v4948 = vmul.f32 %v4762, %v4762
        %v4949 = vmul.f32 %v4765, %v4765
        %v4950 = vmul.f32 %v4768, %v4768
        %v4951 = vmul.f32 %v4771, %v4771
        %v4952 = vmul.f32 %v4774, %v4774
        %v4953 = vmul.f32 %v4777, %v4777
        %v4954 = vmul.f32 %v4780, %v4780
        %v4955 = vmul.f32 %v4783, %v4783
        %v4956 = vmul.f32 %v4786, %v4786
        %v4957 = vmul.f32 %v4789, %v4789
        %v4958 = vmul.f32 %v4792, %v4792
        %v4959 = vmul.f32 %v4795, %v4795
        %v4960 = vmul.f32 %v4798, %v4798
        %v4961 = vmul.f32 %v4801, %v4801
        %v4962 = vmul.f32 %v4804, %v4804
        %v4963 = vmul.f32 %v4807, %v4807
        %v4964 = vmul.f32 %v4810, %v4810
        %v4965 = vmul.f32 %v4813, %v4813
        %v4966 = vmul.f32 %v4816, %v4816
        %v4967 = vmul.f32 %v4819, %v4819
        %v4968 = vmul.f32 %v4822, %v4822
        %v4969 = vmul.f32 %v4825, %v4825
        %v4970 = vmul.f32 %v4828, %v4828
        %v4971 = vmul.f32 %v4831, %v4831
        %v4972 = vmul.f32 %v4834, %v4834
        %v4973 = vmul.f32 %v4837, %v4837
        %v4974 = vmul.f32 %v4840, %v4840
        %v4975 = vmul.f32 %v4843, %v4843
        %v4976 = vmul.f32 %v4846, %v4846
        %v4977 = vmul.f32 %v4849, %v4849
        %v4978 = vadd.f32 %v4850, %v4882
        %v4979 = vadd.f32 %v4978, %v4914
        %v4980 = vadd.f32 %v4979, %v4946
        %v4981 = vadd.f32 %v4851, %v4883
        %v4982 = vadd.f32 %v4981, %v4915
        %v4983 = vadd.f32 %v4982, %v4947
        %v4984 = vadd.f32 %v4852, %v4884
        %v4985 = vadd.f32 %v4984, %v4916
        %v4986 = vadd.f32 %v4985, %v4948
        %v4987 = vadd.f32 %v4853, %v4885
        %v4988 = vadd.f32 %v4987, %v4917
        %v4989 = vadd.f32 %v4988, %v4949
        %v4990 = vadd.f32 %v4854, %v4886
        %v4991 = vadd.f32 %v4990, %v4918
        %v4992 = vadd.f32 %v4991, %v4950
        %v4993 = vadd.f32 %v4855, %v4887
        %v4994 = vadd.f32 %v4993, %v4919
        %v4995 = vadd.f32 %v4994, %v4951
        %v4996 = vadd.f32 %v4856, %v4888
        %v4997 = vadd.f32 %v4996, %v4920
        %v4998 = vadd.f32 %v4997, %v4952
        %v4999 = vadd.f32 %v4857, %v4889
        %v5000 = vadd.f32 %v4999, %v4921
        %v5001 = vadd.f32 %v5000, %v4953
        %v5002 = vadd.f32 %v4858, %v4890
        %v5003 = vadd.f32 %v5002, %v4922
        %v5004 = vadd.f32 %v5003, %v4954
        %v5005 = vadd.f32 %v4859, %v4891
        %v5006 = vadd.f32 %v5005, %v4923
        %v5007 = vadd.f32 %v5006, %v4955
        %v5008 = vadd.f32 %v4860, %v4892
        %v5009 = vadd.f32 %v5008, %v4924
        %v5010 = vadd.f32 %v5009, %v4956
        %v5011 = vadd.f32 %v4861, %v4893
        %v5012 = vadd.f32 %v5011, %v4925
        %v5013 = vadd.f32 %v5012, %v4957
        %v5014 = vadd.f32 %v4862, %v4894
        %v5015 = vadd.f32 %v5014, %v4926
        %v5016 = vadd.f32 %v5015, %v4958
        %v5017 = vadd.f32 %v4863, %v4895
        %v5018 = vadd.f32 %v5017, %v4927
        %v5019 = vadd.f32 %v5018, %v4959
        %v5020 = vadd.f32 %v4864, %v4896
        %v5021 = vadd.f32 %v5020, %v4928
        %v5022 = vadd.f32 %v5021, %v4960
        %v5023 = vadd.f32 %v4865, %v4897
        %v5024 = vadd.f32 %v5023, %v4929
        %v5025 = vadd.f32 %v5024, %v4961
        %v5026 = vadd.f32 %v4866, %v4898
        %v5027 = vadd.f32 %v5026, %v4930
        %v5028 = vadd.f32 %v5027, %v4962
        %v5029 = vadd.f32 %v4867, %v4899
        %v5030 = vadd.f32 %v5029, %v4931
        %v5031 = vadd.f32 %v5030, %v4963
        %v5032 = vadd.f32 %v4868, %v4900
        %v5033 = vadd.f32 %v5032, %v4932
        %v5034 = vadd.f32 %v5033, %v4964
        %v5035 = vadd.f32 %v4869, %v4901
        %v5036 = vadd.f32 %v5035, %v4933
        %v5037 = vadd.f32 %v5036, %v4965
        %v5038 = vadd.f32 %v4870, %v4902
        %v5039 = vadd.f32 %v5038, %v4934
        %v5040 = vadd.f32 %v5039, %v4966
        %v5041 = vadd.f32 %v4871, %v4903
        %v5042 = vadd.f32 %v5041, %v4935
        %v5043 = vadd.f32 %v5042, %v4967
        %v5044 = vadd.f32 %v4872, %v4904
        %v5045 = vadd.f32 %v5044, %v4936
        %v5046 = vadd.f32 %v5045, %v4968
        %v5047 = vadd.f32 %v4873, %v4905
        %v5048 = vadd.f32 %v5047, %v4937
        %v5049 = vadd.f32 %v5048, %v4969
        %v5050 = vadd.f32 %v4874, %v4906
        %v5051 = vadd.f32 %v5050, %v4938
        %v5052 = vadd.f32 %v5051, %v4970
        %v5053 = vadd.f32 %v4875, %v4907
        %v5054 = vadd.f32 %v5053, %v4939
        %v5055 = vadd.f32 %v5054, %v4971
        %v5056 = vadd.f32 %v4876, %v4908
        %v5057 = vadd.f32 %v5056, %v4940
        %v5058 = vadd.f32 %v5057, %v4972
        %v5059 = vadd.f32 %v4877, %v4909
        %v5060 = vadd.f32 %v5059, %v4941
        %v5061 = vadd.f32 %v5060, %v4973
        %v5062 = vadd.f32 %v4878, %v4910
        %v5063 = vadd.f32 %v5062, %v4942
        %v5064 = vadd.f32 %v5063, %v4974
        %v5065 = vadd.f32 %v4879, %v4911
        %v5066 = vadd.f32 %v5065, %v4943
        %v5067 = vadd.f32 %v5066, %v4975
        %v5068 = vadd.f32 %v4880, %v4912
        %v5069 = vadd.f32 %v5068, %v4944
        %v5070 = vadd.f32 %v5069, %v4976
        %v5071 = vadd.f32 %v4881, %v4913
        %v5072 = vadd.f32 %v5071, %v4945
        %v5073 = vadd.f32 %v5072, %v4977
        %v5074 = vmax.f32 %v4980, 1e-24
        %v5075 = vmax.f32 %v4983, 1e-24
        %v5076 = vmax.f32 %v4986, 1e-24
        %v5077 = vmax.f32 %v4989, 1e-24
        %v5078 = vmax.f32 %v4992, 1e-24
        %v5079 = vmax.f32 %v4995, 1e-24
        %v5080 = vmax.f32 %v4998, 1e-24
        %v5081 = vmax.f32 %v5001, 1e-24
        %v5082 = vmax.f32 %v5004, 1e-24
        %v5083 = vmax.f32 %v5007, 1e-24
        %v5084 = vmax.f32 %v5010, 1e-24
        %v5085 = vmax.f32 %v5013, 1e-24
        %v5086 = vmax.f32 %v5016, 1e-24
        %v5087 = vmax.f32 %v5019, 1e-24
        %v5088 = vmax.f32 %v5022, 1e-24
        %v5089 = vmax.f32 %v5025, 1e-24
        %v5090 = vmax.f32 %v5028, 1e-24
        %v5091 = vmax.f32 %v5031, 1e-24
        %v5092 = vmax.f32 %v5034, 1e-24
        %v5093 = vmax.f32 %v5037, 1e-24
        %v5094 = vmax.f32 %v5040, 1e-24
        %v5095 = vmax.f32 %v5043, 1e-24
        %v5096 = vmax.f32 %v5046, 1e-24
        %v5097 = vmax.f32 %v5049, 1e-24
        %v5098 = vmax.f32 %v5052, 1e-24
        %v5099 = vmax.f32 %v5055, 1e-24
        %v5100 = vmax.f32 %v5058, 1e-24
        %v5101 = vmax.f32 %v5061, 1e-24
        %v5102 = vmax.f32 %v5064, 1e-24
        %v5103 = vmax.f32 %v5067, 1e-24
        %v5104 = vmax.f32 %v5070, 1e-24
        %v5105 = vmax.f32 %v5073, 1e-24
        %v5106 = vrsqrt.pop %v5074
        %v5107 = vrsqrt.pop %v5075
        %v5108 = vrsqrt.pop %v5076
        %v5109 = vrsqrt.pop %v5077
        %v5110 = vrsqrt.pop %v5078
        %v5111 = vrsqrt.pop %v5079
        %v5112 = vrsqrt.pop %v5080
        %v5113 = vrsqrt.pop %v5081
        %v5114 = vrsqrt.pop %v5082
        %v5115 = vrsqrt.pop %v5083
        %v5116 = vrsqrt.pop %v5084
        %v5117 = vrsqrt.pop %v5085
        %v5118 = vrsqrt.pop %v5086
        %v5119 = vrsqrt.pop %v5087
        %v5120 = vrsqrt.pop %v5088
        %v5121 = vrsqrt.pop %v5089
        %v5122 = vrsqrt.pop %v5090
        %v5123 = vrsqrt.pop %v5091
        %v5124 = vrsqrt.pop %v5092
        %v5125 = vrsqrt.pop %v5093
        %v5126 = vrsqrt.pop %v5094
        %v5127 = vrsqrt.pop %v5095
        %v5128 = vrsqrt.pop %v5096
        %v5129 = vrsqrt.pop %v5097
        %v5130 = vrsqrt.pop %v5098
        %v5131 = vrsqrt.pop %v5099
        %v5132 = vrsqrt.pop %v5100
        %v5133 = vrsqrt.pop %v5101
        %v5134 = vrsqrt.pop %v5102
        %v5135 = vrsqrt.pop %v5103
        %v5136 = vrsqrt.pop %v5104
        %v5137 = vrsqrt.pop %v5105
        %v5138 = vmul.f32 %v4468, %v5106
        %v5139 = vmul.f32 %v4471, %v5107
        %v5140 = vmul.f32 %v4474, %v5108
        %v5141 = vmul.f32 %v4477, %v5109
        %v5142 = vmul.f32 %v4480, %v5110
        %v5143 = vmul.f32 %v4483, %v5111
        %v5144 = vmul.f32 %v4486, %v5112
        %v5145 = vmul.f32 %v4489, %v5113
        %v5146 = vmul.f32 %v4492, %v5114
        %v5147 = vmul.f32 %v4495, %v5115
        %v5148 = vmul.f32 %v4498, %v5116
        %v5149 = vmul.f32 %v4501, %v5117
        %v5150 = vmul.f32 %v4504, %v5118
        %v5151 = vmul.f32 %v4507, %v5119
        %v5152 = vmul.f32 %v4510, %v5120
        %v5153 = vmul.f32 %v4513, %v5121
        %v5154 = vmul.f32 %v4516, %v5122
        %v5155 = vmul.f32 %v4519, %v5123
        %v5156 = vmul.f32 %v4522, %v5124
        %v5157 = vmul.f32 %v4525, %v5125
        %v5158 = vmul.f32 %v4528, %v5126
        %v5159 = vmul.f32 %v4531, %v5127
        %v5160 = vmul.f32 %v4534, %v5128
        %v5161 = vmul.f32 %v4537, %v5129
        %v5162 = vmul.f32 %v4540, %v5130
        %v5163 = vmul.f32 %v4543, %v5131
        %v5164 = vmul.f32 %v4546, %v5132
        %v5165 = vmul.f32 %v4549, %v5133
        %v5166 = vmul.f32 %v4552, %v5134
        %v5167 = vmul.f32 %v4555, %v5135
        %v5168 = vmul.f32 %v4558, %v5136
        %v5169 = vmul.f32 %v4561, %v5137
        %v5170 = vmul.f32 %v4564, %v5106
        %v5171 = vmul.f32 %v4567, %v5107
        %v5172 = vmul.f32 %v4570, %v5108
        %v5173 = vmul.f32 %v4573, %v5109
        %v5174 = vmul.f32 %v4576, %v5110
        %v5175 = vmul.f32 %v4579, %v5111
        %v5176 = vmul.f32 %v4582, %v5112
        %v5177 = vmul.f32 %v4585, %v5113
        %v5178 = vmul.f32 %v4588, %v5114
        %v5179 = vmul.f32 %v4591, %v5115
        %v5180 = vmul.f32 %v4594, %v5116
        %v5181 = vmul.f32 %v4597, %v5117
        %v5182 = vmul.f32 %v4600, %v5118
        %v5183 = vmul.f32 %v4603, %v5119
        %v5184 = vmul.f32 %v4606, %v5120
        %v5185 = vmul.f32 %v4609, %v5121
        %v5186 = vmul.f32 %v4612, %v5122
        %v5187 = vmul.f32 %v4615, %v5123
        %v5188 = vmul.f32 %v4618, %v5124
        %v5189 = vmul.f32 %v4621, %v5125
        %v5190 = vmul.f32 %v4624, %v5126
        %v5191 = vmul.f32 %v4627, %v5127
        %v5192 = vmul.f32 %v4630, %v5128
        %v5193 = vmul.f32 %v4633, %v5129
        %v5194 = vmul.f32 %v4636, %v5130
        %v5195 = vmul.f32 %v4639, %v5131
        %v5196 = vmul.f32 %v4642, %v5132
        %v5197 = vmul.f32 %v4645, %v5133
        %v5198 = vmul.f32 %v4648, %v5134
        %v5199 = vmul.f32 %v4651, %v5135
        %v5200 = vmul.f32 %v4654, %v5136
        %v5201 = vmul.f32 %v4657, %v5137
        %v5202 = vmul.f32 %v4660, %v5106
        %v5203 = vmul.f32 %v4663, %v5107
        %v5204 = vmul.f32 %v4666, %v5108
        %v5205 = vmul.f32 %v4669, %v5109
        %v5206 = vmul.f32 %v4672, %v5110
        %v5207 = vmul.f32 %v4675, %v5111
        %v5208 = vmul.f32 %v4678, %v5112
        %v5209 = vmul.f32 %v4681, %v5113
        %v5210 = vmul.f32 %v4684, %v5114
        %v5211 = vmul.f32 %v4687, %v5115
        %v5212 = vmul.f32 %v4690, %v5116
        %v5213 = vmul.f32 %v4693, %v5117
        %v5214 = vmul.f32 %v4696, %v5118
        %v5215 = vmul.f32 %v4699, %v5119
        %v5216 = vmul.f32 %v4702, %v5120
        %v5217 = vmul.f32 %v4705, %v5121
        %v5218 = vmul.f32 %v4708, %v5122
        %v5219 = vmul.f32 %v4711, %v5123
        %v5220 = vmul.f32 %v4714, %v5124
        %v5221 = vmul.f32 %v4717, %v5125
        %v5222 = vmul.f32 %v4720, %v5126
        %v5223 = vmul.f32 %v4723, %v5127
        %v5224 = vmul.f32 %v4726, %v5128
        %v5225 = vmul.f32 %v4729, %v5129
        %v5226 = vmul.f32 %v4732, %v5130
        %v5227 = vmul.f32 %v4735, %v5131
        %v5228 = vmul.f32 %v4738, %v5132
        %v5229 = vmul.f32 %v4741, %v5133
        %v5230 = vmul.f32 %v4744, %v5134
        %v5231 = vmul.f32 %v4747, %v5135
        %v5232 = vmul.f32 %v4750, %v5136
        %v5233 = vmul.f32 %v4753, %v5137
        %v5234 = vmul.f32 %v4756, %v5106
        %v5235 = vmul.f32 %v4759, %v5107
        %v5236 = vmul.f32 %v4762, %v5108
        %v5237 = vmul.f32 %v4765, %v5109
        %v5238 = vmul.f32 %v4768, %v5110
        %v5239 = vmul.f32 %v4771, %v5111
        %v5240 = vmul.f32 %v4774, %v5112
        %v5241 = vmul.f32 %v4777, %v5113
        %v5242 = vmul.f32 %v4780, %v5114
        %v5243 = vmul.f32 %v4783, %v5115
        %v5244 = vmul.f32 %v4786, %v5116
        %v5245 = vmul.f32 %v4789, %v5117
        %v5246 = vmul.f32 %v4792, %v5118
        %v5247 = vmul.f32 %v4795, %v5119
        %v5248 = vmul.f32 %v4798, %v5120
        %v5249 = vmul.f32 %v4801, %v5121
        %v5250 = vmul.f32 %v4804, %v5122
        %v5251 = vmul.f32 %v4807, %v5123
        %v5252 = vmul.f32 %v4810, %v5124
        %v5253 = vmul.f32 %v4813, %v5125
        %v5254 = vmul.f32 %v4816, %v5126
        %v5255 = vmul.f32 %v4819, %v5127
        %v5256 = vmul.f32 %v4822, %v5128
        %v5257 = vmul.f32 %v4825, %v5129
        %v5258 = vmul.f32 %v4828, %v5130
        %v5259 = vmul.f32 %v4831, %v5131
        %v5260 = vmul.f32 %v4834, %v5132
        %v5261 = vmul.f32 %v4837, %v5133
        %v5262 = vmul.f32 %v4840, %v5134
        %v5263 = vmul.f32 %v4843, %v5135
        %v5264 = vmul.f32 %v4846, %v5136
        %v5265 = vmul.f32 %v4849, %v5137
        %v5266 = vmul.f32 %v5138, %v3249
        %v5267 = vmul.f32 %v5139, %v3250
        %v5268 = vmul.f32 %v5140, %v3251
        %v5269 = vmul.f32 %v5141, %v3252
        %v5270 = vmul.f32 %v5142, %v3253
        %v5271 = vmul.f32 %v5143, %v3254
        %v5272 = vmul.f32 %v5144, %v3255
        %v5273 = vmul.f32 %v5145, %v3256
        %v5274 = vmul.f32 %v5146, %v3257
        %v5275 = vmul.f32 %v5147, %v3258
        %v5276 = vmul.f32 %v5148, %v3259
        %v5277 = vmul.f32 %v5149, %v3260
        %v5278 = vmul.f32 %v5150, %v3261
        %v5279 = vmul.f32 %v5151, %v3262
        %v5280 = vmul.f32 %v5152, %v3263
        %v5281 = vmul.f32 %v5153, %v3264
        %v5282 = vmul.f32 %v5154, %v3265
        %v5283 = vmul.f32 %v5155, %v3266
        %v5284 = vmul.f32 %v5156, %v3267
        %v5285 = vmul.f32 %v5157, %v3268
        %v5286 = vmul.f32 %v5158, %v3269
        %v5287 = vmul.f32 %v5159, %v3270
        %v5288 = vmul.f32 %v5160, %v3271
        %v5289 = vmul.f32 %v5161, %v3272
        %v5290 = vmul.f32 %v5162, %v3273
        %v5291 = vmul.f32 %v5163, %v3274
        %v5292 = vmul.f32 %v5164, %v3275
        %v5293 = vmul.f32 %v5165, %v3276
        %v5294 = vmul.f32 %v5166, %v3277
        %v5295 = vmul.f32 %v5167, %v3278
        %v5296 = vmul.f32 %v5168, %v3279
        %v5297 = vmul.f32 %v5169, %v3280
        %v5298 = vmul.f32 %v5170, %v3281
        %v5299 = vmul.f32 %v5171, %v3282
        %v5300 = vmul.f32 %v5172, %v3283
        %v5301 = vmul.f32 %v5173, %v3284
        %v5302 = vmul.f32 %v5174, %v3285
        %v5303 = vmul.f32 %v5175, %v3286
        %v5304 = vmul.f32 %v5176, %v3287
        %v5305 = vmul.f32 %v5177, %v3288
        %v5306 = vmul.f32 %v5178, %v3289
        %v5307 = vmul.f32 %v5179, %v3290
        %v5308 = vmul.f32 %v5180, %v3291
        %v5309 = vmul.f32 %v5181, %v3292
        %v5310 = vmul.f32 %v5182, %v3293
        %v5311 = vmul.f32 %v5183, %v3294
        %v5312 = vmul.f32 %v5184, %v3295
        %v5313 = vmul.f32 %v5185, %v3296
        %v5314 = vmul.f32 %v5186, %v3297
        %v5315 = vmul.f32 %v5187, %v3298
        %v5316 = vmul.f32 %v5188, %v3299
        %v5317 = vmul.f32 %v5189, %v3300
        %v5318 = vmul.f32 %v5190, %v3301
        %v5319 = vmul.f32 %v5191, %v3302
        %v5320 = vmul.f32 %v5192, %v3303
        %v5321 = vmul.f32 %v5193, %v3304
        %v5322 = vmul.f32 %v5194, %v3305
        %v5323 = vmul.f32 %v5195, %v3306
        %v5324 = vmul.f32 %v5196, %v3307
        %v5325 = vmul.f32 %v5197, %v3308
        %v5326 = vmul.f32 %v5198, %v3309
        %v5327 = vmul.f32 %v5199, %v3310
        %v5328 = vmul.f32 %v5200, %v3311
        %v5329 = vmul.f32 %v5201, %v3312
        %v5330 = vmul.f32 %v5202, %v3313
        %v5331 = vmul.f32 %v5203, %v3314
        %v5332 = vmul.f32 %v5204, %v3315
        %v5333 = vmul.f32 %v5205, %v3316
        %v5334 = vmul.f32 %v5206, %v3317
        %v5335 = vmul.f32 %v5207, %v3318
        %v5336 = vmul.f32 %v5208, %v3319
        %v5337 = vmul.f32 %v5209, %v3320
        %v5338 = vmul.f32 %v5210, %v3321
        %v5339 = vmul.f32 %v5211, %v3322
        %v5340 = vmul.f32 %v5212, %v3323
        %v5341 = vmul.f32 %v5213, %v3324
        %v5342 = vmul.f32 %v5214, %v3325
        %v5343 = vmul.f32 %v5215, %v3326
        %v5344 = vmul.f32 %v5216, %v3327
        %v5345 = vmul.f32 %v5217, %v3328
        %v5346 = vmul.f32 %v5218, %v3329
        %v5347 = vmul.f32 %v5219, %v3330
        %v5348 = vmul.f32 %v5220, %v3331
        %v5349 = vmul.f32 %v5221, %v3332
        %v5350 = vmul.f32 %v5222, %v3333
        %v5351 = vmul.f32 %v5223, %v3334
        %v5352 = vmul.f32 %v5224, %v3335
        %v5353 = vmul.f32 %v5225, %v3336
        %v5354 = vmul.f32 %v5226, %v3337
        %v5355 = vmul.f32 %v5227, %v3338
        %v5356 = vmul.f32 %v5228, %v3339
        %v5357 = vmul.f32 %v5229, %v3340
        %v5358 = vmul.f32 %v5230, %v3341
        %v5359 = vmul.f32 %v5231, %v3342
        %v5360 = vmul.f32 %v5232, %v3343
        %v5361 = vmul.f32 %v5233, %v3344
        %v5362 = vmul.f32 %v5234, %v3345
        %v5363 = vmul.f32 %v5235, %v3346
        %v5364 = vmul.f32 %v5236, %v3347
        %v5365 = vmul.f32 %v5237, %v3348
        %v5366 = vmul.f32 %v5238, %v3349
        %v5367 = vmul.f32 %v5239, %v3350
        %v5368 = vmul.f32 %v5240, %v3351
        %v5369 = vmul.f32 %v5241, %v3352
        %v5370 = vmul.f32 %v5242, %v3353
        %v5371 = vmul.f32 %v5243, %v3354
        %v5372 = vmul.f32 %v5244, %v3355
        %v5373 = vmul.f32 %v5245, %v3356
        %v5374 = vmul.f32 %v5246, %v3357
        %v5375 = vmul.f32 %v5247, %v3358
        %v5376 = vmul.f32 %v5248, %v3359
        %v5377 = vmul.f32 %v5249, %v3360
        %v5378 = vmul.f32 %v5250, %v3361
        %v5379 = vmul.f32 %v5251, %v3362
        %v5380 = vmul.f32 %v5252, %v3363
        %v5381 = vmul.f32 %v5253, %v3364
        %v5382 = vmul.f32 %v5254, %v3365
        %v5383 = vmul.f32 %v5255, %v3366
        %v5384 = vmul.f32 %v5256, %v3367
        %v5385 = vmul.f32 %v5257, %v3368
        %v5386 = vmul.f32 %v5258, %v3369
        %v5387 = vmul.f32 %v5259, %v3370
        %v5388 = vmul.f32 %v5260, %v3371
        %v5389 = vmul.f32 %v5261, %v3372
        %v5390 = vmul.f32 %v5262, %v3373
        %v5391 = vmul.f32 %v5263, %v3374
        %v5392 = vmul.f32 %v5264, %v3375
        %v5393 = vmul.f32 %v5265, %v3376
        %v5394 = vsel %vm859, %v5266, 0.0
        %v5395 = vsel %vm859, %v5298, 0.0
        %v5396 = vadd.f32 %v5394, %v5395
        %v5397 = vsel %vm859, %v5330, 0.0
        %v5398 = vadd.f32 %v5396, %v5397
        %v5399 = vsel %vm859, %v5362, 0.0
        %v5400 = vadd.f32 %v5398, %v5399
        %v5401 = vsel %vm859, %v5267, 0.0
        %v5402 = vsel %vm859, %v5299, 0.0
        %v5403 = vadd.f32 %v5401, %v5402
        %v5404 = vsel %vm859, %v5331, 0.0
        %v5405 = vadd.f32 %v5403, %v5404
        %v5406 = vsel %vm859, %v5363, 0.0
        %v5407 = vadd.f32 %v5405, %v5406
        %v5408 = vsel %vm859, %v5268, 0.0
        %v5409 = vsel %vm859, %v5300, 0.0
        %v5410 = vadd.f32 %v5408, %v5409
        %v5411 = vsel %vm859, %v5332, 0.0
        %v5412 = vadd.f32 %v5410, %v5411
        %v5413 = vsel %vm859, %v5364, 0.0
        %v5414 = vadd.f32 %v5412, %v5413
        %v5415 = vsel %vm859, %v5269, 0.0
        %v5416 = vsel %vm859, %v5301, 0.0
        %v5417 = vadd.f32 %v5415, %v5416
        %v5418 = vsel %vm859, %v5333, 0.0
        %v5419 = vadd.f32 %v5417, %v5418
        %v5420 = vsel %vm859, %v5365, 0.0
        %v5421 = vadd.f32 %v5419, %v5420
        %v5422 = vsel %vm859, %v5270, 0.0
        %v5423 = vsel %vm859, %v5302, 0.0
        %v5424 = vadd.f32 %v5422, %v5423
        %v5425 = vsel %vm859, %v5334, 0.0
        %v5426 = vadd.f32 %v5424, %v5425
        %v5427 = vsel %vm859, %v5366, 0.0
        %v5428 = vadd.f32 %v5426, %v5427
        %v5429 = vsel %vm859, %v5271, 0.0
        %v5430 = vsel %vm859, %v5303, 0.0
        %v5431 = vadd.f32 %v5429, %v5430
        %v5432 = vsel %vm859, %v5335, 0.0
        %v5433 = vadd.f32 %v5431, %v5432
        %v5434 = vsel %vm859, %v5367, 0.0
        %v5435 = vadd.f32 %v5433, %v5434
        %v5436 = vsel %vm859, %v5272, 0.0
        %v5437 = vsel %vm859, %v5304, 0.0
        %v5438 = vadd.f32 %v5436, %v5437
        %v5439 = vsel %vm859, %v5336, 0.0
        %v5440 = vadd.f32 %v5438, %v5439
        %v5441 = vsel %vm859, %v5368, 0.0
        %v5442 = vadd.f32 %v5440, %v5441
        %v5443 = vsel %vm859, %v5273, 0.0
        %v5444 = vsel %vm859, %v5305, 0.0
        %v5445 = vadd.f32 %v5443, %v5444
        %v5446 = vsel %vm859, %v5337, 0.0
        %v5447 = vadd.f32 %v5445, %v5446
        %v5448 = vsel %vm859, %v5369, 0.0
        %v5449 = vadd.f32 %v5447, %v5448
        %v5450 = vsel %vm859, %v5274, 0.0
        %v5451 = vsel %vm859, %v5306, 0.0
        %v5452 = vadd.f32 %v5450, %v5451
        %v5453 = vsel %vm859, %v5338, 0.0
        %v5454 = vadd.f32 %v5452, %v5453
        %v5455 = vsel %vm859, %v5370, 0.0
        %v5456 = vadd.f32 %v5454, %v5455
        %v5457 = vsel %vm859, %v5275, 0.0
        %v5458 = vsel %vm859, %v5307, 0.0
        %v5459 = vadd.f32 %v5457, %v5458
        %v5460 = vsel %vm859, %v5339, 0.0
        %v5461 = vadd.f32 %v5459, %v5460
        %v5462 = vsel %vm859, %v5371, 0.0
        %v5463 = vadd.f32 %v5461, %v5462
        %v5464 = vsel %vm859, %v5276, 0.0
        %v5465 = vsel %vm859, %v5308, 0.0
        %v5466 = vadd.f32 %v5464, %v5465
        %v5467 = vsel %vm859, %v5340, 0.0
        %v5468 = vadd.f32 %v5466, %v5467
        %v5469 = vsel %vm859, %v5372, 0.0
        %v5470 = vadd.f32 %v5468, %v5469
        %v5471 = vsel %vm859, %v5277, 0.0
        %v5472 = vsel %vm859, %v5309, 0.0
        %v5473 = vadd.f32 %v5471, %v5472
        %v5474 = vsel %vm859, %v5341, 0.0
        %v5475 = vadd.f32 %v5473, %v5474
        %v5476 = vsel %vm859, %v5373, 0.0
        %v5477 = vadd.f32 %v5475, %v5476
        %v5478 = vsel %vm859, %v5278, 0.0
        %v5479 = vsel %vm859, %v5310, 0.0
        %v5480 = vadd.f32 %v5478, %v5479
        %v5481 = vsel %vm859, %v5342, 0.0
        %v5482 = vadd.f32 %v5480, %v5481
        %v5483 = vsel %vm859, %v5374, 0.0
        %v5484 = vadd.f32 %v5482, %v5483
        %v5485 = vsel %vm859, %v5279, 0.0
        %v5486 = vsel %vm859, %v5311, 0.0
        %v5487 = vadd.f32 %v5485, %v5486
        %v5488 = vsel %vm859, %v5343, 0.0
        %v5489 = vadd.f32 %v5487, %v5488
        %v5490 = vsel %vm859, %v5375, 0.0
        %v5491 = vadd.f32 %v5489, %v5490
        %v5492 = vsel %vm859, %v5280, 0.0
        %v5493 = vsel %vm859, %v5312, 0.0
        %v5494 = vadd.f32 %v5492, %v5493
        %v5495 = vsel %vm859, %v5344, 0.0
        %v5496 = vadd.f32 %v5494, %v5495
        %v5497 = vsel %vm859, %v5376, 0.0
        %v5498 = vadd.f32 %v5496, %v5497
        %v5499 = vsel %vm859, %v5281, 0.0
        %v5500 = vsel %vm859, %v5313, 0.0
        %v5501 = vadd.f32 %v5499, %v5500
        %v5502 = vsel %vm859, %v5345, 0.0
        %v5503 = vadd.f32 %v5501, %v5502
        %v5504 = vsel %vm859, %v5377, 0.0
        %v5505 = vadd.f32 %v5503, %v5504
        %v5506 = vsel %vm859, %v5282, 0.0
        %v5507 = vsel %vm859, %v5314, 0.0
        %v5508 = vadd.f32 %v5506, %v5507
        %v5509 = vsel %vm859, %v5346, 0.0
        %v5510 = vadd.f32 %v5508, %v5509
        %v5511 = vsel %vm859, %v5378, 0.0
        %v5512 = vadd.f32 %v5510, %v5511
        %v5513 = vsel %vm859, %v5283, 0.0
        %v5514 = vsel %vm859, %v5315, 0.0
        %v5515 = vadd.f32 %v5513, %v5514
        %v5516 = vsel %vm859, %v5347, 0.0
        %v5517 = vadd.f32 %v5515, %v5516
        %v5518 = vsel %vm859, %v5379, 0.0
        %v5519 = vadd.f32 %v5517, %v5518
        %v5520 = vsel %vm859, %v5284, 0.0
        %v5521 = vsel %vm859, %v5316, 0.0
        %v5522 = vadd.f32 %v5520, %v5521
        %v5523 = vsel %vm859, %v5348, 0.0
        %v5524 = vadd.f32 %v5522, %v5523
        %v5525 = vsel %vm859, %v5380, 0.0
        %v5526 = vadd.f32 %v5524, %v5525
        %v5527 = vsel %vm859, %v5285, 0.0
        %v5528 = vsel %vm859, %v5317, 0.0
        %v5529 = vadd.f32 %v5527, %v5528
        %v5530 = vsel %vm859, %v5349, 0.0
        %v5531 = vadd.f32 %v5529, %v5530
        %v5532 = vsel %vm859, %v5381, 0.0
        %v5533 = vadd.f32 %v5531, %v5532
        %v5534 = vsel %vm859, %v5286, 0.0
        %v5535 = vsel %vm859, %v5318, 0.0
        %v5536 = vadd.f32 %v5534, %v5535
        %v5537 = vsel %vm859, %v5350, 0.0
        %v5538 = vadd.f32 %v5536, %v5537
        %v5539 = vsel %vm859, %v5382, 0.0
        %v5540 = vadd.f32 %v5538, %v5539
        %v5541 = vsel %vm859, %v5287, 0.0
        %v5542 = vsel %vm859, %v5319, 0.0
        %v5543 = vadd.f32 %v5541, %v5542
        %v5544 = vsel %vm859, %v5351, 0.0
        %v5545 = vadd.f32 %v5543, %v5544
        %v5546 = vsel %vm859, %v5383, 0.0
        %v5547 = vadd.f32 %v5545, %v5546
        %v5548 = vsel %vm859, %v5288, 0.0
        %v5549 = vsel %vm859, %v5320, 0.0
        %v5550 = vadd.f32 %v5548, %v5549
        %v5551 = vsel %vm859, %v5352, 0.0
        %v5552 = vadd.f32 %v5550, %v5551
        %v5553 = vsel %vm859, %v5384, 0.0
        %v5554 = vadd.f32 %v5552, %v5553
        %v5555 = vsel %vm859, %v5289, 0.0
        %v5556 = vsel %vm859, %v5321, 0.0
        %v5557 = vadd.f32 %v5555, %v5556
        %v5558 = vsel %vm859, %v5353, 0.0
        %v5559 = vadd.f32 %v5557, %v5558
        %v5560 = vsel %vm859, %v5385, 0.0
        %v5561 = vadd.f32 %v5559, %v5560
        %v5562 = vsel %vm859, %v5290, 0.0
        %v5563 = vsel %vm859, %v5322, 0.0
        %v5564 = vadd.f32 %v5562, %v5563
        %v5565 = vsel %vm859, %v5354, 0.0
        %v5566 = vadd.f32 %v5564, %v5565
        %v5567 = vsel %vm859, %v5386, 0.0
        %v5568 = vadd.f32 %v5566, %v5567
        %v5569 = vsel %vm859, %v5291, 0.0
        %v5570 = vsel %vm859, %v5323, 0.0
        %v5571 = vadd.f32 %v5569, %v5570
        %v5572 = vsel %vm859, %v5355, 0.0
        %v5573 = vadd.f32 %v5571, %v5572
        %v5574 = vsel %vm859, %v5387, 0.0
        %v5575 = vadd.f32 %v5573, %v5574
        %v5576 = vsel %vm859, %v5292, 0.0
        %v5577 = vsel %vm859, %v5324, 0.0
        %v5578 = vadd.f32 %v5576, %v5577
        %v5579 = vsel %vm859, %v5356, 0.0
        %v5580 = vadd.f32 %v5578, %v5579
        %v5581 = vsel %vm859, %v5388, 0.0
        %v5582 = vadd.f32 %v5580, %v5581
        %v5583 = vsel %vm859, %v5293, 0.0
        %v5584 = vsel %vm859, %v5325, 0.0
        %v5585 = vadd.f32 %v5583, %v5584
        %v5586 = vsel %vm859, %v5357, 0.0
        %v5587 = vadd.f32 %v5585, %v5586
        %v5588 = vsel %vm859, %v5389, 0.0
        %v5589 = vadd.f32 %v5587, %v5588
        %v5590 = vsel %vm859, %v5294, 0.0
        %v5591 = vsel %vm859, %v5326, 0.0
        %v5592 = vadd.f32 %v5590, %v5591
        %v5593 = vsel %vm859, %v5358, 0.0
        %v5594 = vadd.f32 %v5592, %v5593
        %v5595 = vsel %vm859, %v5390, 0.0
        %v5596 = vadd.f32 %v5594, %v5595
        %v5597 = vsel %vm859, %v5295, 0.0
        %v5598 = vsel %vm859, %v5327, 0.0
        %v5599 = vadd.f32 %v5597, %v5598
        %v5600 = vsel %vm859, %v5359, 0.0
        %v5601 = vadd.f32 %v5599, %v5600
        %v5602 = vsel %vm859, %v5391, 0.0
        %v5603 = vadd.f32 %v5601, %v5602
        %v5604 = vsel %vm859, %v5296, 0.0
        %v5605 = vsel %vm859, %v5328, 0.0
        %v5606 = vadd.f32 %v5604, %v5605
        %v5607 = vsel %vm859, %v5360, 0.0
        %v5608 = vadd.f32 %v5606, %v5607
        %v5609 = vsel %vm859, %v5392, 0.0
        %v5610 = vadd.f32 %v5608, %v5609
        %v5611 = vsel %vm859, %v5297, 0.0
        %v5612 = vsel %vm859, %v5329, 0.0
        %v5613 = vadd.f32 %v5611, %v5612
        %v5614 = vsel %vm859, %v5361, 0.0
        %v5615 = vadd.f32 %v5613, %v5614
        %v5616 = vsel %vm859, %v5393, 0.0
        %v5617 = vadd.f32 %v5615, %v5616
        %v5618 = vadd.f32 %v3377, %v5400
        %v5619 = vadd.f32 %v3378, %v5407
        %v5620 = vadd.f32 %v3379, %v5414
        %v5621 = vadd.f32 %v3380, %v5421
        %v5622 = vadd.f32 %v3381, %v5428
        %v5623 = vadd.f32 %v3382, %v5435
        %v5624 = vadd.f32 %v3383, %v5442
        %v5625 = vadd.f32 %v3384, %v5449
        %v5626 = vadd.f32 %v3385, %v5456
        %v5627 = vadd.f32 %v3386, %v5463
        %v5628 = vadd.f32 %v3387, %v5470
        %v5629 = vadd.f32 %v3388, %v5477
        %v5630 = vadd.f32 %v3389, %v5484
        %v5631 = vadd.f32 %v3390, %v5491
        %v5632 = vadd.f32 %v3391, %v5498
        %v5633 = vadd.f32 %v3392, %v5505
        %v5634 = vadd.f32 %v3393, %v5512
        %v5635 = vadd.f32 %v3394, %v5519
        %v5636 = vadd.f32 %v3395, %v5526
        %v5637 = vadd.f32 %v3396, %v5533
        %v5638 = vadd.f32 %v3397, %v5540
        %v5639 = vadd.f32 %v3398, %v5547
        %v5640 = vadd.f32 %v3399, %v5554
        %v5641 = vadd.f32 %v3400, %v5561
        %v5642 = vadd.f32 %v3401, %v5568
        %v5643 = vadd.f32 %v3402, %v5575
        %v5644 = vadd.f32 %v3403, %v5582
        %v5645 = vadd.f32 %v3404, %v5589
        %v5646 = vadd.f32 %v3405, %v5596
        %v5647 = vadd.f32 %v3406, %v5603
        %v5648 = vadd.f32 %v3407, %v5610
        %v5649 = vadd.f32 %v3408, %v5617
        %5650 = vst.msk [vmem:[%s8] sm:$0xff] %vm859, %v5618
        %5651 = vst.msk [vmem:[%s8 + $0x8] sm:$0xff] %vm859, %v5619
        %5652 = vst.msk [vmem:[%s8 + $0x10] sm:$0xff] %vm859, %v5620
        %5653 = vst.msk [vmem:[%s8 + $0x18] sm:$0xff] %vm859, %v5621
        %5654 = vst.msk [vmem:[%s8 + $0x20] sm:$0xff] %vm859, %v5622
        %5655 = vst.msk [vmem:[%s8 + $0x28] sm:$0xff] %vm859, %v5623
        %5656 = vst.msk [vmem:[%s8 + $0x30] sm:$0xff] %vm859, %v5624
        %5657 = vst.msk [vmem:[%s8 + $0x38] sm:$0xff] %vm859, %v5625
        %5658 = vst.msk [vmem:[%s8 + $0x40] sm:$0xff] %vm859, %v5626
        %5659 = vst.msk [vmem:[%s8 + $0x48] sm:$0xff] %vm859, %v5627
        %5660 = vst.msk [vmem:[%s8 + $0x50] sm:$0xff] %vm859, %v5628
        %5661 = vst.msk [vmem:[%s8 + $0x58] sm:$0xff] %vm859, %v5629
        %5662 = vst.msk [vmem:[%s8 + $0x60] sm:$0xff] %vm859, %v5630
        %5663 = vst.msk [vmem:[%s8 + $0x68] sm:$0xff] %vm859, %v5631
        %5664 = vst.msk [vmem:[%s8 + $0x70] sm:$0xff] %vm859, %v5632
        %5665 = vst.msk [vmem:[%s8 + $0x78] sm:$0xff] %vm859, %v5633
        %5666 = vst.msk [vmem:[%s8 + $0x80] sm:$0xff] %vm859, %v5634
        %5667 = vst.msk [vmem:[%s8 + $0x88] sm:$0xff] %vm859, %v5635
        %5668 = vst.msk [vmem:[%s8 + $0x90] sm:$0xff] %vm859, %v5636
        %5669 = vst.msk [vmem:[%s8 + $0x98] sm:$0xff] %vm859, %v5637
        %5670 = vst.msk [vmem:[%s8 + $0xa0] sm:$0xff] %vm859, %v5638
        %5671 = vst.msk [vmem:[%s8 + $0xa8] sm:$0xff] %vm859, %v5639
        %5672 = vst.msk [vmem:[%s8 + $0xb0] sm:$0xff] %vm859, %v5640
        %5673 = vst.msk [vmem:[%s8 + $0xb8] sm:$0xff] %vm859, %v5641
        %5674 = vst.msk [vmem:[%s8 + $0xc0] sm:$0xff] %vm859, %v5642
        %5675 = vst.msk [vmem:[%s8 + $0xc8] sm:$0xff] %vm859, %v5643
        %5676 = vst.msk [vmem:[%s8 + $0xd0] sm:$0xff] %vm859, %v5644
        %5677 = vst.msk [vmem:[%s8 + $0xd8] sm:$0xff] %vm859, %v5645
        %5678 = vst.msk [vmem:[%s8 + $0xe0] sm:$0xff] %vm859, %v5646
        %5679 = vst.msk [vmem:[%s8 + $0xe8] sm:$0xff] %vm859, %v5647
        %5680 = vst.msk [vmem:[%s8 + $0xf0] sm:$0xff] %vm859, %v5648
        %5681 = vst.msk [vmem:[%s8 + $0xf8] sm:$0xff] %vm859, %v5649
      $region52: #{_bpr_forward_device.1} parent=47 // pred_fallthru
        _
      // Predicated region
      $region53: #{_bpr_forward_device.1} parent=47 // pred_check
        %p5682 = pneg %p191
      $region54: #{_bpr_forward_device.1} parent=47 // pred_check_branch
        %5684 = sbr.rel (%p5682) target = $region56
      $region55: #{_bpr_forward_device.1} parent=47 // pred_region
        _
      $region56: #{_bpr_forward_device.1} parent=47 // pred_fallthru
        _
      // Predicated region
      $region57: #{_bpr_forward_device.1} parent=47 // pred_check
        %p5685 = pneg %p212
      $region58: #{_bpr_forward_device.1} parent=47 // pred_check_branch
        %5687 = sbr.rel (%p5685) target = $region60
      $region59: #{_bpr_forward_device.1} parent=47 // pred_region
        _
      $region60: #{_bpr_forward_device.1} parent=47 // pred_fallthru
        _
      // Predicated region
      $region61: #{_bpr_forward_device.1} parent=47 // pred_check
        %p5688 = pneg %p233
      $region62: #{_bpr_forward_device.1} parent=47 // pred_check_branch
        %5690 = sbr.rel (%p5688) target = $region64
      $region63: #{_bpr_forward_device.1} parent=47 // pred_region
        _
      $region64: #{_bpr_forward_device.1} parent=47 // pred_fallthru
        _
      // Predicated region
      $region65: #{_bpr_forward_device.1} parent=47 // pred_check
        %p5691 = pneg %p191
      $region66: #{_bpr_forward_device.1} parent=47 // pred_check_branch
        %5693 = sbr.rel (%p5691) target = $region68
      $region67: #{_bpr_forward_device.1} parent=47 // pred_region
        _
      $region68: #{_bpr_forward_device.1} parent=47 // pred_fallthru
        _
      // Predicated region
      $region69: #{_bpr_forward_device.1} parent=47 // pred_check
        %p5694 = pneg %p212
      $region70: #{_bpr_forward_device.1} parent=47 // pred_check_branch
        %5696 = sbr.rel (%p5694) target = $region72
      $region71: #{_bpr_forward_device.1} parent=47 // pred_region
        _
      $region72: #{_bpr_forward_device.1} parent=47 // pred_fallthru
        _
      // Predicated region
      $region73: #{_bpr_forward_device.1} parent=47 // pred_check
        %p5697 = pneg %p233
      $region74: #{_bpr_forward_device.1} parent=47 // pred_check_branch
        %5699 = sbr.rel (%p5697) target = $region76
      $region75: #{_bpr_forward_device.1} parent=47 // pred_region
        _
      $region76: #{_bpr_forward_device.1} parent=47 // pred_fallthru
        _
    $region48: #{_bpr_forward_device.1} parent=5 // pred_fallthru
      _
    %p5700 = scmp.le.s32.totalorder 2, %s16
    // Predicated region
    $region77: #{_bpr_forward_device.1} parent=5 // pred_check
      %p5701 = pneg %p5700
    $region78: #{_bpr_forward_device.1} parent=5 // pred_check_branch
      %5703 = sbr.rel (%p5701) target = $region80
    $region79: #{_bpr_forward_device.1} parent=5 // pred_region
      %s5704 = ssub.s32 %s16, 2
    $region80: #{_bpr_forward_device.1} parent=5 // pred_fallthru
      _
  $region6: #{_bpr_forward_device.1} parent=0 // loop_footer
    %s20 = sadd.s32 1, %s16
  $region7: #{_bpr_forward_device.1} parent=0 // loop_footer_branch
    %15 = sbr.rel target = $region3
  $region8: #{_bpr_forward_device.1} parent=0 // loop_exit
    _

</llo_original>
